<compile_context>
chip_gen: v7x
topology: tpu7x:2x2x1
jax: 0.10.0
libtpu: 0.0.40
codegen_flags: <defaults>
</compile_context>

<pallas_src>
import functools

import jax
import jax.numpy as jnp
from jax import lax
from jax.experimental import pallas as pl
from jax.experimental.pallas import tpu as pltpu


# ----------------------------------------------------------------------------
# small helpers
# ----------------------------------------------------------------------------
def _round_up(x, m):
    return ((x + m - 1) // m) * m


def _col_tiles(m, cap=1024):
    """Pad the lane axis to a multiple of 128; pick a tile that divides the
    padded width, is <= cap, and leaves >= 2 tiles whenever possible so v7x
    can shard the parallel grid across both TensorCores."""
    mp = _round_up(m, 128)
    if mp <= 128:
        return mp, mp
    best = 128
    t = 128
    limit = min(cap, mp // 2)
    while t <= limit:
        if mp % t == 0:
            best = t
        t += 128
    return mp, best


def _params():
    return pltpu.CompilerParams(
        dimension_semantics=("parallel",),
        vmem_limit_bytes=64 * 1024 * 1024,
    )


# ----------------------------------------------------------------------------
# Pallas kernels
# ----------------------------------------------------------------------------
def _linear_kernel(w_ref, x_ref, b_ref, o_ref):
    o_ref[...] = (jnp.dot(w_ref[...], x_ref[...],
                          preferred_element_type=jnp.float32) + b_ref[...])


def _linear_add_kernel(w_ref, x_ref, b_ref, r_ref, o_ref):
    # (rc, K) @ (K, M) + bias + residual, all fused; bf16 operands, f32 accum.
    o_ref[...] = (jnp.dot(w_ref[...], x_ref[...],
                          preferred_element_type=jnp.float32)
                  + b_ref[...] + r_ref[...])


def _inception_gate_kernel(x_ref, w_ref, b_ref, o_ref, *, cc):
    # Filter+gate weights stacked into one (2cc, K) matrix -> single MXU pass.
    y = jnp.dot(w_ref[...], x_ref[...],
                preferred_element_type=jnp.float32) + b_ref[...]
    o_ref[...] = (jnp.tanh(y[:cc]) * jax.nn.sigmoid(y[cc:])).astype(o_ref.dtype)


def _mixprop_hops_kernel(x_ref, af_ref, ab_ref, o_ref, *, gdep, alpha, conv_ch):
    # Streams every propagation hop (both adjacency directions) straight to the
    # output block as it is produced; node contraction = one batched einsum.
    n = af_ref.shape[0]
    x = x_ref[...].astype(jnp.float32)                 # (cc, N, tq), f32 math
    k = 0
    for a_ref in (af_ref, ab_ref):                     # norm(A+I), norm(A^T+I)
        a_b = jnp.broadcast_to(a_ref[...].astype(jnp.bfloat16)[None],
                               (conv_ch, n, n))        # hoisted out of hop loop
        h = x
        o_ref[k] = h.astype(o_ref.dtype)
        k += 1
        for _ in range(gdep):
            prop = jnp.einsum("cvw,cwl->cvl", a_b, h.astype(jnp.bfloat16),
                              preferred_element_type=jnp.float32)
            h = alpha * x + (1.0 - alpha) * prop
            o_ref[k] = h.astype(o_ref.dtype)
            k += 1


def _layernorm_kernel(x_ref, g_ref, b_ref, o_ref, *, eps=1e-5):
    # Per-sample LayerNorm over (C, N, T); one batch sample per grid step.
    x = x_ref[...]                                     # (1, C, N, T) f32
    mu = jnp.mean(x)
    var = jnp.mean((x - mu) ** 2)
    o_ref[...] = ((x - mu) * lax.rsqrt(var + eps)
                  * g_ref[...][None] + b_ref[...][None])


# ----------------------------------------------------------------------------
# Pallas wrappers (tiled over the lane-dense M axis, weights resident)
# ----------------------------------------------------------------------------
def pallas_linear(w, x, b, *, tile=1024):
    """(C_out, K) @ (K, M) + b -> (C_out, M); bf16 operands, f32 output."""
    cout, k = w.shape
    m = x.shape[1]
    mp, tm = _col_tiles(m, tile)
    xp = x if mp == m else jnp.pad(x, ((0, 0), (0, mp - m)))
    out = pl.pallas_call(
        _linear_kernel,
        out_shape=jax.ShapeDtypeStruct((cout, mp), jnp.float32),
        grid=(mp // tm,),
        in_specs=[
            pl.BlockSpec((cout, k), lambda i: (0, 0)),
            pl.BlockSpec((k, tm), lambda i: (0, i)),
            pl.BlockSpec((cout, 1), lambda i: (0, 0)),
        ],
        out_specs=pl.BlockSpec((cout, tm), lambda i: (0, i)),
        compiler_params=_params(),
    )(w.astype(jnp.bfloat16), xp.astype(jnp.bfloat16),
      b.reshape(cout, 1).astype(jnp.float32))
    return out[:, :m]


def pallas_linear_add(w, x, b, res, *, tile=1024):
    """(C_out, K) @ (K, M) + b + res -> (C_out, M); residual add fused."""
    cout, k = w.shape
    m = x.shape[1]
    mp, tm = _col_tiles(m, tile)
    xp = x if mp == m else jnp.pad(x, ((0, 0), (0, mp - m)))
    rp = res if mp == m else jnp.pad(res, ((0, 0), (0, mp - m)))
    out = pl.pallas_call(
        _linear_add_kernel,
        out_shape=jax.ShapeDtypeStruct((cout, mp), jnp.float32),
        grid=(mp // tm,),
        in_specs=[
            pl.BlockSpec((cout, k), lambda i: (0, 0)),
            pl.BlockSpec((k, tm), lambda i: (0, i)),
            pl.BlockSpec((cout, 1), lambda i: (0, 0)),
            pl.BlockSpec((cout, tm), lambda i: (0, i)),
        ],
        out_specs=pl.BlockSpec((cout, tm), lambda i: (0, i)),
        compiler_params=_params(),
    )(w.astype(jnp.bfloat16), xp.astype(jnp.bfloat16),
      b.reshape(cout, 1).astype(jnp.float32), rp.astype(jnp.float32))
    return out[:, :m]


def pallas_inception_gate(x_col, wfg, bfg, cc, *, tile=1024):
    """tanh/sigmoid gated dilated-inception: one stacked (2cc, K) matmul."""
    kc, m = x_col.shape
    mp, tm = _col_tiles(m, tile)
    xp = x_col if mp == m else jnp.pad(x_col, ((0, 0), (0, mp - m)))
    out = pl.pallas_call(
        functools.partial(_inception_gate_kernel, cc=cc),
        out_shape=jax.ShapeDtypeStruct((cc, mp), jnp.bfloat16),
        grid=(mp // tm,),
        in_specs=[
            pl.BlockSpec((kc, tm), lambda i: (0, i)),
            pl.BlockSpec((2 * cc, kc), lambda i: (0, 0)),
            pl.BlockSpec((2 * cc, 1), lambda i: (0, 0)),
        ],
        out_specs=pl.BlockSpec((cc, tm), lambda i: (0, i)),
        compiler_params=_params(),
    )(xp.astype(jnp.bfloat16), wfg.astype(jnp.bfloat16),
      bfg.reshape(2 * cc, 1).astype(jnp.float32))
    return out[:, :m]


def pallas_mixprop_hops(x, a_fwd, a_bwd, *, gdep, alpha, tile=256):
    """x: (cc, N, Q) -> hops (2*(gdep+1), cc, N, Qp) bf16, streamed per hop."""
    cc, n, q = x.shape
    n_hops = 2 * (gdep + 1)
    qp, tq = _col_tiles(q, tile)
    xp = x if qp == q else jnp.pad(x, ((0, 0), (0, 0), (0, qp - q)))
    out = pl.pallas_call(
        functools.partial(_mixprop_hops_kernel, gdep=gdep, alpha=float(alpha),
                          conv_ch=cc),
        out_shape=jax.ShapeDtypeStruct((n_hops, cc, n, qp), jnp.bfloat16),
        grid=(qp // tq,),
        in_specs=[
            pl.BlockSpec((cc, n, tq), lambda i: (0, 0, i)),
            pl.BlockSpec((n, n), lambda i: (0, 0)),
            pl.BlockSpec((n, n), lambda i: (0, 0)),
        ],
        out_specs=pl.BlockSpec((n_hops, cc, n, tq), lambda i: (0, 0, 0, i)),
        compiler_params=_params(),
    )(xp.astype(jnp.bfloat16), a_fwd.astype(jnp.float32),
      a_bwd.astype(jnp.float32))
    return out, qp


def pallas_layernorm(x, gamma, beta):
    """Per-sample LayerNorm over (C, N, T); x: (B, C, N, T), gridded over B."""
    b, c, n, t = x.shape
    return pl.pallas_call(
        _layernorm_kernel,
        out_shape=jax.ShapeDtypeStruct((b, c, n, t), jnp.float32),
        grid=(b,),
        in_specs=[
            pl.BlockSpec((1, c, n, t), lambda i: (i, 0, 0, 0)),
            pl.BlockSpec((c, n, t), lambda i: (0, 0, 0)),
            pl.BlockSpec((c, n, t), lambda i: (0, 0, 0)),
        ],
        out_specs=pl.BlockSpec((1, c, n, t), lambda i: (i, 0, 0, 0)),
        compiler_params=_params(),
    )(x.astype(jnp.float32), gamma.astype(jnp.float32), beta.astype(jnp.float32))


# ----------------------------------------------------------------------------
# XLA-side glue (layout prep; all slice bounds are static Python ints)
# ----------------------------------------------------------------------------
def _build_time_col(x, kmax, dilation):
    """x: (C, N, B, T) -> im2col (kmax*C, N*B*t_out) in bf16 (matmul operand)."""
    c, n, b, t = x.shape
    t_out = t - dilation * (kmax - 1)
    taps = [x[:, :, :, m * dilation: m * dilation + t_out] for m in range(kmax)]
    col = jnp.stack(taps, axis=0).reshape(kmax * c, n * b * t_out)
    return col.astype(jnp.bfloat16), t_out


def _build_inception_weight(branches, kernel_set, c_in):
    """Zero-pad each branch's taps to kmax and stack -> (cc, kmax*c_in), (cc,)."""
    kmax = kernel_set[-1]
    blocks, biases = [], []
    for (w, b), k in zip(branches, kernel_set):
        c_per = w.shape[0]
        wk = jnp.transpose(w[:, :, 0, :], (0, 2, 1))          # (c_per, k, c_in)
        wk = jnp.pad(wk, ((0, 0), (kmax - k, 0), (0, 0)))     # leading zero taps
        blocks.append(wk.reshape(c_per, kmax * c_in))
        biases.append(b)
    return jnp.concatenate(blocks, axis=0), jnp.concatenate(biases, axis=0)


def _time_collapse(x):
    """(C, N, B, T) -> (C*T, N*B); rows ordered (c, t) to match conv weights."""
    c, n, b, t = x.shape
    return jnp.transpose(x, (0, 3, 1, 2)).reshape(c * t, n * b)


def _normalize_adj(a):
    n = a.shape[0]
    a_hat = a + jnp.eye(n, dtype=a.dtype)
    d = a_hat.sum(axis=1)
    return a_hat / d[:, None]


def graph_constructor(gp, num_nodes, k, alpha):
    # Tiny (N x N), runs once per forward: plain XLA.
    n1 = jnp.tanh(alpha * (gp["emb1"] @ gp["lin1_w"].T + gp["lin1_b"]))
    n2 = jnp.tanh(alpha * (gp["emb2"] @ gp["lin2_w"].T + gp["lin2_b"]))
    a = n1 @ n2.T - n2 @ n1.T
    adj = jax.nn.relu(jnp.tanh(alpha * a))
    _, idxs = lax.top_k(adj, k)
    mask = jax.nn.one_hot(idxs, num_nodes, dtype=adj.dtype).sum(axis=1)
    return adj * mask


# ----------------------------------------------------------------------------
# MTGNN layer + full forward (eval mode)
# ----------------------------------------------------------------------------
def mtgnn_layer(X, X_skip, A_fwd, A_bwd, lp, ls, cfg):
    # X: (rc, N, B, T_in) channels-major f32; X_skip: (sc, N*B) f32
    c_in, n, b, t_in = X.shape
    klast = cfg["kernel_set"][-1]
    d = ls["dilation"]

    # --- fused dilated inception: stacked filter+gate matmul + gating --------
    x_col, t_out = _build_time_col(X, klast, d)
    wf, bf_ = _build_inception_weight(lp["filter"], cfg["kernel_set"], c_in)
    wg, bg_ = _build_inception_weight(lp["gate"], cfg["kernel_set"], c_in)
    cc = wf.shape[0]
    gated = pallas_inception_gate(x_col,
                                  jnp.concatenate([wf, wg], axis=0),
                                  jnp.concatenate([bf_, bg_], axis=0), cc)
    gated4 = gated.reshape(cc, n, b, t_out)              # bf16

    # --- skip branch: M = N*B columns is tiny -> plain XLA (eval: no dropout) -
    sc = lp["skip_w"].shape[0]
    X_skip = (jnp.dot(lp["skip_w"].reshape(sc, cc * t_out),
                      _time_collapse(gated4).astype(jnp.float32))
              + lp["skip_b"][:, None]) + X_skip

    q = b * t_out
    res = X[:, :, :, t_in - t_out:].reshape(c_in, n, q)   # residual, f32

    # --- graph convolution (both directions) or 1x1 residual conv ------------
    if cfg["gcn_true"]:
        rc = lp["mp1_w"].shape[0]
        gd = cfg["gcn_depth"]
        hops, qp = pallas_mixprop_hops(gated4.reshape(cc, n, q), A_fwd, A_bwd,
                                       gdep=gd, alpha=cfg["propalpha"])
        hops2d = hops.reshape(2 * (gd + 1) * cc, n * qp)  # free row-major view
        w_merged = jnp.concatenate(
            [lp["mp1_w"].reshape(rc, (gd + 1) * cc),
             lp["mp2_w"].reshape(rc, (gd + 1) * cc)], axis=1)
        res_p = res if qp == q else jnp.pad(res, ((0, 0), (0, 0), (0, qp - q)))
        Xc = pallas_linear_add(w_merged, hops2d, lp["mp1_b"] + lp["mp2_b"],
                               res_p.reshape(c_in, n * qp))
        Xc = Xc.reshape(rc, n, qp)[:, :, :q]
    else:
        rc = lp["res_w"].shape[0]
        Xc = pallas_linear_add(lp["res_w"].reshape(rc, cc), gated,
                               lp["res_b"], res.reshape(c_in, n * q))
        Xc = Xc.reshape(rc, n, q)

    # --- per-sample LayerNorm, gridded over batch (residual already added) ---
    Xb = jnp.transpose(Xc.reshape(rc, n, b, t_out), (2, 0, 1, 3))
    Xn = pallas_layernorm(Xb, lp["ln_w"], lp["ln_b"])
    return jnp.transpose(Xn, (1, 2, 0, 3)), X_skip


def mtgnn_forward(params, X_in, cfg):
    B, in_dim, N, T = X_in.shape
    assert T == cfg["seq_length"]
    rf = cfg["receptive_field"]

    # channels-major layout (C, N, B, T); pad time on the left if needed.
    X0 = jnp.transpose(X_in, (1, 2, 0, 3)).astype(jnp.float32)
    if T < rf:
        X0 = jnp.pad(X0, ((0, 0), (0, 0), (0, 0), (rf - T, 0)))
    T0 = max(T, rf)

    A_fwd = A_bwd = None
    if cfg["gcn_true"]:
        assert cfg["build_adj"], "predefined-adjacency path not wired in demo"
        A = graph_constructor(params["graph"], cfg["num_nodes"],
                              cfg["subgraph_size"], cfg["tanhalpha"])
        A_fwd = _normalize_adj(A)
        A_bwd = _normalize_adj(A.T)

    # start conv: lane-dense (rc, in_dim) @ (in_dim, N*B*T0) in Pallas.
    rc = params["start_w"].shape[0]
    X = pallas_linear(params["start_w"].reshape(rc, in_dim),
                      X0.reshape(in_dim, N * B * T0),
                      params["start_b"]).reshape(rc, N, B, T0)

    # skip0 / skipE / head: M = N*B columns -> plain XLA (too small for Pallas).
    sc = params["skip0_w"].shape[0]
    X_skip = (jnp.dot(params["skip0_w"].reshape(sc, in_dim * T0),
                      _time_collapse(X0)) + params["skip0_b"][:, None])

    for lp, ls in zip(params["layers"], cfg["layer_static"]):
        X, X_skip = mtgnn_layer(X, X_skip, A_fwd, A_bwd, lp, ls, cfg)

    t_last = X.shape[-1]
    X_skip = (jnp.dot(params["skipE_w"].reshape(sc, rc * t_last),
                      _time_collapse(X)) + params["skipE_b"][:, None]) + X_skip

    ec = params["end1_w"].shape[0]
    od = params["end2_w"].shape[0]
    H = jax.nn.relu(X_skip)
    H = jax.nn.relu(jnp.dot(params["end1_w"].reshape(ec, sc), H)
                    + params["end1_b"][:, None])
    Y = jnp.dot(params["end2_w"].reshape(od, ec), H) + params["end2_b"][:, None]
    return jnp.transpose(Y.reshape(od, N, B), (2, 0, 1))[..., None]  # (B,od,N,1)


# ----------------------------------------------------------------------------
# Static layer metadata + deterministic parameter construction
# ----------------------------------------------------------------------------
def _layer_static(cfg):
    ksz, de = cfg["kernel_size"], cfg["dilation_exponential"]
    seq, rf, layers = cfg["seq_length"], cfg["receptive_field"], cfg["layers"]
    out, dil = [], 1
    for j in range(1, layers + 1):
        if de > 1:
            rf_j = int(1 + (ksz - 1) * (de ** j - 1) / (de - 1))
        else:
            rf_j = 1 + j * (ksz - 1)
        out.append({"dilation": dil, "t_len": (seq if seq > rf else rf) - rf_j + 1})
        dil *= de
    return out


def init_params(key, cfg):
    keys = iter(jax.random.split(key, 512))

    def W(shape, scale=0.2):
        return (scale * jax.random.normal(next(keys), shape)).astype(jnp.float32)

    nd, N = cfg["node_dim"], cfg["num_nodes"]
    rc, cc, sc, ec = (cfg["residual_channels"], cfg["conv_channels"],
                      cfg["skip_channels"], cfg["end_channels"])
    in_dim, out_dim = cfg["in_dim"], cfg["out_dim"]
    seq, rf = cfg["seq_length"], cfg["receptive_field"]
    ks = cfg["kernel_set"]
    T0 = seq if seq > rf else rf
    t_last = (seq - rf + 1) if seq > rf else 1

    params = {
        "graph": {"emb1": W((N, nd)), "emb2": W((N, nd)),
                  "lin1_w": W((nd, nd)), "lin1_b": W((nd,)),
                  "lin2_w": W((nd, nd)), "lin2_b": W((nd,))},
        "start_w": W((rc, in_dim, 1, 1)), "start_b": W((rc,)),
        "skip0_w": W((sc, in_dim, 1, T0)), "skip0_b": W((sc,)),
        "skipE_w": W((sc, rc, 1, t_last)), "skipE_b": W((sc,)),
        "end1_w": W((ec, sc, 1, 1)), "end1_b": W((ec,)),
        "end2_w": W((out_dim, ec, 1, 1)), "end2_b": W((out_dim,)),
        "layers": [],
    }
    c_per = cc // len(ks)
    for ls in cfg["layer_static"]:
        t_len = ls["t_len"]
        params["layers"].append({
            "filter": [(W((c_per, rc, 1, k)), W((c_per,))) for k in ks],
            "gate": [(W((c_per, rc, 1, k)), W((c_per,))) for k in ks],
            "skip_w": W((sc, cc, 1, t_len)), "skip_b": W((sc,)),
            "mp1_w": W((rc, (cfg["gcn_depth"] + 1) * cc, 1, 1)), "mp1_b": W((rc,)),
            "mp2_w": W((rc, (cfg["gcn_depth"] + 1) * cc, 1, 1)), "mp2_b": W((rc,)),
            "res_w": W((rc, cc, 1, 1)), "res_b": W((rc,)),
            "ln_w": 1.0 + W((rc, N, t_len), scale=0.05),
            "ln_b": W((rc, N, t_len), scale=0.05),
        })
    return params


# ----------------------------------------------------------------------------
if __name__ == "__main__":
    kernel_size = 7
    dilation_exponential = 1
    layers = 2
    receptive_field = layers * (kernel_size - 1) + 1  # 13

    cfg = dict(
        gcn_true=True,
        build_adj=True,
        gcn_depth=2,
        num_nodes=8,
        kernel_set=[2, 3, 6, 7],
        kernel_size=kernel_size,
        dropout=0.3,               # eval mode -> no-op
        subgraph_size=4,
        node_dim=8,
        dilation_exponential=dilation_exponential,
        conv_channels=8,
        residual_channels=8,
        skip_channels=16,
        end_channels=16,
        seq_length=16,
        in_dim=2,
        out_dim=12,
        layers=layers,
        propalpha=0.05,
        tanhalpha=3.0,
        receptive_field=receptive_field,
    )
    cfg["layer_static"] = _layer_static(cfg)

    key = jax.random.PRNGKey(0)
    pkey, xkey = jax.random.split(key)
    params = init_params(pkey, cfg)

    B = 2
    X_in = jax.random.normal(
        xkey, (B, cfg["in_dim"], cfg["num_nodes"], cfg["seq_length"]), jnp.float32
    )

    fwd = jax.jit(functools.partial(mtgnn_forward, cfg=cfg))
    out = jax.block_until_ready(fwd(params, X_in))

    assert out.shape == (B, cfg["out_dim"], cfg["num_nodes"], 1), out.shape
    assert bool(jnp.all(jnp.isfinite(out)))
    print("KERNEL_OK")
</pallas_src>

<mosaic_0001>
module attributes {stable_mosaic.version = 11 : i64} {
  func.func @_linear_kernel(%arg0: i32, %arg1: memref<8x2xbf16, #tpu.memory_space<vmem>>, %arg2: memref<2x128xbf16, #tpu.memory_space<vmem>>, %arg3: memref<8x1xf32, #tpu.memory_space<vmem>>, %arg4: memref<8x128xf32, #tpu.memory_space<vmem>>) attributes {dimension_semantics = [#tpu.dimension_semantics<parallel>], iteration_bounds = array<i64: 2>, scalar_prefetch = 0 : i64, scratch_operands = 0 : i64, tpu.core_type = #tpu.core_type<tc>, window_params = [{pipeline_mode = #tpu.pipeline_mode<synchronous>, transform_indices = @transform_0, window_bounds = array<i64: 8, 2>}, {transform_indices = @transform_1, window_bounds = array<i64: 2, 128>}, {pipeline_mode = #tpu.pipeline_mode<synchronous>, transform_indices = @transform_2, window_bounds = array<i64: 8, 1>}, {transform_indices = @transform_3, window_bounds = array<i64: 8, 128>}]} {
    %c0 = arith.constant 0 : index
    %c0_0 = arith.constant 0 : index
    %0 = vector.load %arg1[%c0, %c0_0] : memref<8x2xbf16, #tpu.memory_space<vmem>>, vector<8x2xbf16>
    %c0_1 = arith.constant 0 : index
    %c0_2 = arith.constant 0 : index
    %1 = vector.load %arg2[%c0_1, %c0_2] : memref<2x128xbf16, #tpu.memory_space<vmem>>, vector<2x128xbf16>
    %cst = arith.constant dense<0.000000e+00> : vector<8x128xf32>
    %2 = tpu.matmul %0, %1, %cst {dimension_numbers = #tpu.dot_dimension_numbers<[1], [0], [0], [1], [0, 0, 1, 1], [], []>} : vector<8x2xbf16>, vector<2x128xbf16>, vector<8x128xf32> -> vector<8x128xf32>
    %c0_3 = arith.constant 0 : index
    %c0_4 = arith.constant 0 : index
    %3 = vector.load %arg3[%c0_3, %c0_4] : memref<8x1xf32, #tpu.memory_space<vmem>>, vector<8x1xf32>
    %4 = vector.broadcast %3 : vector<8x1xf32> to vector<8x128xf32>
    %5 = arith.addf %2, %4 : vector<8x128xf32>
    %c0_5 = arith.constant 0 : index
    %c0_6 = arith.constant 0 : index
    %6 = vector.load %arg4[%c0_5, %c0_6] : memref<8x128xf32, #tpu.memory_space<vmem>>, vector<8x128xf32>
    tpu.vector_store %arg4[%c0_5, %c0_6], %5 {strides = array<i32>} : memref<8x128xf32, #tpu.memory_space<vmem>>, vector<8x128xf32>,
    return
  }
  func.func @transform_0(%arg0: i32) -> (i32, i32) {
    %c0_i32 = arith.constant 0 : i32
    %c0_i32_0 = arith.constant 0 : i32
    %c0_i32_1 = arith.constant 0 : i32
    return %c0_i32, %c0_i32_0 : i32, i32
  }
  func.func @transform_1(%arg0: i32) -> (i32, i32) {
    %c0_i32 = arith.constant 0 : i32
    %c0_i32_0 = arith.constant 0 : i32
    return %c0_i32, %arg0 : i32, i32
  }
  func.func @transform_2(%arg0: i32) -> (i32, i32) {
    %c0_i32 = arith.constant 0 : i32
    %c0_i32_0 = arith.constant 0 : i32
    %c0_i32_1 = arith.constant 0 : i32
    return %c0_i32, %c0_i32_0 : i32, i32
  }
  func.func @transform_3(%arg0: i32) -> (i32, i32) {
    %c0_i32 = arith.constant 0 : i32
    %c0_i32_0 = arith.constant 0 : i32
    return %c0_i32, %arg0 : i32, i32
  }
}

module attributes {stable_mosaic.version = 11 : i64} {
  func.func @_mixprop_hops_kernel(%arg0: i32, %arg1: memref<8x8x128xbf16, #tpu.memory_space<vmem>>, %arg2: memref<8x8xf32, #tpu.memory_space<vmem>>, %arg3: memref<8x8xf32, #tpu.memory_space<vmem>>, %arg4: memref<6x8x8x128xbf16, #tpu.memory_space<vmem>>) attributes {dimension_semantics = [#tpu.dimension_semantics<parallel>], iteration_bounds = array<i64: 1>, scalar_prefetch = 0 : i64, scratch_operands = 0 : i64, tpu.core_type = #tpu.core_type<tc>, window_params = [{transform_indices = @transform_0, window_bounds = array<i64: 8, 8, 128>}, {pipeline_mode = #tpu.pipeline_mode<synchronous>, transform_indices = @transform_1, window_bounds = array<i64: 8, 8>}, {pipeline_mode = #tpu.pipeline_mode<synchronous>, transform_indices = @transform_2, window_bounds = array<i64: 8, 8>}, {transform_indices = @transform_3, window_bounds = array<i64: 6, 8, 8, 128>}]} {
    %c0 = arith.constant 0 : index
    %c0_0 = arith.constant 0 : index
    %c0_1 = arith.constant 0 : index
    %0 = vector.load %arg1[%c0, %c0_0, %c0_1] : memref<8x8x128xbf16, #tpu.memory_space<vmem>>, vector<8x8x128xbf16>
    %1 = arith.extf %0 : vector<8x8x128xbf16> to vector<8x8x128xf32>
    %c0_2 = arith.constant 0 : index
    %c0_3 = arith.constant 0 : index
    %2 = vector.load %arg2[%c0_2, %c0_3] : memref<8x8xf32, #tpu.memory_space<vmem>>, vector<8x8xf32>
    %3 = arith.truncf %2 : vector<8x8xf32> to vector<8x8xbf16>
    %4 = vector.shape_cast %3 : vector<8x8xbf16> to vector<1x8x8xbf16>
    %5 = vector.shape_cast %4 : vector<1x8x8xbf16> to vector<1x8x8xbf16>
    %6 = vector.broadcast %5 : vector<1x8x8xbf16> to vector<8x8x8xbf16>
    %7 = arith.truncf %1 : vector<8x8x128xf32> to vector<8x8x128xbf16>
    %c0_4 = arith.constant 0 : index
    %c0_5 = arith.constant 0 : index
    %c0_6 = arith.constant 0 : index
    %c0_7 = arith.constant 0 : index
    %8 = vector.load %arg4[%c0_4, %c0_5, %c0_6, %c0_7] : memref<6x8x8x128xbf16, #tpu.memory_space<vmem>>, vector<1x8x8x128xbf16>
    %9 = vector.shape_cast %8 : vector<1x8x8x128xbf16> to vector<8x8x128xbf16>
    %10 = vector.shape_cast %7 : vector<8x8x128xbf16> to vector<1x8x8x128xbf16>
    tpu.vector_store %arg4[%c0_4, %c0_5, %c0_6, %c0_7], %10 {strides = array<i32>} : memref<6x8x8x128xbf16, #tpu.memory_space<vmem>>, vector<1x8x8x128xbf16>,
    %11 = arith.truncf %1 : vector<8x8x128xf32> to vector<8x8x128xbf16>
    "tpu.trace_start"() <{level = 10 : i32, message = "cvw,cwl->cvl"}> : () -> ()
    %cst = arith.constant dense<0.000000e+00> : vector<8x8x128xf32>
    %12 = tpu.matmul %6, %11, %cst {dimension_numbers = #tpu.dot_dimension_numbers<[2], [1], [1], [2], [0, 0, 0, 1, 1, 2], [0], [0]>} : vector<8x8x8xbf16>, vector<8x8x128xbf16>, vector<8x8x128xf32> -> vector<8x8x128xf32>
    "tpu.trace_stop"() : () -> ()
    %cst_8 = arith.constant 5.000000e-02 : f32
    %13 = vector.broadcast %cst_8 : f32 to vector<8x8x128xf32>
    %14 = arith.mulf %13, %1 : vector<8x8x128xf32>
    %cst_9 = arith.constant 0.949999988 : f32
    %15 = vector.broadcast %cst_9 : f32 to vector<8x8x128xf32>
    %16 = arith.mulf %15, %12 : vector<8x8x128xf32>
    %17 = arith.addf %14, %16 : vector<8x8x128xf32>
    %18 = arith.truncf %17 : vector<8x8x128xf32> to vector<8x8x128xbf16>
    %c1 = arith.constant 1 : index
    %c0_10 = arith.constant 0 : index
    %c0_11 = arith.constant 0 : index
    %c0_12 = arith.constant 0 : index
    %19 = vector.load %arg4[%c1, %c0_10, %c0_11, %c0_12] : memref<6x8x8x128xbf16, #tpu.memory_space<vmem>>, vector<1x8x8x128xbf16>
    %20 = vector.shape_cast %19 : vector<1x8x8x128xbf16> to vector<8x8x128xbf16>
    %21 = vector.shape_cast %18 : vector<8x8x128xbf16> to vector<1x8x8x128xbf16>
    tpu.vector_store %arg4[%c1, %c0_10, %c0_11, %c0_12], %21 {strides = array<i32>} : memref<6x8x8x128xbf16, #tpu.memory_space<vmem>>, vector<1x8x8x128xbf16>,
    %22 = arith.truncf %17 : vector<8x8x128xf32> to vector<8x8x128xbf16>
    "tpu.trace_start"() <{level = 10 : i32, message = "cvw,cwl->cvl"}> : () -> ()
    %cst_13 = arith.constant dense<0.000000e+00> : vector<8x8x128xf32>
    %23 = tpu.matmul %6, %22, %cst_13 {dimension_numbers = #tpu.dot_dimension_numbers<[2], [1], [1], [2], [0, 0, 0, 1, 1, 2], [0], [0]>} : vector<8x8x8xbf16>, vector<8x8x128xbf16>, vector<8x8x128xf32> -> vector<8x8x128xf32>
    "tpu.trace_stop"() : () -> ()
    %cst_14 = arith.constant 5.000000e-02 : f32
    %24 = vector.broadcast %cst_14 : f32 to vector<8x8x128xf32>
    %25 = arith.mulf %24, %1 : vector<8x8x128xf32>
    %cst_15 = arith.constant 0.949999988 : f32
    %26 = vector.broadcast %cst_15 : f32 to vector<8x8x128xf32>
    %27 = arith.mulf %26, %23 : vector<8x8x128xf32>
    %28 = arith.addf %25, %27 : vector<8x8x128xf32>
    %29 = arith.truncf %28 : vector<8x8x128xf32> to vector<8x8x128xbf16>
    %c2 = arith.constant 2 : index
    %c0_16 = arith.constant 0 : index
    %c0_17 = arith.constant 0 : index
    %c0_18 = arith.constant 0 : index
    %30 = vector.load %arg4[%c2, %c0_16, %c0_17, %c0_18] : memref<6x8x8x128xbf16, #tpu.memory_space<vmem>>, vector<1x8x8x128xbf16>
    %31 = vector.shape_cast %30 : vector<1x8x8x128xbf16> to vector<8x8x128xbf16>
    %32 = vector.shape_cast %29 : vector<8x8x128xbf16> to vector<1x8x8x128xbf16>
    tpu.vector_store %arg4[%c2, %c0_16, %c0_17, %c0_18], %32 {strides = array<i32>} : memref<6x8x8x128xbf16, #tpu.memory_space<vmem>>, vector<1x8x8x128xbf16>,
    %c0_19 = arith.constant 0 : index
    %c0_20 = arith.constant 0 : index
    %33 = vector.load %arg3[%c0_19, %c0_20] : memref<8x8xf32, #tpu.memory_space<vmem>>, vector<8x8xf32>
    %34 = arith.truncf %33 : vector<8x8xf32> to vector<8x8xbf16>
    %35 = vector.shape_cast %34 : vector<8x8xbf16> to vector<1x8x8xbf16>
    %36 = vector.shape_cast %35 : vector<1x8x8xbf16> to vector<1x8x8xbf16>
    %37 = vector.broadcast %36 : vector<1x8x8xbf16> to vector<8x8x8xbf16>
    %38 = arith.truncf %1 : vector<8x8x128xf32> to vector<8x8x128xbf16>
    %c3 = arith.constant 3 : index
    %c0_21 = arith.constant 0 : index
    %c0_22 = arith.constant 0 : index
    %c0_23 = arith.constant 0 : index
    %39 = vector.load %arg4[%c3, %c0_21, %c0_22, %c0_23] : memref<6x8x8x128xbf16, #tpu.memory_space<vmem>>, vector<1x8x8x128xbf16>
    %40 = vector.shape_cast %39 : vector<1x8x8x128xbf16> to vector<8x8x128xbf16>
    %41 = vector.shape_cast %38 : vector<8x8x128xbf16> to vector<1x8x8x128xbf16>
    tpu.vector_store %arg4[%c3, %c0_21, %c0_22, %c0_23], %41 {strides = array<i32>} : memref<6x8x8x128xbf16, #tpu.memory_space<vmem>>, vector<1x8x8x128xbf16>,
    %42 = arith.truncf %1 : vector<8x8x128xf32> to vector<8x8x128xbf16>
    "tpu.trace_start"() <{level = 10 : i32, message = "cvw,cwl->cvl"}> : () -> ()
    %cst_24 = arith.constant dense<0.000000e+00> : vector<8x8x128xf32>
    %43 = tpu.matmul %37, %42, %cst_24 {dimension_numbers = #tpu.dot_dimension_numbers<[2], [1], [1], [2], [0, 0, 0, 1, 1, 2], [0], [0]>} : vector<8x8x8xbf16>, vector<8x8x128xbf16>, vector<8x8x128xf32> -> vector<8x8x128xf32>
    "tpu.trace_stop"() : () -> ()
    %cst_25 = arith.constant 5.000000e-02 : f32
    %44 = vector.broadcast %cst_25 : f32 to vector<8x8x128xf32>
    %45 = arith.mulf %44, %1 : vector<8x8x128xf32>
    %cst_26 = arith.constant 0.949999988 : f32
    %46 = vector.broadcast %cst_26 : f32 to vector<8x8x128xf32>
    %47 = arith.mulf %46, %43 : vector<8x8x128xf32>
    %48 = arith.addf %45, %47 : vector<8x8x128xf32>
    %49 = arith.truncf %48 : vector<8x8x128xf32> to vector<8x8x128xbf16>
    %c4 = arith.constant 4 : index
    %c0_27 = arith.constant 0 : index
    %c0_28 = arith.constant 0 : index
    %c0_29 = arith.constant 0 : index
    %50 = vector.load %arg4[%c4, %c0_27, %c0_28, %c0_29] : memref<6x8x8x128xbf16, #tpu.memory_space<vmem>>, vector<1x8x8x128xbf16>
    %51 = vector.shape_cast %50 : vector<1x8x8x128xbf16> to vector<8x8x128xbf16>
    %52 = vector.shape_cast %49 : vector<8x8x128xbf16> to vector<1x8x8x128xbf16>
    tpu.vector_store %arg4[%c4, %c0_27, %c0_28, %c0_29], %52 {strides = array<i32>} : memref<6x8x8x128xbf16, #tpu.memory_space<vmem>>, vector<1x8x8x128xbf16>,
    %53 = arith.truncf %48 : vector<8x8x128xf32> to vector<8x8x128xbf16>
    "tpu.trace_start"() <{level = 10 : i32, message = "cvw,cwl->cvl"}> : () -> ()
    %cst_30 = arith.constant dense<0.000000e+00> : vector<8x8x128xf32>
    %54 = tpu.matmul %37, %53, %cst_30 {dimension_numbers = #tpu.dot_dimension_numbers<[2], [1], [1], [2], [0, 0, 0, 1, 1, 2], [0], [0]>} : vector<8x8x8xbf16>, vector<8x8x128xbf16>, vector<8x8x128xf32> -> vector<8x8x128xf32>
    "tpu.trace_stop"() : () -> ()
    %cst_31 = arith.constant 5.000000e-02 : f32
    %55 = vector.broadcast %cst_31 : f32 to vector<8x8x128xf32>
    %56 = arith.mulf %55, %1 : vector<8x8x128xf32>
    %cst_32 = arith.constant 0.949999988 : f32
    %57 = vector.broadcast %cst_32 : f32 to vector<8x8x128xf32>
    %58 = arith.mulf %57, %54 : vector<8x8x128xf32>
    %59 = arith.addf %56, %58 : vector<8x8x128xf32>
    %60 = arith.truncf %59 : vector<8x8x128xf32> to vector<8x8x128xbf16>
    %c5 = arith.constant 5 : index
    %c0_33 = arith.constant 0 : index
    %c0_34 = arith.constant 0 : index
    %c0_35 = arith.constant 0 : index
    %61 = vector.load %arg4[%c5, %c0_33, %c0_34, %c0_35] : memref<6x8x8x128xbf16, #tpu.memory_space<vmem>>, vector<1x8x8x128xbf16>
    %62 = vector.shape_cast %61 : vector<1x8x8x128xbf16> to vector<8x8x128xbf16>
    %63 = vector.shape_cast %60 : vector<8x8x128xbf16> to vector<1x8x8x128xbf16>
    tpu.vector_store %arg4[%c5, %c0_33, %c0_34, %c0_35], %63 {strides = array<i32>} : memref<6x8x8x128xbf16, #tpu.memory_space<vmem>>, vector<1x8x8x128xbf16>,
    return
  }
  func.func @transform_0(%arg0: i32) -> (i32, i32, i32) {
    %c0_i32 = arith.constant 0 : i32
    %c0_i32_0 = arith.constant 0 : i32
    %c0_i32_1 = arith.constant 0 : i32
    return %c0_i32, %c0_i32_0, %arg0 : i32, i32, i32
  }
  func.func @transform_1(%arg0: i32) -> (i32, i32) {
    %c0_i32 = arith.constant 0 : i32
    %c0_i32_0 = arith.constant 0 : i32
    %c0_i32_1 = arith.constant 0 : i32
    return %c0_i32, %c0_i32_0 : i32, i32
  }
  func.func @transform_2(%arg0: i32) -> (i32, i32) {
    %c0_i32 = arith.constant 0 : i32
    %c0_i32_0 = arith.constant 0 : i32
    %c0_i32_1 = arith.constant 0 : i32
    return %c0_i32, %c0_i32_0 : i32, i32
  }
  func.func @transform_3(%arg0: i32) -> (i32, i32, i32, i32) {
    %c0_i32 = arith.constant 0 : i32
    %c0_i32_0 = arith.constant 0 : i32
    %c0_i32_1 = arith.constant 0 : i32
    %c0_i32_2 = arith.constant 0 : i32
    return %c0_i32, %c0_i32_0, %c0_i32_1, %arg0 : i32, i32, i32, i32
  }
}

module attributes {stable_mosaic.version = 11 : i64} {
  func.func @_inception_gate_kernel(%arg0: i32, %arg1: memref<56x128xbf16, #tpu.memory_space<vmem>>, %arg2: memref<16x56xbf16, #tpu.memory_space<vmem>>, %arg3: memref<16x1xf32, #tpu.memory_space<vmem>>, %arg4: memref<8x128xbf16, #tpu.memory_space<vmem>>) attributes {dimension_semantics = [#tpu.dimension_semantics<parallel>], iteration_bounds = array<i64: 2>, scalar_prefetch = 0 : i64, scratch_operands = 0 : i64, tpu.core_type = #tpu.core_type<tc>, window_params = [{transform_indices = @transform_0, window_bounds = array<i64: 56, 128>}, {pipeline_mode = #tpu.pipeline_mode<synchronous>, transform_indices = @transform_1, window_bounds = array<i64: 16, 56>}, {pipeline_mode = #tpu.pipeline_mode<synchronous>, transform_indices = @transform_2, window_bounds = array<i64: 16, 1>}, {transform_indices = @transform_3, window_bounds = array<i64: 8, 128>}]} {
    %c0 = arith.constant 0 : index
    %c0_0 = arith.constant 0 : index
    %0 = vector.load %arg2[%c0, %c0_0] : memref<16x56xbf16, #tpu.memory_space<vmem>>, vector<16x56xbf16>
    %c0_1 = arith.constant 0 : index
    %c0_2 = arith.constant 0 : index
    %1 = vector.load %arg1[%c0_1, %c0_2] : memref<56x128xbf16, #tpu.memory_space<vmem>>, vector<56x128xbf16>
    %cst = arith.constant dense<0.000000e+00> : vector<16x128xf32>
    %2 = tpu.matmul %0, %1, %cst {dimension_numbers = #tpu.dot_dimension_numbers<[1], [0], [0], [1], [0, 0, 1, 1], [], []>} : vector<16x56xbf16>, vector<56x128xbf16>, vector<16x128xf32> -> vector<16x128xf32>
    %c0_3 = arith.constant 0 : index
    %c0_4 = arith.constant 0 : index
    %3 = vector.load %arg3[%c0_3, %c0_4] : memref<16x1xf32, #tpu.memory_space<vmem>>, vector<16x1xf32>
    %4 = vector.broadcast %3 : vector<16x1xf32> to vector<16x128xf32>
    %5 = arith.addf %2, %4 : vector<16x128xf32>
    %6 = vector.extract_strided_slice %5 {offsets = [0, 0], sizes = [8, 128], strides = [1, 1]} : vector<16x128xf32> to vector<8x128xf32>
    %7 = math.tanh %6 : vector<8x128xf32>
    %8 = vector.extract_strided_slice %5 {offsets = [8, 0], sizes = [8, 128], strides = [1, 1]} : vector<16x128xf32> to vector<8x128xf32>
    %9 = arith.negf %8 : vector<8x128xf32>
    %10 = math.exp %9 : vector<8x128xf32>
    %cst_5 = arith.constant 1.000000e+00 : f32
    %11 = vector.broadcast %cst_5 : f32 to vector<8x128xf32>
    %12 = arith.addf %11, %10 : vector<8x128xf32>
    %13 = arith.divf %11, %12 : vector<8x128xf32>
    %14 = arith.mulf %7, %13 : vector<8x128xf32>
    %15 = arith.truncf %14 : vector<8x128xf32> to vector<8x128xbf16>
    %c0_6 = arith.constant 0 : index
    %c0_7 = arith.constant 0 : index
    %16 = vector.load %arg4[%c0_6, %c0_7] : memref<8x128xbf16, #tpu.memory_space<vmem>>, vector<8x128xbf16>
    tpu.vector_store %arg4[%c0_6, %c0_7], %15 {strides = array<i32>} : memref<8x128xbf16, #tpu.memory_space<vmem>>, vector<8x128xbf16>,
    return
  }
  func.func @transform_0(%arg0: i32) -> (i32, i32) {
    %c0_i32 = arith.constant 0 : i32
    %c0_i32_0 = arith.constant 0 : i32
    return %c0_i32, %arg0 : i32, i32
  }
  func.func @transform_1(%arg0: i32) -> (i32, i32) {
    %c0_i32 = arith.constant 0 : i32
    %c0_i32_0 = arith.constant 0 : i32
    %c0_i32_1 = arith.constant 0 : i32
    return %c0_i32, %c0_i32_0 : i32, i32
  }
  func.func @transform_2(%arg0: i32) -> (i32, i32) {
    %c0_i32 = arith.constant 0 : i32
    %c0_i32_0 = arith.constant 0 : i32
    %c0_i32_1 = arith.constant 0 : i32
    return %c0_i32, %c0_i32_0 : i32, i32
  }
  func.func @transform_3(%arg0: i32) -> (i32, i32) {
    %c0_i32 = arith.constant 0 : i32
    %c0_i32_0 = arith.constant 0 : i32
    return %c0_i32, %arg0 : i32, i32
  }
}

module attributes {stable_mosaic.version = 11 : i64} {
  func.func @_linear_add_kernel(%arg0: i32, %arg1: memref<8x48xbf16, #tpu.memory_space<vmem>>, %arg2: memref<48x512xbf16, #tpu.memory_space<vmem>>, %arg3: memref<8x1xf32, #tpu.memory_space<vmem>>, %arg4: memref<8x512xf32, #tpu.memory_space<vmem>>, %arg5: memref<8x512xf32, #tpu.memory_space<vmem>>) attributes {dimension_semantics = [#tpu.dimension_semantics<parallel>], iteration_bounds = array<i64: 2>, scalar_prefetch = 0 : i64, scratch_operands = 0 : i64, tpu.core_type = #tpu.core_type<tc>, window_params = [{pipeline_mode = #tpu.pipeline_mode<synchronous>, transform_indices = @transform_0, window_bounds = array<i64: 8, 48>}, {transform_indices = @transform_1, window_bounds = array<i64: 48, 512>}, {pipeline_mode = #tpu.pipeline_mode<synchronous>, transform_indices = @transform_2, window_bounds = array<i64: 8, 1>}, {transform_indices = @transform_3, window_bounds = array<i64: 8, 512>}, {transform_indices = @transform_4, window_bounds = array<i64: 8, 512>}]} {
    %c0 = arith.constant 0 : index
    %c0_0 = arith.constant 0 : index
    %0 = vector.load %arg1[%c0, %c0_0] : memref<8x48xbf16, #tpu.memory_space<vmem>>, vector<8x48xbf16>
    %c0_1 = arith.constant 0 : index
    %c0_2 = arith.constant 0 : index
    %1 = vector.load %arg2[%c0_1, %c0_2] : memref<48x512xbf16, #tpu.memory_space<vmem>>, vector<48x512xbf16>
    %cst = arith.constant dense<0.000000e+00> : vector<8x512xf32>
    %2 = tpu.matmul %0, %1, %cst {dimension_numbers = #tpu.dot_dimension_numbers<[1], [0], [0], [1], [0, 0, 1, 1], [], []>} : vector<8x48xbf16>, vector<48x512xbf16>, vector<8x512xf32> -> vector<8x512xf32>
    %c0_3 = arith.constant 0 : index
    %c0_4 = arith.constant 0 : index
    %3 = vector.load %arg3[%c0_3, %c0_4] : memref<8x1xf32, #tpu.memory_space<vmem>>, vector<8x1xf32>
    %4 = vector.broadcast %3 : vector<8x1xf32> to vector<8x512xf32>
    %5 = arith.addf %2, %4 : vector<8x512xf32>
    %c0_5 = arith.constant 0 : index
    %c0_6 = arith.constant 0 : index
    %6 = vector.load %arg4[%c0_5, %c0_6] : memref<8x512xf32, #tpu.memory_space<vmem>>, vector<8x512xf32>
    %7 = arith.addf %5, %6 : vector<8x512xf32>
    %c0_7 = arith.constant 0 : index
    %c0_8 = arith.constant 0 : index
    %8 = vector.load %arg5[%c0_7, %c0_8] : memref<8x512xf32, #tpu.memory_space<vmem>>, vector<8x512xf32>
    tpu.vector_store %arg5[%c0_7, %c0_8], %7 {strides = array<i32>} : memref<8x512xf32, #tpu.memory_space<vmem>>, vector<8x512xf32>,
    return
  }
  func.func @transform_0(%arg0: i32) -> (i32, i32) {
    %c0_i32 = arith.constant 0 : i32
    %c0_i32_0 = arith.constant 0 : i32
    %c0_i32_1 = arith.constant 0 : i32
    return %c0_i32, %c0_i32_0 : i32, i32
  }
  func.func @transform_1(%arg0: i32) -> (i32, i32) {
    %c0_i32 = arith.constant 0 : i32
    %c0_i32_0 = arith.constant 0 : i32
    return %c0_i32, %arg0 : i32, i32
  }
  func.func @transform_2(%arg0: i32) -> (i32, i32) {
    %c0_i32 = arith.constant 0 : i32
    %c0_i32_0 = arith.constant 0 : i32
    %c0_i32_1 = arith.constant 0 : i32
    return %c0_i32, %c0_i32_0 : i32, i32
  }
  func.func @transform_3(%arg0: i32) -> (i32, i32) {
    %c0_i32 = arith.constant 0 : i32
    %c0_i32_0 = arith.constant 0 : i32
    return %c0_i32, %arg0 : i32, i32
  }
  func.func @transform_4(%arg0: i32) -> (i32, i32) {
    %c0_i32 = arith.constant 0 : i32
    %c0_i32_0 = arith.constant 0 : i32
    return %c0_i32, %arg0 : i32, i32
  }
}

module attributes {stable_mosaic.version = 11 : i64} {
  func.func @_layernorm_kernel(%arg0: i32, %arg1: memref<1x8x8x10xf32, #tpu.memory_space<vmem>>, %arg2: memref<8x8x10xf32, #tpu.memory_space<vmem>>, %arg3: memref<8x8x10xf32, #tpu.memory_space<vmem>>, %arg4: memref<1x8x8x10xf32, #tpu.memory_space<vmem>>) attributes {dimension_semantics = [#tpu.dimension_semantics<parallel>], iteration_bounds = array<i64: 2>, scalar_prefetch = 0 : i64, scratch_operands = 0 : i64, tpu.core_type = #tpu.core_type<tc>, window_params = [{transform_indices = @transform_0, window_bounds = array<i64: 1, 8, 8, 10>}, {pipeline_mode = #tpu.pipeline_mode<synchronous>, transform_indices = @transform_1, window_bounds = array<i64: 8, 8, 10>}, {pipeline_mode = #tpu.pipeline_mode<synchronous>, transform_indices = @transform_2, window_bounds = array<i64: 8, 8, 10>}, {transform_indices = @transform_3, window_bounds = array<i64: 1, 8, 8, 10>}]} {
    %c0 = arith.constant 0 : index
    %c0_0 = arith.constant 0 : index
    %c0_1 = arith.constant 0 : index
    %c0_2 = arith.constant 0 : index
    %0 = vector.load %arg1[%c0, %c0_0, %c0_1, %c0_2] : memref<1x8x8x10xf32, #tpu.memory_space<vmem>>, vector<1x8x8x10xf32>
    %1 = vector.shape_cast %0 : vector<1x8x8x10xf32> to vector<1x1x8x8x10xf32>
    %cst = arith.constant dense<0.000000e+00> : vector<1xf32>
    %2 = vector.multi_reduction <add>, %1, %cst [1, 2, 3, 4] : vector<1x1x8x8x10xf32> to vector<1xf32>
    %3 = vector.shape_cast %2 : vector<1xf32> to vector<1x1x1x1x1xf32>
    %4 = vector.extract %3[0, 0, 0, 0, 0] : f32 from vector<1x1x1x1x1xf32>
    %cst_3 = arith.constant 6.400000e+02 : f32
    %5 = arith.divf %4, %cst_3 : f32
    %6 = vector.broadcast %5 : f32 to vector<1x8x8x10xf32>
    %7 = arith.subf %0, %6 : vector<1x8x8x10xf32>
    %8 = arith.mulf %7, %7 : vector<1x8x8x10xf32>
    %9 = vector.shape_cast %8 : vector<1x8x8x10xf32> to vector<1x1x8x8x10xf32>
    %cst_4 = arith.constant dense<0.000000e+00> : vector<1xf32>
    %10 = vector.multi_reduction <add>, %9, %cst_4 [1, 2, 3, 4] : vector<1x1x8x8x10xf32> to vector<1xf32>
    %11 = vector.shape_cast %10 : vector<1xf32> to vector<1x1x1x1x1xf32>
    %12 = vector.extract %11[0, 0, 0, 0, 0] : f32 from vector<1x1x1x1x1xf32>
    %cst_5 = arith.constant 6.400000e+02 : f32
    %13 = arith.divf %12, %cst_5 : f32
    %14 = vector.broadcast %5 : f32 to vector<1x8x8x10xf32>
    %15 = arith.subf %0, %14 : vector<1x8x8x10xf32>
    %cst_6 = arith.constant 9.99999974E-6 : f32
    %16 = arith.addf %13, %cst_6 : f32
    %17 = math.rsqrt %16 : f32
    %18 = vector.broadcast %17 : f32 to vector<1x8x8x10xf32>
    %19 = arith.mulf %15, %18 : vector<1x8x8x10xf32>
    %c0_7 = arith.constant 0 : index
    %c0_8 = arith.constant 0 : index
    %c0_9 = arith.constant 0 : index
    %20 = vector.load %arg2[%c0_7, %c0_8, %c0_9] : memref<8x8x10xf32, #tpu.memory_space<vmem>>, vector<8x8x10xf32>
    %21 = vector.shape_cast %20 : vector<8x8x10xf32> to vector<1x8x8x10xf32>
    %22 = arith.mulf %19, %21 : vector<1x8x8x10xf32>
    %c0_10 = arith.constant 0 : index
    %c0_11 = arith.constant 0 : index
    %c0_12 = arith.constant 0 : index
    %23 = vector.load %arg3[%c0_10, %c0_11, %c0_12] : memref<8x8x10xf32, #tpu.memory_space<vmem>>, vector<8x8x10xf32>
    %24 = vector.shape_cast %23 : vector<8x8x10xf32> to vector<1x8x8x10xf32>
    %25 = arith.addf %22, %24 : vector<1x8x8x10xf32>
    %c0_13 = arith.constant 0 : index
    %c0_14 = arith.constant 0 : index
    %c0_15 = arith.constant 0 : index
    %c0_16 = arith.constant 0 : index
    %26 = vector.load %arg4[%c0_13, %c0_14, %c0_15, %c0_16] : memref<1x8x8x10xf32, #tpu.memory_space<vmem>>, vector<1x8x8x10xf32>
    tpu.vector_store %arg4[%c0_13, %c0_14, %c0_15, %c0_16], %25 {strides = array<i32>} : memref<1x8x8x10xf32, #tpu.memory_space<vmem>>, vector<1x8x8x10xf32>,
    return
  }
  func.func @transform_0(%arg0: i32) -> (i32, i32, i32, i32) {
    %c0_i32 = arith.constant 0 : i32
    %c0_i32_0 = arith.constant 0 : i32
    %c0_i32_1 = arith.constant 0 : i32
    %c0_i32_2 = arith.constant 0 : i32
    return %arg0, %c0_i32, %c0_i32_0, %c0_i32_1 : i32, i32, i32, i32
  }
  func.func @transform_1(%arg0: i32) -> (i32, i32, i32) {
    %c0_i32 = arith.constant 0 : i32
    %c0_i32_0 = arith.constant 0 : i32
    %c0_i32_1 = arith.constant 0 : i32
    %c0_i32_2 = arith.constant 0 : i32
    return %c0_i32, %c0_i32_0, %c0_i32_1 : i32, i32, i32
  }
  func.func @transform_2(%arg0: i32) -> (i32, i32, i32) {
    %c0_i32 = arith.constant 0 : i32
    %c0_i32_0 = arith.constant 0 : i32
    %c0_i32_1 = arith.constant 0 : i32
    %c0_i32_2 = arith.constant 0 : i32
    return %c0_i32, %c0_i32_0, %c0_i32_1 : i32, i32, i32
  }
  func.func @transform_3(%arg0: i32) -> (i32, i32, i32, i32) {
    %c0_i32 = arith.constant 0 : i32
    %c0_i32_0 = arith.constant 0 : i32
    %c0_i32_1 = arith.constant 0 : i32
    %c0_i32_2 = arith.constant 0 : i32
    return %arg0, %c0_i32, %c0_i32_0, %c0_i32_1 : i32, i32, i32, i32
  }
}

module attributes {stable_mosaic.version = 11 : i64} {
  func.func @_inception_gate_kernel(%arg0: i32, %arg1: memref<56x128xbf16, #tpu.memory_space<vmem>>, %arg2: memref<16x56xbf16, #tpu.memory_space<vmem>>, %arg3: memref<16x1xf32, #tpu.memory_space<vmem>>, %arg4: memref<8x128xbf16, #tpu.memory_space<vmem>>) attributes {dimension_semantics = [#tpu.dimension_semantics<parallel>], iteration_bounds = array<i64: 1>, scalar_prefetch = 0 : i64, scratch_operands = 0 : i64, tpu.core_type = #tpu.core_type<tc>, window_params = [{transform_indices = @transform_0, window_bounds = array<i64: 56, 128>}, {pipeline_mode = #tpu.pipeline_mode<synchronous>, transform_indices = @transform_1, window_bounds = array<i64: 16, 56>}, {pipeline_mode = #tpu.pipeline_mode<synchronous>, transform_indices = @transform_2, window_bounds = array<i64: 16, 1>}, {transform_indices = @transform_3, window_bounds = array<i64: 8, 128>}]} {
    %c0 = arith.constant 0 : index
    %c0_0 = arith.constant 0 : index
    %0 = vector.load %arg2[%c0, %c0_0] : memref<16x56xbf16, #tpu.memory_space<vmem>>, vector<16x56xbf16>
    %c0_1 = arith.constant 0 : index
    %c0_2 = arith.constant 0 : index
    %1 = vector.load %arg1[%c0_1, %c0_2] : memref<56x128xbf16, #tpu.memory_space<vmem>>, vector<56x128xbf16>
    %cst = arith.constant dense<0.000000e+00> : vector<16x128xf32>
    %2 = tpu.matmul %0, %1, %cst {dimension_numbers = #tpu.dot_dimension_numbers<[1], [0], [0], [1], [0, 0, 1, 1], [], []>} : vector<16x56xbf16>, vector<56x128xbf16>, vector<16x128xf32> -> vector<16x128xf32>
    %c0_3 = arith.constant 0 : index
    %c0_4 = arith.constant 0 : index
    %3 = vector.load %arg3[%c0_3, %c0_4] : memref<16x1xf32, #tpu.memory_space<vmem>>, vector<16x1xf32>
    %4 = vector.broadcast %3 : vector<16x1xf32> to vector<16x128xf32>
    %5 = arith.addf %2, %4 : vector<16x128xf32>
    %6 = vector.extract_strided_slice %5 {offsets = [0, 0], sizes = [8, 128], strides = [1, 1]} : vector<16x128xf32> to vector<8x128xf32>
    %7 = math.tanh %6 : vector<8x128xf32>
    %8 = vector.extract_strided_slice %5 {offsets = [8, 0], sizes = [8, 128], strides = [1, 1]} : vector<16x128xf32> to vector<8x128xf32>
    %9 = arith.negf %8 : vector<8x128xf32>
    %10 = math.exp %9 : vector<8x128xf32>
    %cst_5 = arith.constant 1.000000e+00 : f32
    %11 = vector.broadcast %cst_5 : f32 to vector<8x128xf32>
    %12 = arith.addf %11, %10 : vector<8x128xf32>
    %13 = arith.divf %11, %12 : vector<8x128xf32>
    %14 = arith.mulf %7, %13 : vector<8x128xf32>
    %15 = arith.truncf %14 : vector<8x128xf32> to vector<8x128xbf16>
    %c0_6 = arith.constant 0 : index
    %c0_7 = arith.constant 0 : index
    %16 = vector.load %arg4[%c0_6, %c0_7] : memref<8x128xbf16, #tpu.memory_space<vmem>>, vector<8x128xbf16>
    tpu.vector_store %arg4[%c0_6, %c0_7], %15 {strides = array<i32>} : memref<8x128xbf16, #tpu.memory_space<vmem>>, vector<8x128xbf16>,
    return
  }
  func.func @transform_0(%arg0: i32) -> (i32, i32) {
    %c0_i32 = arith.constant 0 : i32
    %c0_i32_0 = arith.constant 0 : i32
    return %c0_i32, %arg0 : i32, i32
  }
  func.func @transform_1(%arg0: i32) -> (i32, i32) {
    %c0_i32 = arith.constant 0 : i32
    %c0_i32_0 = arith.constant 0 : i32
    %c0_i32_1 = arith.constant 0 : i32
    return %c0_i32, %c0_i32_0 : i32, i32
  }
  func.func @transform_2(%arg0: i32) -> (i32, i32) {
    %c0_i32 = arith.constant 0 : i32
    %c0_i32_0 = arith.constant 0 : i32
    %c0_i32_1 = arith.constant 0 : i32
    return %c0_i32, %c0_i32_0 : i32, i32
  }
  func.func @transform_3(%arg0: i32) -> (i32, i32) {
    %c0_i32 = arith.constant 0 : i32
    %c0_i32_0 = arith.constant 0 : i32
    return %c0_i32, %arg0 : i32, i32
  }
}

module attributes {stable_mosaic.version = 11 : i64} {
  func.func @_layernorm_kernel(%arg0: i32, %arg1: memref<1x8x8x4xf32, #tpu.memory_space<vmem>>, %arg2: memref<8x8x4xf32, #tpu.memory_space<vmem>>, %arg3: memref<8x8x4xf32, #tpu.memory_space<vmem>>, %arg4: memref<1x8x8x4xf32, #tpu.memory_space<vmem>>) attributes {dimension_semantics = [#tpu.dimension_semantics<parallel>], iteration_bounds = array<i64: 2>, scalar_prefetch = 0 : i64, scratch_operands = 0 : i64, tpu.core_type = #tpu.core_type<tc>, window_params = [{transform_indices = @transform_0, window_bounds = array<i64: 1, 8, 8, 4>}, {pipeline_mode = #tpu.pipeline_mode<synchronous>, transform_indices = @transform_1, window_bounds = array<i64: 8, 8, 4>}, {pipeline_mode = #tpu.pipeline_mode<synchronous>, transform_indices = @transform_2, window_bounds = array<i64: 8, 8, 4>}, {transform_indices = @transform_3, window_bounds = array<i64: 1, 8, 8, 4>}]} {
    %c0 = arith.constant 0 : index
    %c0_0 = arith.constant 0 : index
    %c0_1 = arith.constant 0 : index
    %c0_2 = arith.constant 0 : index
    %0 = vector.load %arg1[%c0, %c0_0, %c0_1, %c0_2] : memref<1x8x8x4xf32, #tpu.memory_space<vmem>>, vector<1x8x8x4xf32>
    %1 = vector.shape_cast %0 : vector<1x8x8x4xf32> to vector<1x1x8x8x4xf32>
    %cst = arith.constant dense<0.000000e+00> : vector<1xf32>
    %2 = vector.multi_reduction <add>, %1, %cst [1, 2, 3, 4] : vector<1x1x8x8x4xf32> to vector<1xf32>
    %3 = vector.shape_cast %2 : vector<1xf32> to vector<1x1x1x1x1xf32>
    %4 = vector.extract %3[0, 0, 0, 0, 0] : f32 from vector<1x1x1x1x1xf32>
    %cst_3 = arith.constant 2.560000e+02 : f32
    %5 = arith.divf %4, %cst_3 : f32
    %6 = vector.broadcast %5 : f32 to vector<1x8x8x4xf32>
    %7 = arith.subf %0, %6 : vector<1x8x8x4xf32>
    %8 = arith.mulf %7, %7 : vector<1x8x8x4xf32>
    %9 = vector.shape_cast %8 : vector<1x8x8x4xf32> to vector<1x1x8x8x4xf32>
    %cst_4 = arith.constant dense<0.000000e+00> : vector<1xf32>
    %10 = vector.multi_reduction <add>, %9, %cst_4 [1, 2, 3, 4] : vector<1x1x8x8x4xf32> to vector<1xf32>
    %11 = vector.shape_cast %10 : vector<1xf32> to vector<1x1x1x1x1xf32>
    %12 = vector.extract %11[0, 0, 0, 0, 0] : f32 from vector<1x1x1x1x1xf32>
    %cst_5 = arith.constant 2.560000e+02 : f32
    %13 = arith.divf %12, %cst_5 : f32
    %14 = vector.broadcast %5 : f32 to vector<1x8x8x4xf32>
    %15 = arith.subf %0, %14 : vector<1x8x8x4xf32>
    %cst_6 = arith.constant 9.99999974E-6 : f32
    %16 = arith.addf %13, %cst_6 : f32
    %17 = math.rsqrt %16 : f32
    %18 = vector.broadcast %17 : f32 to vector<1x8x8x4xf32>
    %19 = arith.mulf %15, %18 : vector<1x8x8x4xf32>
    %c0_7 = arith.constant 0 : index
    %c0_8 = arith.constant 0 : index
    %c0_9 = arith.constant 0 : index
    %20 = vector.load %arg2[%c0_7, %c0_8, %c0_9] : memref<8x8x4xf32, #tpu.memory_space<vmem>>, vector<8x8x4xf32>
    %21 = vector.shape_cast %20 : vector<8x8x4xf32> to vector<1x8x8x4xf32>
    %22 = arith.mulf %19, %21 : vector<1x8x8x4xf32>
    %c0_10 = arith.constant 0 : index
    %c0_11 = arith.constant 0 : index
    %c0_12 = arith.constant 0 : index
    %23 = vector.load %arg3[%c0_10, %c0_11, %c0_12] : memref<8x8x4xf32, #tpu.memory_space<vmem>>, vector<8x8x4xf32>
    %24 = vector.shape_cast %23 : vector<8x8x4xf32> to vector<1x8x8x4xf32>
    %25 = arith.addf %22, %24 : vector<1x8x8x4xf32>
    %c0_13 = arith.constant 0 : index
    %c0_14 = arith.constant 0 : index
    %c0_15 = arith.constant 0 : index
    %c0_16 = arith.constant 0 : index
    %26 = vector.load %arg4[%c0_13, %c0_14, %c0_15, %c0_16] : memref<1x8x8x4xf32, #tpu.memory_space<vmem>>, vector<1x8x8x4xf32>
    tpu.vector_store %arg4[%c0_13, %c0_14, %c0_15, %c0_16], %25 {strides = array<i32>} : memref<1x8x8x4xf32, #tpu.memory_space<vmem>>, vector<1x8x8x4xf32>,
    return
  }
  func.func @transform_0(%arg0: i32) -> (i32, i32, i32, i32) {
    %c0_i32 = arith.constant 0 : i32
    %c0_i32_0 = arith.constant 0 : i32
    %c0_i32_1 = arith.constant 0 : i32
    %c0_i32_2 = arith.constant 0 : i32
    return %arg0, %c0_i32, %c0_i32_0, %c0_i32_1 : i32, i32, i32, i32
  }
  func.func @transform_1(%arg0: i32) -> (i32, i32, i32) {
    %c0_i32 = arith.constant 0 : i32
    %c0_i32_0 = arith.constant 0 : i32
    %c0_i32_1 = arith.constant 0 : i32
    %c0_i32_2 = arith.constant 0 : i32
    return %c0_i32, %c0_i32_0, %c0_i32_1 : i32, i32, i32
  }
  func.func @transform_2(%arg0: i32) -> (i32, i32, i32) {
    %c0_i32 = arith.constant 0 : i32
    %c0_i32_0 = arith.constant 0 : i32
    %c0_i32_1 = arith.constant 0 : i32
    %c0_i32_2 = arith.constant 0 : i32
    return %c0_i32, %c0_i32_0, %c0_i32_1 : i32, i32, i32
  }
  func.func @transform_3(%arg0: i32) -> (i32, i32, i32, i32) {
    %c0_i32 = arith.constant 0 : i32
    %c0_i32_0 = arith.constant 0 : i32
    %c0_i32_1 = arith.constant 0 : i32
    %c0_i32_2 = arith.constant 0 : i32
    return %arg0, %c0_i32, %c0_i32_0, %c0_i32_1 : i32, i32, i32, i32
  }
}

</mosaic_0001>

<llo_original>
// kernel: mtgnn_forward.9
$region0: #{mtgnn_forward.9}
  #allocation0 [shape = 'u32[]', space=smem, size = 0x4, offset = 0x4, fixed_abs, tag = 'smem constant byte address 0x4 - core index']
  #allocation1 [shape = 'u32[144,128]{1,0:T(1,128)}', space=vmem, size = 0x12000, scoped, tag = 'internal scratch']
  %s0 = inlined_call_operand.hbm [shape: bf16[8,2], index: 0, kind: input, shape index: {}]
  %s1 = inlined_call_operand.hbm [shape: bf16[2,256], index: 1, kind: input, shape index: {}]
  %s2 = inlined_call_operand.hbm [shape: f32[8,1], index: 2, kind: input, shape index: {}]
  %s3 = inlined_call_operand.hbm [shape: f32[8,256], index: 3, kind: output, shape index: {}]
  %s4 = sld [smem:[#allocation0]]
  $region57: #{mtgnn_forward.9} parent=0
    _
  %s6 = ssub.s32 1, %s4
  %s7 = scalar_select 0, %s6, %s4
  $region1: #{mtgnn_forward.9} parent=0
    #allocation2 [shape = 'u8[2048]{0}', space=vmem, size = 0x800, scoped, tag = 'input window, operand 0, single buffered']
    #allocation3 [shape = 's32[2]{0}', space=sflag, size = 0x8, scoped, tag = 'scoped memory for mtgnn_forward.9']
    #allocation4 [shape = 's32[2]{0}', space=sflag, size = 0x8, scoped, tag = 'scoped memory for mtgnn_forward.9']
    #allocation5 [shape = 'u8[1024]{0}', space=vmem, size = 0x400, scoped, tag = 'input window, operand 1']
    #allocation6 [shape = 's32[2]{0}', space=sflag, size = 0x8, scoped, tag = 'scoped memory for mtgnn_forward.9']
    #allocation7 [shape = 'u8[4096]{0}', space=vmem, size = 0x1000, scoped, tag = 'input window, operand 2, single buffered']
    #allocation8 [shape = 'u8[8192]{0}', space=vmem, size = 0x2000, scoped, tag = 'output window, operand 0']
    %8 = vsyncpa [#allocation3], 0
    %9 = vsyncpa [#allocation6], 0
    %s10 = scalar_lea.sflag [#allocation6], 1
    %11 = vsyncpa %s10, 0
    %12 = vsyncpa [#allocation4], 0
    %s13 = scalar_lea.sflag [#allocation4], 1
    %14 = vsyncpa %s13, 0
    loop: start=0, step=1, limit=4
    $region2: #{mtgnn_forward.9} parent=1 // loop_pre_header
      _
    $region3: #{mtgnn_forward.9} parent=1 // loop_header
      %s16 = sphi 0, %s20
      %p17 = scmp.ge.s32.totalorder %s16, 4
      %s24 = sphi 0, %s24
      %s26 = sphi 0, %s24
      %s27 = sphi 0, %s26
      %s41 = sphi 0, %s27
      %s47 = sphi 0, %s49
      %s50 = sphi 0, %s47
      %s51 = sphi 0, %s50
      %s67 = sphi 0, %s51
      %s71 = sphi 0, %s71
      %s73 = sphi 0, %s71
      %s74 = sphi 0, %s73
      %s88 = sphi 0, %s74
      %s94 = sphi 0, %s96
      %s97 = sphi 0, %s94
      %s98 = sphi 0, %s97
      %s114 = sphi 0, %s98
    $region4: #{mtgnn_forward.9} parent=1 // loop_header_branch
      %19 = sbr.rel (%p17) target = $region8
    $region5: #{mtgnn_forward.9} parent=1 // loop_body
      %s21 = ssub.s32 %s16, 1
      %s22 = ssub.s32 %s16, 2
      %s23 = sadd.s32 %s16, 1
      %s25 = sadd.s32 %s24, 1
      %p28 = scmp.eq.s32.totalorder %s16, 1
      %p29 = scmp.ne.s32.totalorder %s24, %s26
      %p30 = scmp.eq.s32.totalorder %s16, 0
      %p31 = por %p29, %p30
      %p32 = scmp.ne.s32.totalorder %s24, %s26
      %p33 = scmp.eq.s32.totalorder %s21, 1
      %p34 = por %p32, %p33
      %p35 = scmp.ne.s32.totalorder %s26, %s27
      %p36 = scmp.eq.s32.totalorder %s21, 0
      %p37 = por %p35, %p36
      %p38 = scmp.ne.s32.totalorder %s26, %s27
      %p39 = scmp.eq.s32.totalorder %s22, 1
      %p40 = por %p38, %p39
      %p42 = scmp.ne.s32.totalorder %s27, %s41
      %p43 = scmp.eq.s32.totalorder %s22, 0
      %p44 = por %p42, %p43
      %s45 = ssub.s32 %s16, %s23
      %p46 = scmp.eq.s32.totalorder %s45, 0
      %s48 = sadd.s32 %s47, 1
      %s49 = scalar_select %p46, %s47, %s48
      %p52 = pneg %p46
      %p53 = scmp.eq.s32.totalorder %s16, 1
      %p54 = por %p52, %p53
      %p55 = scmp.ne.s32.totalorder %s47, %s50
      %p56 = scmp.eq.s32.totalorder %s16, 0
      %p57 = por %p55, %p56
      %p58 = scmp.ne.s32.totalorder %s47, %s50
      %p59 = scmp.eq.s32.totalorder %s21, 1
      %p60 = por %p58, %p59
      %p61 = scmp.ne.s32.totalorder %s50, %s51
      %p62 = scmp.eq.s32.totalorder %s21, 0
      %p63 = por %p61, %p62
      %p64 = scmp.ne.s32.totalorder %s50, %s51
      %p65 = scmp.eq.s32.totalorder %s22, 1
      %p66 = por %p64, %p65
      %p68 = scmp.ne.s32.totalorder %s51, %s67
      %p69 = scmp.eq.s32.totalorder %s22, 0
      %p70 = por %p68, %p69
      %s72 = sadd.s32 %s71, 1
      %p75 = scmp.eq.s32.totalorder %s16, 1
      %p76 = scmp.ne.s32.totalorder %s71, %s73
      %p77 = scmp.eq.s32.totalorder %s16, 0
      %p78 = por %p76, %p77
      %p79 = scmp.ne.s32.totalorder %s71, %s73
      %p80 = scmp.eq.s32.totalorder %s21, 1
      %p81 = por %p79, %p80
      %p82 = scmp.ne.s32.totalorder %s73, %s74
      %p83 = scmp.eq.s32.totalorder %s21, 0
      %p84 = por %p82, %p83
      %p85 = scmp.ne.s32.totalorder %s73, %s74
      %p86 = scmp.eq.s32.totalorder %s22, 1
      %p87 = por %p85, %p86
      %p89 = scmp.ne.s32.totalorder %s74, %s88
      %p90 = scmp.eq.s32.totalorder %s22, 0
      %p91 = por %p89, %p90
      %s92 = ssub.s32 %s16, %s23
      %p93 = scmp.eq.s32.totalorder %s92, 0
      %s95 = sadd.s32 %s94, 1
      %s96 = scalar_select %p93, %s94, %s95
      %p99 = pneg %p93
      %p100 = scmp.eq.s32.totalorder %s16, 1
      %p101 = por %p99, %p100
      %p102 = scmp.ne.s32.totalorder %s94, %s97
      %p103 = scmp.eq.s32.totalorder %s16, 0
      %p104 = por %p102, %p103
      %p105 = scmp.ne.s32.totalorder %s94, %s97
      %p106 = scmp.eq.s32.totalorder %s21, 1
      %p107 = por %p105, %p106
      %p108 = scmp.ne.s32.totalorder %s97, %s98
      %p109 = scmp.eq.s32.totalorder %s21, 0
      %p110 = por %p108, %p109
      %p111 = scmp.ne.s32.totalorder %s97, %s98
      %p112 = scmp.eq.s32.totalorder %s22, 1
      %p113 = por %p111, %p112
      %p115 = scmp.ne.s32.totalorder %s98, %s114
      %p116 = scmp.eq.s32.totalorder %s22, 0
      %p117 = por %p115, %p116
      %p118 = scmp.le.s32.totalorder 1, %s16
      %p119 = scmp.lt.s32.totalorder %s16, 3
      %p120 = pnand %p118, %p119
      %p121 = pneg %p120
      // Predicated region
      $region9: #{mtgnn_forward.9} parent=5 // pred_check
        _
      $region10: #{mtgnn_forward.9} parent=5 // pred_check_branch
        %123 = sbr.rel (%p120) target = $region12
      $region11: #{mtgnn_forward.9} parent=5 // pred_region
        %s124 = ssub.s32 %s16, 1
        // Predicated region
        $region13: #{mtgnn_forward.9} parent=11 // pred_check
          %p125 = pneg %p37
        $region14: #{mtgnn_forward.9} parent=11 // pred_check_branch
          %127 = sbr.rel (%p125) target = $region16
        $region15: #{mtgnn_forward.9} parent=11 // pred_region
          %s129 = ssub.s32 64, 64
          %130 = vsyncadd [#allocation3], %s129
          %s132 = sshll.u32 [#allocation2], 4
          %s133 = int_to_ptr.vmem [resolvable:$true] %s132
          %135 = dma.hbm_to_vmem [thread:$0]  %s0, 64, %s133, [#allocation3]
        $region16: #{mtgnn_forward.9} parent=11 // pred_fallthru
          _
        // Predicated region
        $region17: #{mtgnn_forward.9} parent=11 // pred_check
          %p136 = pneg %p84
        $region18: #{mtgnn_forward.9} parent=11 // pred_check_branch
          %138 = sbr.rel (%p136) target = $region20
        $region19: #{mtgnn_forward.9} parent=11 // pred_region
          %s140 = ssub.s32 128, 128
          %141 = vsyncadd [#allocation6], %s140
          %s143 = sshll.u32 [#allocation7], 4
          %s144 = int_to_ptr.vmem [resolvable:$true] %s143
          %146 = dma.hbm_to_vmem [thread:$0]  %s2, 128, %s144, [#allocation6]
        $region20: #{mtgnn_forward.9} parent=11 // pred_fallthru
          _
      $region12: #{mtgnn_forward.9} parent=5 // pred_fallthru
        _
      %p147 = scmp.lt.s32.totalorder %s16, 2
      // Predicated region
      $region21: #{mtgnn_forward.9} parent=5 // pred_check
        %p148 = pneg %p147
      $region22: #{mtgnn_forward.9} parent=5 // pred_check_branch
        %150 = sbr.rel (%p148) target = $region24
      $region23: #{mtgnn_forward.9} parent=5 // pred_region
        // Predicated region
        $region25: #{mtgnn_forward.9} parent=23 // pred_check
          %p151 = pneg %p57
        $region26: #{mtgnn_forward.9} parent=23 // pred_check_branch
          %153 = sbr.rel (%p151) target = $region28
        $region27: #{mtgnn_forward.9} parent=23 // pred_region
          %s154 = sand.u32 %s16, 1
          %s155 = scalar_lea.sflag [#allocation6], %s154
          %s156 = sand.u32 %s47, 1
          %s157 = scalar_lea.vmem [#allocation5], %s156
          %s159 = ssub.s32 16, 16
          %160 = vsyncadd %s155, %s159
          %s161 = smul.addr %s16, 16
          %s162 = scalar_lea.hbm %s1, %s161
          %s164 = sshll.u32 %s157, 4
          %s165 = int_to_ptr.vmem [resolvable:$true] %s164
          %167 = dma.hbm_to_vmem [thread:$0]  %s162, 16, %s165, %s155
        $region28: #{mtgnn_forward.9} parent=23 // pred_fallthru
          _
      $region24: #{mtgnn_forward.9} parent=5 // pred_fallthru
        _
      %p168 = scmp.le.s32.totalorder 1, %s16
      %p169 = scmp.lt.s32.totalorder %s16, 3
      %p170 = pnand %p168, %p169
      %p171 = pneg %p170
      // Predicated region
      $region29: #{mtgnn_forward.9} parent=5 // pred_check
        _
      $region30: #{mtgnn_forward.9} parent=5 // pred_check_branch
        %173 = sbr.rel (%p170) target = $region32
      $region31: #{mtgnn_forward.9} parent=5 // pred_region
        %s174 = ssub.s32 %s16, 1
        // Predicated region
        $region33: #{mtgnn_forward.9} parent=31 // pred_check
          %p175 = pneg %p37
        $region34: #{mtgnn_forward.9} parent=31 // pred_check_branch
          %177 = sbr.rel (%p175) target = $region36
        $region35: #{mtgnn_forward.9} parent=31 // pred_region
          %178 = dma.done [#allocation3], 64
        $region36: #{mtgnn_forward.9} parent=31 // pred_fallthru
          _
        %s179 = sand.u32 %s21, 1
        %s180 = scalar_lea.sflag [#allocation6], %s179
        %s181 = sand.u32 %s50, 1
        %s182 = scalar_lea.vmem [#allocation5], %s181
        // Predicated region
        $region37: #{mtgnn_forward.9} parent=31 // pred_check
          %p183 = pneg %p63
        $region38: #{mtgnn_forward.9} parent=31 // pred_check_branch
          %185 = sbr.rel (%p183) target = $region40
        $region39: #{mtgnn_forward.9} parent=31 // pred_region
          %186 = dma.done %s180, 16
        $region40: #{mtgnn_forward.9} parent=31 // pred_fallthru
          _
        // Predicated region
        $region41: #{mtgnn_forward.9} parent=31 // pred_check
          %p187 = pneg %p84
        $region42: #{mtgnn_forward.9} parent=31 // pred_check_branch
          %189 = sbr.rel (%p187) target = $region44
        $region43: #{mtgnn_forward.9} parent=31 // pred_region
          %190 = dma.done [#allocation6], 128
        $region44: #{mtgnn_forward.9} parent=31 // pred_fallthru
          _
        %p191 = pneg %p37
        %p192 = pneg %p34
        %s193 = sand.u32 %s21, 1
        %s194 = scalar_lea.sflag [#allocation6], %s193
        %s195 = sand.u32 %s50, 1
        %s196 = scalar_lea.vmem [#allocation5], %s195
        %p197 = pneg %p63
        %p198 = pneg %p60
        %p199 = pneg %p84
        %p200 = pneg %p81
        %p201 = pneg %p110
        %p202 = pneg %p107
        %s203 = sand.u32 %s97, 1
        %s204 = scalar_lea.sflag [#allocation4], %s203
        %s205 = sand.u32 %s97, 1
        %s206 = smul.addr %s205, 8
        %s207 = scalar_lea.vmem [#allocation8], %s206
        %v209 = vld [vmem:[#allocation2] sm:$0xf]
        %v210 = vld [vmem:[%s182] sm:$0x1]
        %v211 = vld [vmem:[#allocation7] sm:$0xff]
        %213 = vset.pattern.permute.xlu0 0
        %214 = vperm.xlu0 %213, %v211
        %v215 = vpop.permute.xlu0 %214
        %vm217 = vcmask 15360
        %v219 = vsel %vm217, %v209, 0
        %vm221 = vcmask 1040384
        %v223 = vsel %vm221, %v210, 0
        %225 = vmatprep.subr.bf16.mxu0 0
        %226 = vmatpush1.bf16.msra.mxu0 %v223
        %227 = vmatprep.subr.bf16.mxu0 0
        %228 = vmatpush1.bf16.msra.mxu0 0
        %229 = vmatprep.subr.bf16.mxu0 0
        %230 = vmatpush1.bf16.msra.mxu0 0
        %231 = vmatprep.subr.bf16.mxu0 0
        %232 = vmatpush1.bf16.msra.mxu0 0
        %233 = vmatprep.subr.bf16.mxu0 0
        %234 = vmatpush1.bf16.msra.mxu0 0
        %235 = vmatprep.subr.bf16.mxu0 0
        %236 = vmatpush1.bf16.msra.mxu0 0
        %237 = vmatprep.subr.bf16.mxu0 0
        %238 = vmatpush1.bf16.msra.mxu0 0
        %239 = vmatprep.subr.bf16.mxu0 0
        %240 = vmatpush1.bf16.msra.mxu0 0
        %241 = vmatprep.subr.bf16.mxu0 0
        %242 = vmatpush1.bf16.msra.mxu0 0
        %243 = vmatprep.subr.bf16.mxu0 0
        %244 = vmatpush1.bf16.msra.mxu0 0
        %245 = vmatprep.subr.bf16.mxu0 0
        %246 = vmatpush1.bf16.msra.mxu0 0
        %247 = vmatprep.subr.bf16.mxu0 0
        %248 = vmatpush1.bf16.msra.mxu0 0
        %249 = vmatprep.subr.bf16.mxu0 0
        %250 = vmatpush1.bf16.msra.mxu0 0
        %251 = vmatprep.subr.bf16.mxu0 0
        %252 = vmatpush1.bf16.msra.mxu0 0
        %253 = vmatprep.subr.bf16.mxu0 0
        %254 = vmatpush1.bf16.msra.mxu0 0
        %255 = vmatprep.subr.bf16.mxu0 0
        %256 = vmatpush1.bf16.msra.mxu0 0
        %257 = vmatprep.mubr.bf16.mxu0 0
        %258 = vmatmul.mubr.bf16.gmra.mrb[0].mxu0 %v219
        %v259 = vpop.f32.mrb[0].mxu0
        %v260 = vadd.f32 %v215, %v259
        %v261 = vpop.f32.mrb[0].mxu0
        %v262 = vpop.f32.mrb[0].mxu0
        %v263 = vpop.f32.mrb[0].mxu0
        %264 = vdwg.mxu0
        %265 = vst [vmem:[%s207] sm:$0xff] %v260
        %s266 = sand.u32 %s97, 1
        %s267 = scalar_lea.sflag [#allocation4], %s266
        %s268 = sand.u32 %s97, 1
        %s269 = smul.addr %s268, 8
        %s270 = scalar_lea.vmem [#allocation8], %s269
        // Predicated region
        $region45: #{mtgnn_forward.9} parent=31 // pred_check
          %p271 = pneg %p107
        $region46: #{mtgnn_forward.9} parent=31 // pred_check_branch
          %273 = sbr.rel (%p271) target = $region48
        $region47: #{mtgnn_forward.9} parent=31 // pred_region
          %s275 = ssub.s32 128, 128
          %276 = vsyncadd %s267, %s275
          %s277 = smul.addr %s21, 128
          %s278 = scalar_lea.hbm %s3, %s277
          %s280 = sshll.u32 %s270, 4
          %s281 = int_to_ptr.vmem [resolvable:$true] %s280
          %283 = dma.vmem_to_hbm [thread:$0]  %s281, 128, %s278, %s267
        $region48: #{mtgnn_forward.9} parent=31 // pred_fallthru
          _
      $region32: #{mtgnn_forward.9} parent=5 // pred_fallthru
        _
      %p284 = scmp.le.s32.totalorder 2, %s16
      // Predicated region
      $region49: #{mtgnn_forward.9} parent=5 // pred_check
        %p285 = pneg %p284
      $region50: #{mtgnn_forward.9} parent=5 // pred_check_branch
        %287 = sbr.rel (%p285) target = $region52
      $region51: #{mtgnn_forward.9} parent=5 // pred_region
        %s288 = ssub.s32 %s16, 2
        // Predicated region
        $region53: #{mtgnn_forward.9} parent=51 // pred_check
          %p289 = pneg %p113
        $region54: #{mtgnn_forward.9} parent=51 // pred_check_branch
          %291 = sbr.rel (%p289) target = $region56
        $region55: #{mtgnn_forward.9} parent=51 // pred_region
          %s292 = sand.u32 %s98, 1
          %s293 = scalar_lea.sflag [#allocation4], %s292
          %s294 = sand.u32 %s98, 1
          %s295 = smul.addr %s294, 8
          %s296 = scalar_lea.vmem [#allocation8], %s295
          %297 = dma.done %s293, 128
        $region56: #{mtgnn_forward.9} parent=51 // pred_fallthru
          _
      $region52: #{mtgnn_forward.9} parent=5 // pred_fallthru
        _
    $region6: #{mtgnn_forward.9} parent=1 // loop_footer
      %s20 = sadd.s32 1, %s16
    $region7: #{mtgnn_forward.9} parent=1 // loop_footer_branch
      %15 = sbr.rel target = $region3
    $region8: #{mtgnn_forward.9} parent=1 // loop_exit
      _
    %298 = vsyncpa [#allocation3], 1
    %s299 = scalar_lea.sflag [#allocation3], 1
    %300 = vsyncpa %s299, 1
    %301 = vsyncpa [#allocation6], 1
    %s302 = scalar_lea.sflag [#allocation6], 1
    %303 = vsyncpa %s302, 1
    %304 = vsyncpa [#allocation4], 1
    %s305 = scalar_lea.sflag [#allocation4], 1
    %306 = vsyncpa %s305, 1

// kernel: mtgnn_forward.10
$region0: #{mtgnn_forward.10}
  #allocation0 [shape = 'u32[]', space=smem, size = 0x4, offset = 0x4, fixed_abs, tag = 'smem constant byte address 0x4 - core index']
  #allocation1 [shape = 'u32[144,128]{1,0:T(1,128)}', space=vmem, size = 0x12000, scoped, tag = 'internal scratch']
  %s0 = inlined_call_operand.hbm [shape: bf16[56,256], index: 0, kind: input, shape index: {}]
  %s1 = inlined_call_operand.hbm [shape: bf16[16,56], index: 1, kind: input, shape index: {}]
  %s2 = inlined_call_operand.hbm [shape: f32[16,1], index: 2, kind: input, shape index: {}]
  %s3 = inlined_call_operand.hbm [shape: bf16[8,256], index: 3, kind: output, shape index: {}]
  %s4 = sld [smem:[#allocation0]]
  $region57: #{mtgnn_forward.10} parent=0
    _
  %s6 = ssub.s32 1, %s4
  %s7 = scalar_select 0, %s6, %s4
  $region1: #{mtgnn_forward.10} parent=0
    #allocation2 [shape = 'u8[28672]{0}', space=vmem, size = 0x7000, scoped, tag = 'input window, operand 0']
    #allocation3 [shape = 's32[2]{0}', space=sflag, size = 0x8, scoped, tag = 'scoped memory for mtgnn_forward.10']
    #allocation4 [shape = 's32[2]{0}', space=sflag, size = 0x8, scoped, tag = 'scoped memory for mtgnn_forward.10']
    #allocation5 [shape = 'u8[4096]{0}', space=vmem, size = 0x1000, scoped, tag = 'input window, operand 1, single buffered']
    #allocation6 [shape = 's32[1]{0}', space=sflag, size = 0x4, scoped, tag = 'scoped memory for mtgnn_forward.10']
    #allocation7 [shape = 'u8[8192]{0}', space=vmem, size = 0x2000, scoped, tag = 'input window, operand 2, single buffered']
    #allocation8 [shape = 'u8[4096]{0}', space=vmem, size = 0x1000, scoped, tag = 'output window, operand 0']
    %8 = vsyncpa [#allocation3], 0
    %s9 = scalar_lea.sflag [#allocation3], 1
    %10 = vsyncpa %s9, 0
    %11 = vsyncpa [#allocation6], 0
    %12 = vsyncpa [#allocation4], 0
    %s13 = scalar_lea.sflag [#allocation4], 1
    %14 = vsyncpa %s13, 0
    loop: start=0, step=1, limit=4
    $region2: #{mtgnn_forward.10} parent=1 // loop_pre_header
      _
    $region3: #{mtgnn_forward.10} parent=1 // loop_header
      %s16 = sphi 0, %s20
      %p17 = scmp.ge.s32.totalorder %s16, 4
      %s26 = sphi 0, %s28
      %s29 = sphi 0, %s26
      %s30 = sphi 0, %s29
      %s46 = sphi 0, %s30
      %s50 = sphi 0, %s50
      %s52 = sphi 0, %s50
      %s53 = sphi 0, %s52
      %s67 = sphi 0, %s53
      %s71 = sphi 0, %s71
      %s73 = sphi 0, %s71
      %s74 = sphi 0, %s73
      %s88 = sphi 0, %s74
      %s94 = sphi 0, %s96
      %s97 = sphi 0, %s94
      %s98 = sphi 0, %s97
      %s114 = sphi 0, %s98
    $region4: #{mtgnn_forward.10} parent=1 // loop_header_branch
      %19 = sbr.rel (%p17) target = $region8
    $region5: #{mtgnn_forward.10} parent=1 // loop_body
      %s21 = ssub.s32 %s16, 1
      %s22 = ssub.s32 %s16, 2
      %s23 = sadd.s32 %s16, 1
      %s24 = ssub.s32 %s16, %s23
      %p25 = scmp.eq.s32.totalorder %s24, 0
      %s27 = sadd.s32 %s26, 1
      %s28 = scalar_select %p25, %s26, %s27
      %p31 = pneg %p25
      %p32 = scmp.eq.s32.totalorder %s16, 1
      %p33 = por %p31, %p32
      %p34 = scmp.ne.s32.totalorder %s26, %s29
      %p35 = scmp.eq.s32.totalorder %s16, 0
      %p36 = por %p34, %p35
      %p37 = scmp.ne.s32.totalorder %s26, %s29
      %p38 = scmp.eq.s32.totalorder %s21, 1
      %p39 = por %p37, %p38
      %p40 = scmp.ne.s32.totalorder %s29, %s30
      %p41 = scmp.eq.s32.totalorder %s21, 0
      %p42 = por %p40, %p41
      %p43 = scmp.ne.s32.totalorder %s29, %s30
      %p44 = scmp.eq.s32.totalorder %s22, 1
      %p45 = por %p43, %p44
      %p47 = scmp.ne.s32.totalorder %s30, %s46
      %p48 = scmp.eq.s32.totalorder %s22, 0
      %p49 = por %p47, %p48
      %s51 = sadd.s32 %s50, 1
      %p54 = scmp.eq.s32.totalorder %s16, 1
      %p55 = scmp.ne.s32.totalorder %s50, %s52
      %p56 = scmp.eq.s32.totalorder %s16, 0
      %p57 = por %p55, %p56
      %p58 = scmp.ne.s32.totalorder %s50, %s52
      %p59 = scmp.eq.s32.totalorder %s21, 1
      %p60 = por %p58, %p59
      %p61 = scmp.ne.s32.totalorder %s52, %s53
      %p62 = scmp.eq.s32.totalorder %s21, 0
      %p63 = por %p61, %p62
      %p64 = scmp.ne.s32.totalorder %s52, %s53
      %p65 = scmp.eq.s32.totalorder %s22, 1
      %p66 = por %p64, %p65
      %p68 = scmp.ne.s32.totalorder %s53, %s67
      %p69 = scmp.eq.s32.totalorder %s22, 0
      %p70 = por %p68, %p69
      %s72 = sadd.s32 %s71, 1
      %p75 = scmp.eq.s32.totalorder %s16, 1
      %p76 = scmp.ne.s32.totalorder %s71, %s73
      %p77 = scmp.eq.s32.totalorder %s16, 0
      %p78 = por %p76, %p77
      %p79 = scmp.ne.s32.totalorder %s71, %s73
      %p80 = scmp.eq.s32.totalorder %s21, 1
      %p81 = por %p79, %p80
      %p82 = scmp.ne.s32.totalorder %s73, %s74
      %p83 = scmp.eq.s32.totalorder %s21, 0
      %p84 = por %p82, %p83
      %p85 = scmp.ne.s32.totalorder %s73, %s74
      %p86 = scmp.eq.s32.totalorder %s22, 1
      %p87 = por %p85, %p86
      %p89 = scmp.ne.s32.totalorder %s74, %s88
      %p90 = scmp.eq.s32.totalorder %s22, 0
      %p91 = por %p89, %p90
      %s92 = ssub.s32 %s16, %s23
      %p93 = scmp.eq.s32.totalorder %s92, 0
      %s95 = sadd.s32 %s94, 1
      %s96 = scalar_select %p93, %s94, %s95
      %p99 = pneg %p93
      %p100 = scmp.eq.s32.totalorder %s16, 1
      %p101 = por %p99, %p100
      %p102 = scmp.ne.s32.totalorder %s94, %s97
      %p103 = scmp.eq.s32.totalorder %s16, 0
      %p104 = por %p102, %p103
      %p105 = scmp.ne.s32.totalorder %s94, %s97
      %p106 = scmp.eq.s32.totalorder %s21, 1
      %p107 = por %p105, %p106
      %p108 = scmp.ne.s32.totalorder %s97, %s98
      %p109 = scmp.eq.s32.totalorder %s21, 0
      %p110 = por %p108, %p109
      %p111 = scmp.ne.s32.totalorder %s97, %s98
      %p112 = scmp.eq.s32.totalorder %s22, 1
      %p113 = por %p111, %p112
      %p115 = scmp.ne.s32.totalorder %s98, %s114
      %p116 = scmp.eq.s32.totalorder %s22, 0
      %p117 = por %p115, %p116
      %p118 = scmp.le.s32.totalorder 1, %s16
      %p119 = scmp.lt.s32.totalorder %s16, 3
      %p120 = pnand %p118, %p119
      %p121 = pneg %p120
      // Predicated region
      $region9: #{mtgnn_forward.10} parent=5 // pred_check
        _
      $region10: #{mtgnn_forward.10} parent=5 // pred_check_branch
        %123 = sbr.rel (%p120) target = $region12
      $region11: #{mtgnn_forward.10} parent=5 // pred_region
        %s124 = ssub.s32 %s16, 1
        // Predicated region
        $region13: #{mtgnn_forward.10} parent=11 // pred_check
          %p125 = pneg %p63
        $region14: #{mtgnn_forward.10} parent=11 // pred_check_branch
          %127 = sbr.rel (%p125) target = $region16
        $region15: #{mtgnn_forward.10} parent=11 // pred_region
          %s129 = ssub.s32 128, 128
          %130 = vsyncadd [#allocation6], %s129
          %s131 = sshll.u32 [#allocation5], 4
          %s132 = int_to_ptr.vmem [resolvable:$true] %s131
          %137 = dma.hbm_to_vmem [thread:$0]  %s1, 128, %s132, [#allocation6], 64, 64, 4
        $region16: #{mtgnn_forward.10} parent=11 // pred_fallthru
          _
        // Predicated region
        $region17: #{mtgnn_forward.10} parent=11 // pred_check
          %p138 = pneg %p84
        $region18: #{mtgnn_forward.10} parent=11 // pred_check_branch
          %140 = sbr.rel (%p138) target = $region20
        $region19: #{mtgnn_forward.10} parent=11 // pred_region
          %s142 = ssub.s32 256, 256
          %143 = vsyncadd [#allocation6], %s142
          %s144 = sshll.u32 [#allocation7], 4
          %s145 = int_to_ptr.vmem [resolvable:$true] %s144
          %150 = dma.hbm_to_vmem [thread:$0]  %s2, 256, %s145, [#allocation6], 128, 128, 8
        $region20: #{mtgnn_forward.10} parent=11 // pred_fallthru
          _
      $region12: #{mtgnn_forward.10} parent=5 // pred_fallthru
        _
      %p151 = scmp.lt.s32.totalorder %s16, 2
      // Predicated region
      $region21: #{mtgnn_forward.10} parent=5 // pred_check
        %p152 = pneg %p151
      $region22: #{mtgnn_forward.10} parent=5 // pred_check_branch
        %154 = sbr.rel (%p152) target = $region24
      $region23: #{mtgnn_forward.10} parent=5 // pred_region
        // Predicated region
        $region25: #{mtgnn_forward.10} parent=23 // pred_check
          %p155 = pneg %p36
        $region26: #{mtgnn_forward.10} parent=23 // pred_check_branch
          %157 = sbr.rel (%p155) target = $region28
        $region27: #{mtgnn_forward.10} parent=23 // pred_region
          %s158 = sand.u32 %s26, 1
          %s159 = scalar_lea.sflag [#allocation3], %s158
          %s160 = sand.u32 %s26, 1
          %s161 = smul.addr %s160, 28
          %s162 = scalar_lea.vmem [#allocation2], %s161
          %s164 = ssub.s32 448, 448
          %165 = vsyncadd %s159, %s164
          %s166 = smul.addr %s16, 64
          %s167 = scalar_lea.hbm %s0, %s166
          %s168 = sshll.u32 %s162, 4
          %s169 = int_to_ptr.vmem [resolvable:$true] %s168
          %174 = dma.hbm_to_vmem [thread:$0]  %s167, 448, %s169, %s159, 128, 64, 4
        $region28: #{mtgnn_forward.10} parent=23 // pred_fallthru
          _
      $region24: #{mtgnn_forward.10} parent=5 // pred_fallthru
        _
      %p175 = scmp.le.s32.totalorder 1, %s16
      %p176 = scmp.lt.s32.totalorder %s16, 3
      %p177 = pnand %p175, %p176
      %p178 = pneg %p177
      // Predicated region
      $region29: #{mtgnn_forward.10} parent=5 // pred_check
        _
      $region30: #{mtgnn_forward.10} parent=5 // pred_check_branch
        %180 = sbr.rel (%p177) target = $region32
      $region31: #{mtgnn_forward.10} parent=5 // pred_region
        %s181 = ssub.s32 %s16, 1
        %s182 = sand.u32 %s29, 1
        %s183 = scalar_lea.sflag [#allocation3], %s182
        %s184 = sand.u32 %s29, 1
        %s185 = smul.addr %s184, 28
        %s186 = scalar_lea.vmem [#allocation2], %s185
        // Predicated region
        $region33: #{mtgnn_forward.10} parent=31 // pred_check
          %p187 = pneg %p42
        $region34: #{mtgnn_forward.10} parent=31 // pred_check_branch
          %189 = sbr.rel (%p187) target = $region36
        $region35: #{mtgnn_forward.10} parent=31 // pred_region
          %190 = dma.done %s183, 448
        $region36: #{mtgnn_forward.10} parent=31 // pred_fallthru
          _
        // Predicated region
        $region37: #{mtgnn_forward.10} parent=31 // pred_check
          %p191 = pneg %p63
        $region38: #{mtgnn_forward.10} parent=31 // pred_check_branch
          %193 = sbr.rel (%p191) target = $region40
        $region39: #{mtgnn_forward.10} parent=31 // pred_region
          %194 = dma.done [#allocation6], 128
        $region40: #{mtgnn_forward.10} parent=31 // pred_fallthru
          _
        // Predicated region
        $region41: #{mtgnn_forward.10} parent=31 // pred_check
          %p195 = pneg %p84
        $region42: #{mtgnn_forward.10} parent=31 // pred_check_branch
          %197 = sbr.rel (%p195) target = $region44
        $region43: #{mtgnn_forward.10} parent=31 // pred_region
          %198 = dma.done [#allocation6], 256
        $region44: #{mtgnn_forward.10} parent=31 // pred_fallthru
          _
        %s199 = sand.u32 %s29, 1
        %s200 = scalar_lea.sflag [#allocation3], %s199
        %s201 = sand.u32 %s29, 1
        %s202 = smul.addr %s201, 28
        %s203 = scalar_lea.vmem [#allocation2], %s202
        %p204 = pneg %p42
        %p205 = pneg %p39
        %p206 = pneg %p63
        %p207 = pneg %p60
        %p208 = pneg %p84
        %p209 = pneg %p81
        %p210 = pneg %p110
        %p211 = pneg %p107
        %s212 = sand.u32 %s97, 1
        %s213 = scalar_lea.sflag [#allocation4], %s212
        %s214 = sand.u32 %s97, 1
        %s215 = smul.addr %s214, 4
        %s216 = scalar_lea.vmem [#allocation8], %s215
        %v218 = vld [vmem:[#allocation5] sm:$0xf]
        %v219 = vld [vmem:[#allocation5 + $0x4] sm:$0xf]
        %v220 = vld [vmem:[%s186] sm:$0xf]
        %v221 = vld [vmem:[%s186 + $0x4] sm:$0xf]
        %v222 = vld [vmem:[%s186 + $0x8] sm:$0xf]
        %v223 = vld [vmem:[%s186 + $0xc] sm:$0xf]
        %v224 = vld [vmem:[%s186 + $0x10] sm:$0xf]
        %v225 = vld [vmem:[%s186 + $0x14] sm:$0xf]
        %v226 = vld [vmem:[%s186 + $0x18] sm:$0xf]
        %v227 = vld [vmem:[#allocation7] sm:$0xff]
        %v228 = vld [vmem:[#allocation7 + $0x8] sm:$0xff]
        %230 = vset.pattern.permute.xlu0 0
        %231 = vperm.xlu0 %230, %v227
        %v232 = vpop.permute.xlu0 %231
        %235 = vset.pattern.permute.xlu0 0
        %236 = vperm.xlu0 %235, %v228
        %v237 = vpop.permute.xlu0 %236
        %v241 = vunpack.c.l.b16 %v218
        %v242 = vunpack.c.l.b16 %v219
        %v243 = vpack.c.b16 %v242, %v241
        %v251 = vunpack.c.l.b16 %v220
        %v252 = vunpack.c.l.b16 %v221
        %v253 = vunpack.c.l.b16 %v222
        %v254 = vunpack.c.l.b16 %v223
        %v255 = vunpack.c.l.b16 %v224
        %v256 = vunpack.c.l.b16 %v225
        %v257 = vunpack.c.l.b16 %v226
        %v258 = vpack.c.b16 %v252, %v251
        %v259 = vpack.c.b16 %v254, %v253
        %v260 = vpack.c.b16 %v256, %v255
        %v261 = vpack.c.b16 %v257, %v257
        %vm265 = vcmask 457728
        %v267 = vsel %vm265, %v243, 0
        %vm269 = vcmask 1043456
        %v271 = vsel %vm269, %v261, 0
        %273 = vmatprep.subr.bf16.mxu0 0
        %274 = vmatpush1.bf16.msra.mxu0 %v258
        %275 = vmatprep.subr.bf16.mxu0 0
        %276 = vmatpush1.bf16.msra.mxu0 %v259
        %277 = vmatprep.subr.bf16.mxu0 0
        %278 = vmatpush1.bf16.msra.mxu0 %v260
        %279 = vmatprep.subr.bf16.mxu0 0
        %280 = vmatpush1.bf16.msra.mxu0 %v271
        %281 = vmatprep.subr.bf16.mxu0 0
        %282 = vmatpush1.bf16.msra.mxu0 0
        %283 = vmatprep.subr.bf16.mxu0 0
        %284 = vmatpush1.bf16.msra.mxu0 0
        %285 = vmatprep.subr.bf16.mxu0 0
        %286 = vmatpush1.bf16.msra.mxu0 0
        %287 = vmatprep.subr.bf16.mxu0 0
        %288 = vmatpush1.bf16.msra.mxu0 0
        %289 = vmatprep.subr.bf16.mxu0 0
        %290 = vmatpush1.bf16.msra.mxu0 0
        %291 = vmatprep.subr.bf16.mxu0 0
        %292 = vmatpush1.bf16.msra.mxu0 0
        %293 = vmatprep.subr.bf16.mxu0 0
        %294 = vmatpush1.bf16.msra.mxu0 0
        %295 = vmatprep.subr.bf16.mxu0 0
        %296 = vmatpush1.bf16.msra.mxu0 0
        %297 = vmatprep.subr.bf16.mxu0 0
        %298 = vmatpush1.bf16.msra.mxu0 0
        %299 = vmatprep.subr.bf16.mxu0 0
        %300 = vmatpush1.bf16.msra.mxu0 0
        %301 = vmatprep.subr.bf16.mxu0 0
        %302 = vmatpush1.bf16.msra.mxu0 0
        %303 = vmatprep.subr.bf16.mxu0 0
        %304 = vmatpush1.bf16.msra.mxu0 0
        %305 = vmatprep.mubr.bf16.mxu0 0
        %306 = vmatmul.mubr.bf16.gmra.mrb[0].mxu0 %v267
        %v307 = vpop.f32.mrb[0].mxu0
        %v308 = vadd.f32 %v232, %v307
        %v309 = vpop.f32.mrb[0].mxu0
        %v310 = vpop.f32.mrb[0].mxu0
        %v311 = vadd.f32 %v237, %v310
        %v312 = vpop.f32.mrb[0].mxu0
        %313 = vdwg.mxu0
        %v314 = vtanh.pop %v308
        %v315 = vxor.u32 %v311, 2147483648
        %v316 = vmul.f32 %v315, 1.442695
        %v317 = vpow.pop %v316
        %v318 = vadd.f32 %v317, 1.0
        %v319 = vrcp.pop %v318
        %v320 = vmul.f32 1.0, %v319
        %v321 = vmul.f32 %v314, %v320
        %v322 = vpack.c.bf16 %v321, %v321
        %323 = vst [vmem:[%s216] sm:$0xf] %v322
        %s324 = sand.u32 %s97, 1
        %s325 = scalar_lea.sflag [#allocation4], %s324
        %s326 = sand.u32 %s97, 1
        %s327 = smul.addr %s326, 4
        %s328 = scalar_lea.vmem [#allocation8], %s327
        // Predicated region
        $region45: #{mtgnn_forward.10} parent=31 // pred_check
          %p329 = pneg %p107
        $region46: #{mtgnn_forward.10} parent=31 // pred_check_branch
          %331 = sbr.rel (%p329) target = $region48
        $region47: #{mtgnn_forward.10} parent=31 // pred_region
          %s333 = ssub.s32 64, 64
          %334 = vsyncadd %s325, %s333
          %s335 = smul.addr %s21, 64
          %s336 = scalar_lea.hbm %s3, %s335
          %s338 = sshll.u32 %s328, 4
          %s339 = int_to_ptr.vmem [resolvable:$true] %s338
          %341 = dma.vmem_to_hbm [thread:$0]  %s339, 64, %s336, %s325
        $region48: #{mtgnn_forward.10} parent=31 // pred_fallthru
          _
      $region32: #{mtgnn_forward.10} parent=5 // pred_fallthru
        _
      %p342 = scmp.le.s32.totalorder 2, %s16
      // Predicated region
      $region49: #{mtgnn_forward.10} parent=5 // pred_check
        %p343 = pneg %p342
      $region50: #{mtgnn_forward.10} parent=5 // pred_check_branch
        %345 = sbr.rel (%p343) target = $region52
      $region51: #{mtgnn_forward.10} parent=5 // pred_region
        %s346 = ssub.s32 %s16, 2
        // Predicated region
        $region53: #{mtgnn_forward.10} parent=51 // pred_check
          %p347 = pneg %p113
        $region54: #{mtgnn_forward.10} parent=51 // pred_check_branch
          %349 = sbr.rel (%p347) target = $region56
        $region55: #{mtgnn_forward.10} parent=51 // pred_region
          %s350 = sand.u32 %s98, 1
          %s351 = scalar_lea.sflag [#allocation4], %s350
          %s352 = sand.u32 %s98, 1
          %s353 = smul.addr %s352, 4
          %s354 = scalar_lea.vmem [#allocation8], %s353
          %355 = dma.done %s351, 64
        $region56: #{mtgnn_forward.10} parent=51 // pred_fallthru
          _
      $region52: #{mtgnn_forward.10} parent=5 // pred_fallthru
        _
    $region6: #{mtgnn_forward.10} parent=1 // loop_footer
      %s20 = sadd.s32 1, %s16
    $region7: #{mtgnn_forward.10} parent=1 // loop_footer_branch
      %15 = sbr.rel target = $region3
    $region8: #{mtgnn_forward.10} parent=1 // loop_exit
      _
    %356 = vsyncpa [#allocation3], 1
    %s357 = scalar_lea.sflag [#allocation3], 1
    %358 = vsyncpa %s357, 1
    %359 = vsyncpa [#allocation6], 1
    %360 = vsyncpa [#allocation4], 1
    %s361 = scalar_lea.sflag [#allocation4], 1
    %362 = vsyncpa %s361, 1

// kernel: mtgnn_forward.11
$region0: #{mtgnn_forward.11}
  #allocation0 [shape = 'u32[]', space=smem, size = 0x4, offset = 0x4, fixed_abs, tag = 'smem constant byte address 0x4 - core index']
  #allocation1 [shape = 'u32[144,128]{1,0:T(1,128)}', space=vmem, size = 0x12000, scoped, tag = 'internal scratch']
  %s0 = inlined_call_operand.hbm [shape: bf16[8,8,128], index: 0, kind: input, shape index: {}]
  %s1 = inlined_call_operand.hbm [shape: f32[8,8], index: 1, kind: input, shape index: {}]
  %s2 = inlined_call_operand.hbm [shape: f32[8,8], index: 2, kind: input, shape index: {}]
  %s3 = inlined_call_operand.hbm [shape: bf16[6,8,8,128], index: 3, kind: output, shape index: {}]
  %s4 = sld [smem:[#allocation0]]
  $region34: #{mtgnn_forward.11} parent=0
    _
  %s6 = ssub.s32 1, %s4
  %s7 = scalar_select 0, %s6, %s4
  $region1: #{mtgnn_forward.11} parent=0
    #allocation2 [shape = 'u8[16384]{0}', space=vmem, size = 0x4000, scoped, tag = 'input window, operand 0, single buffered']
    #allocation3 [shape = 's32[1]{0}', space=sflag, size = 0x4, scoped, tag = 'scoped memory for mtgnn_forward.11']
    #allocation4 [shape = 's32[1]{0}', space=sflag, size = 0x4, scoped, tag = 'scoped memory for mtgnn_forward.11']
    #allocation5 [shape = 'u8[4096]{0}', space=vmem, size = 0x1000, scoped, tag = 'input window, operand 1, single buffered']
    #allocation6 [shape = 's32[1]{0}', space=sflag, size = 0x4, scoped, tag = 'scoped memory for mtgnn_forward.11']
    #allocation7 [shape = 'u8[4096]{0}', space=vmem, size = 0x1000, scoped, tag = 'input window, operand 2, single buffered']
    #allocation8 [shape = 'u8[98304]{0}', space=vmem, size = 0x18000, scoped, tag = 'output window, operand 0, single buffered']
    %8 = vsyncpa [#allocation3], 0
    %9 = vsyncpa [#allocation6], 0
    %10 = vsyncpa [#allocation4], 0
    // Predicated region
    $region2: #{mtgnn_forward.11} parent=1 // pred_check
      _
    $region3: #{mtgnn_forward.11} parent=1 // pred_check_branch
      %12 = sbr.rel (0) target = $region5
    $region4: #{mtgnn_forward.11} parent=1 // pred_region
      %s14 = ssub.s32 512, 512
      %15 = vsyncadd [#allocation3], %s14
      %s16 = sshll.u32 [#allocation2], 4
      %s17 = int_to_ptr.vmem [resolvable:$true] %s16
      %22 = dma.hbm_to_vmem [thread:$0]  %s0, 512, %s17, [#allocation3], 64, 64, 4
    $region5: #{mtgnn_forward.11} parent=1 // pred_fallthru
      _
    // Predicated region
    $region6: #{mtgnn_forward.11} parent=1 // pred_check
      _
    $region7: #{mtgnn_forward.11} parent=1 // pred_check_branch
      %24 = sbr.rel (0) target = $region9
    $region8: #{mtgnn_forward.11} parent=1 // pred_region
      %s26 = ssub.s32 128, 128
      %27 = vsyncadd [#allocation6], %s26
      %s29 = sshll.u32 [#allocation5], 4
      %s30 = int_to_ptr.vmem [resolvable:$true] %s29
      %32 = dma.hbm_to_vmem [thread:$0]  %s1, 128, %s30, [#allocation6]
    $region9: #{mtgnn_forward.11} parent=1 // pred_fallthru
      _
    // Predicated region
    $region10: #{mtgnn_forward.11} parent=1 // pred_check
      _
    $region11: #{mtgnn_forward.11} parent=1 // pred_check_branch
      %34 = sbr.rel (0) target = $region13
    $region12: #{mtgnn_forward.11} parent=1 // pred_region
      %s36 = ssub.s32 128, 128
      %37 = vsyncadd [#allocation6], %s36
      %s39 = sshll.u32 [#allocation7], 4
      %s40 = int_to_ptr.vmem [resolvable:$true] %s39
      %42 = dma.hbm_to_vmem [thread:$0]  %s2, 128, %s40, [#allocation6]
    $region13: #{mtgnn_forward.11} parent=1 // pred_fallthru
      _
    // Predicated region
    $region14: #{mtgnn_forward.11} parent=1 // pred_check
      _
    $region15: #{mtgnn_forward.11} parent=1 // pred_check_branch
      %44 = sbr.rel (0) target = $region17
    $region16: #{mtgnn_forward.11} parent=1 // pred_region
      %45 = dma.done [#allocation3], 512
    $region17: #{mtgnn_forward.11} parent=1 // pred_fallthru
      _
    // Predicated region
    $region18: #{mtgnn_forward.11} parent=1 // pred_check
      _
    $region19: #{mtgnn_forward.11} parent=1 // pred_check_branch
      %47 = sbr.rel (0) target = $region21
    $region20: #{mtgnn_forward.11} parent=1 // pred_region
      %48 = dma.done [#allocation6], 128
    $region21: #{mtgnn_forward.11} parent=1 // pred_fallthru
      _
    // Predicated region
    $region22: #{mtgnn_forward.11} parent=1 // pred_check
      _
    $region23: #{mtgnn_forward.11} parent=1 // pred_check_branch
      %50 = sbr.rel (0) target = $region25
    $region24: #{mtgnn_forward.11} parent=1 // pred_region
      %51 = dma.done [#allocation6], 128
    $region25: #{mtgnn_forward.11} parent=1 // pred_fallthru
      _
    %v53 = vld [vmem:[#allocation2] sm:$0xf]
    %v54 = vld [vmem:[#allocation2 + $0x4] sm:$0xf]
    %v55 = vld [vmem:[#allocation2 + $0x8] sm:$0xf]
    %v56 = vld [vmem:[#allocation2 + $0xc] sm:$0xf]
    %v57 = vld [vmem:[#allocation2 + $0x10] sm:$0xf]
    %v58 = vld [vmem:[#allocation2 + $0x14] sm:$0xf]
    %v59 = vld [vmem:[#allocation2 + $0x18] sm:$0xf]
    %v60 = vld [vmem:[#allocation2 + $0x1c] sm:$0xf]
    %v61 = vunpack.c.l.bf16 %v53
    %v62 = vunpack.c.l.bf16 %v54
    %v63 = vunpack.c.l.bf16 %v55
    %v64 = vunpack.c.l.bf16 %v56
    %v65 = vunpack.c.l.bf16 %v57
    %v66 = vunpack.c.l.bf16 %v58
    %v67 = vunpack.c.l.bf16 %v59
    %v68 = vunpack.c.l.bf16 %v60
    %v69 = vld [vmem:[#allocation5] sm:$0xff]
    %v70 = vpack.c.bf16 %v69, %v69
    %71 = vst [vmem:[#allocation8] sm:$0xf] %v53
    %72 = vst [vmem:[#allocation8 + $0x4] sm:$0xf] %v54
    %73 = vst [vmem:[#allocation8 + $0x8] sm:$0xf] %v55
    %74 = vst [vmem:[#allocation8 + $0xc] sm:$0xf] %v56
    %75 = vst [vmem:[#allocation8 + $0x10] sm:$0xf] %v57
    %76 = vst [vmem:[#allocation8 + $0x14] sm:$0xf] %v58
    %77 = vst [vmem:[#allocation8 + $0x18] sm:$0xf] %v59
    %78 = vst [vmem:[#allocation8 + $0x1c] sm:$0xf] %v60
    %vm79 = vcmask 64512
    %v81 = vsel %vm79, %v70, 0
    %vm83 = vcmask 1043456
    %v85 = vsel %vm83, %v53, 0
    %87 = vmatprep.subr.bf16.mxu0 0
    %88 = vmatpush1.bf16.msra.mxu0 %v85
    %89 = vmatprep.subr.bf16.mxu0 0
    %90 = vmatpush1.bf16.msra.mxu0 0
    %91 = vmatprep.subr.bf16.mxu0 0
    %92 = vmatpush1.bf16.msra.mxu0 0
    %93 = vmatprep.subr.bf16.mxu0 0
    %94 = vmatpush1.bf16.msra.mxu0 0
    %95 = vmatprep.subr.bf16.mxu0 0
    %96 = vmatpush1.bf16.msra.mxu0 0
    %97 = vmatprep.subr.bf16.mxu0 0
    %98 = vmatpush1.bf16.msra.mxu0 0
    %99 = vmatprep.subr.bf16.mxu0 0
    %100 = vmatpush1.bf16.msra.mxu0 0
    %101 = vmatprep.subr.bf16.mxu0 0
    %102 = vmatpush1.bf16.msra.mxu0 0
    %103 = vmatprep.subr.bf16.mxu0 0
    %104 = vmatpush1.bf16.msra.mxu0 0
    %105 = vmatprep.subr.bf16.mxu0 0
    %106 = vmatpush1.bf16.msra.mxu0 0
    %107 = vmatprep.subr.bf16.mxu0 0
    %108 = vmatpush1.bf16.msra.mxu0 0
    %109 = vmatprep.subr.bf16.mxu0 0
    %110 = vmatpush1.bf16.msra.mxu0 0
    %111 = vmatprep.subr.bf16.mxu0 0
    %112 = vmatpush1.bf16.msra.mxu0 0
    %113 = vmatprep.subr.bf16.mxu0 0
    %114 = vmatpush1.bf16.msra.mxu0 0
    %115 = vmatprep.subr.bf16.mxu0 0
    %116 = vmatpush1.bf16.msra.mxu0 0
    %117 = vmatprep.subr.bf16.mxu0 0
    %118 = vmatpush1.bf16.msra.mxu0 0
    %119 = vmatprep.mubr.bf16.mxu0 0
    %120 = vmatmul.mubr.bf16.gmra.mrb[0].mxu0 %v81
    %v121 = vpop.f32.mrb[0].mxu0
    %v122 = vadd.f32 0.0, %v121
    %v123 = vpop.f32.mrb[0].mxu0
    %v124 = vpop.f32.mrb[0].mxu0
    %v125 = vpop.f32.mrb[0].mxu0
    %126 = vdwg.mxu0
    %v128 = vsel %vm83, %v54, 0
    %130 = vmatprep.subr.bf16.mxu0 0
    %131 = vmatpush1.bf16.msra.mxu0 %v128
    %132 = vmatprep.subr.bf16.mxu0 0
    %133 = vmatpush1.bf16.msra.mxu0 0
    %134 = vmatprep.subr.bf16.mxu0 0
    %135 = vmatpush1.bf16.msra.mxu0 0
    %136 = vmatprep.subr.bf16.mxu0 0
    %137 = vmatpush1.bf16.msra.mxu0 0
    %138 = vmatprep.subr.bf16.mxu0 0
    %139 = vmatpush1.bf16.msra.mxu0 0
    %140 = vmatprep.subr.bf16.mxu0 0
    %141 = vmatpush1.bf16.msra.mxu0 0
    %142 = vmatprep.subr.bf16.mxu0 0
    %143 = vmatpush1.bf16.msra.mxu0 0
    %144 = vmatprep.subr.bf16.mxu0 0
    %145 = vmatpush1.bf16.msra.mxu0 0
    %146 = vmatprep.subr.bf16.mxu0 0
    %147 = vmatpush1.bf16.msra.mxu0 0
    %148 = vmatprep.subr.bf16.mxu0 0
    %149 = vmatpush1.bf16.msra.mxu0 0
    %150 = vmatprep.subr.bf16.mxu0 0
    %151 = vmatpush1.bf16.msra.mxu0 0
    %152 = vmatprep.subr.bf16.mxu0 0
    %153 = vmatpush1.bf16.msra.mxu0 0
    %154 = vmatprep.subr.bf16.mxu0 0
    %155 = vmatpush1.bf16.msra.mxu0 0
    %156 = vmatprep.subr.bf16.mxu0 0
    %157 = vmatpush1.bf16.msra.mxu0 0
    %158 = vmatprep.subr.bf16.mxu0 0
    %159 = vmatpush1.bf16.msra.mxu0 0
    %160 = vmatprep.subr.bf16.mxu0 0
    %161 = vmatpush1.bf16.msra.mxu0 0
    %162 = vmatprep.mubr.bf16.mxu0 0
    %163 = vmatmul.mubr.bf16.gmra.mrb[0].mxu0 %v81
    %v164 = vpop.f32.mrb[0].mxu0
    %v165 = vadd.f32 0.0, %v164
    %v166 = vpop.f32.mrb[0].mxu0
    %v167 = vpop.f32.mrb[0].mxu0
    %v168 = vpop.f32.mrb[0].mxu0
    %169 = vdwg.mxu0
    %v171 = vsel %vm83, %v55, 0
    %173 = vmatprep.subr.bf16.mxu0 0
    %174 = vmatpush1.bf16.msra.mxu0 %v171
    %175 = vmatprep.subr.bf16.mxu0 0
    %176 = vmatpush1.bf16.msra.mxu0 0
    %177 = vmatprep.subr.bf16.mxu0 0
    %178 = vmatpush1.bf16.msra.mxu0 0
    %179 = vmatprep.subr.bf16.mxu0 0
    %180 = vmatpush1.bf16.msra.mxu0 0
    %181 = vmatprep.subr.bf16.mxu0 0
    %182 = vmatpush1.bf16.msra.mxu0 0
    %183 = vmatprep.subr.bf16.mxu0 0
    %184 = vmatpush1.bf16.msra.mxu0 0
    %185 = vmatprep.subr.bf16.mxu0 0
    %186 = vmatpush1.bf16.msra.mxu0 0
    %187 = vmatprep.subr.bf16.mxu0 0
    %188 = vmatpush1.bf16.msra.mxu0 0
    %189 = vmatprep.subr.bf16.mxu0 0
    %190 = vmatpush1.bf16.msra.mxu0 0
    %191 = vmatprep.subr.bf16.mxu0 0
    %192 = vmatpush1.bf16.msra.mxu0 0
    %193 = vmatprep.subr.bf16.mxu0 0
    %194 = vmatpush1.bf16.msra.mxu0 0
    %195 = vmatprep.subr.bf16.mxu0 0
    %196 = vmatpush1.bf16.msra.mxu0 0
    %197 = vmatprep.subr.bf16.mxu0 0
    %198 = vmatpush1.bf16.msra.mxu0 0
    %199 = vmatprep.subr.bf16.mxu0 0
    %200 = vmatpush1.bf16.msra.mxu0 0
    %201 = vmatprep.subr.bf16.mxu0 0
    %202 = vmatpush1.bf16.msra.mxu0 0
    %203 = vmatprep.subr.bf16.mxu0 0
    %204 = vmatpush1.bf16.msra.mxu0 0
    %205 = vmatprep.mubr.bf16.mxu0 0
    %206 = vmatmul.mubr.bf16.gmra.mrb[0].mxu0 %v81
    %v207 = vpop.f32.mrb[0].mxu0
    %v208 = vadd.f32 0.0, %v207
    %v209 = vpop.f32.mrb[0].mxu0
    %v210 = vpop.f32.mrb[0].mxu0
    %v211 = vpop.f32.mrb[0].mxu0
    %212 = vdwg.mxu0
    %v214 = vsel %vm83, %v56, 0
    %216 = vmatprep.subr.bf16.mxu0 0
    %217 = vmatpush1.bf16.msra.mxu0 %v214
    %218 = vmatprep.subr.bf16.mxu0 0
    %219 = vmatpush1.bf16.msra.mxu0 0
    %220 = vmatprep.subr.bf16.mxu0 0
    %221 = vmatpush1.bf16.msra.mxu0 0
    %222 = vmatprep.subr.bf16.mxu0 0
    %223 = vmatpush1.bf16.msra.mxu0 0
    %224 = vmatprep.subr.bf16.mxu0 0
    %225 = vmatpush1.bf16.msra.mxu0 0
    %226 = vmatprep.subr.bf16.mxu0 0
    %227 = vmatpush1.bf16.msra.mxu0 0
    %228 = vmatprep.subr.bf16.mxu0 0
    %229 = vmatpush1.bf16.msra.mxu0 0
    %230 = vmatprep.subr.bf16.mxu0 0
    %231 = vmatpush1.bf16.msra.mxu0 0
    %232 = vmatprep.subr.bf16.mxu0 0
    %233 = vmatpush1.bf16.msra.mxu0 0
    %234 = vmatprep.subr.bf16.mxu0 0
    %235 = vmatpush1.bf16.msra.mxu0 0
    %236 = vmatprep.subr.bf16.mxu0 0
    %237 = vmatpush1.bf16.msra.mxu0 0
    %238 = vmatprep.subr.bf16.mxu0 0
    %239 = vmatpush1.bf16.msra.mxu0 0
    %240 = vmatprep.subr.bf16.mxu0 0
    %241 = vmatpush1.bf16.msra.mxu0 0
    %242 = vmatprep.subr.bf16.mxu0 0
    %243 = vmatpush1.bf16.msra.mxu0 0
    %244 = vmatprep.subr.bf16.mxu0 0
    %245 = vmatpush1.bf16.msra.mxu0 0
    %246 = vmatprep.subr.bf16.mxu0 0
    %247 = vmatpush1.bf16.msra.mxu0 0
    %248 = vmatprep.mubr.bf16.mxu0 0
    %249 = vmatmul.mubr.bf16.gmra.mrb[0].mxu0 %v81
    %v250 = vpop.f32.mrb[0].mxu0
    %v251 = vadd.f32 0.0, %v250
    %v252 = vpop.f32.mrb[0].mxu0
    %v253 = vpop.f32.mrb[0].mxu0
    %v254 = vpop.f32.mrb[0].mxu0
    %255 = vdwg.mxu0
    %v257 = vsel %vm83, %v57, 0
    %259 = vmatprep.subr.bf16.mxu0 0
    %260 = vmatpush1.bf16.msra.mxu0 %v257
    %261 = vmatprep.subr.bf16.mxu0 0
    %262 = vmatpush1.bf16.msra.mxu0 0
    %263 = vmatprep.subr.bf16.mxu0 0
    %264 = vmatpush1.bf16.msra.mxu0 0
    %265 = vmatprep.subr.bf16.mxu0 0
    %266 = vmatpush1.bf16.msra.mxu0 0
    %267 = vmatprep.subr.bf16.mxu0 0
    %268 = vmatpush1.bf16.msra.mxu0 0
    %269 = vmatprep.subr.bf16.mxu0 0
    %270 = vmatpush1.bf16.msra.mxu0 0
    %271 = vmatprep.subr.bf16.mxu0 0
    %272 = vmatpush1.bf16.msra.mxu0 0
    %273 = vmatprep.subr.bf16.mxu0 0
    %274 = vmatpush1.bf16.msra.mxu0 0
    %275 = vmatprep.subr.bf16.mxu0 0
    %276 = vmatpush1.bf16.msra.mxu0 0
    %277 = vmatprep.subr.bf16.mxu0 0
    %278 = vmatpush1.bf16.msra.mxu0 0
    %279 = vmatprep.subr.bf16.mxu0 0
    %280 = vmatpush1.bf16.msra.mxu0 0
    %281 = vmatprep.subr.bf16.mxu0 0
    %282 = vmatpush1.bf16.msra.mxu0 0
    %283 = vmatprep.subr.bf16.mxu0 0
    %284 = vmatpush1.bf16.msra.mxu0 0
    %285 = vmatprep.subr.bf16.mxu0 0
    %286 = vmatpush1.bf16.msra.mxu0 0
    %287 = vmatprep.subr.bf16.mxu0 0
    %288 = vmatpush1.bf16.msra.mxu0 0
    %289 = vmatprep.subr.bf16.mxu0 0
    %290 = vmatpush1.bf16.msra.mxu0 0
    %291 = vmatprep.mubr.bf16.mxu0 0
    %292 = vmatmul.mubr.bf16.gmra.mrb[0].mxu0 %v81
    %v293 = vpop.f32.mrb[0].mxu0
    %v294 = vadd.f32 0.0, %v293
    %v295 = vpop.f32.mrb[0].mxu0
    %v296 = vpop.f32.mrb[0].mxu0
    %v297 = vpop.f32.mrb[0].mxu0
    %298 = vdwg.mxu0
    %v300 = vsel %vm83, %v58, 0
    %302 = vmatprep.subr.bf16.mxu0 0
    %303 = vmatpush1.bf16.msra.mxu0 %v300
    %304 = vmatprep.subr.bf16.mxu0 0
    %305 = vmatpush1.bf16.msra.mxu0 0
    %306 = vmatprep.subr.bf16.mxu0 0
    %307 = vmatpush1.bf16.msra.mxu0 0
    %308 = vmatprep.subr.bf16.mxu0 0
    %309 = vmatpush1.bf16.msra.mxu0 0
    %310 = vmatprep.subr.bf16.mxu0 0
    %311 = vmatpush1.bf16.msra.mxu0 0
    %312 = vmatprep.subr.bf16.mxu0 0
    %313 = vmatpush1.bf16.msra.mxu0 0
    %314 = vmatprep.subr.bf16.mxu0 0
    %315 = vmatpush1.bf16.msra.mxu0 0
    %316 = vmatprep.subr.bf16.mxu0 0
    %317 = vmatpush1.bf16.msra.mxu0 0
    %318 = vmatprep.subr.bf16.mxu0 0
    %319 = vmatpush1.bf16.msra.mxu0 0
    %320 = vmatprep.subr.bf16.mxu0 0
    %321 = vmatpush1.bf16.msra.mxu0 0
    %322 = vmatprep.subr.bf16.mxu0 0
    %323 = vmatpush1.bf16.msra.mxu0 0
    %324 = vmatprep.subr.bf16.mxu0 0
    %325 = vmatpush1.bf16.msra.mxu0 0
    %326 = vmatprep.subr.bf16.mxu0 0
    %327 = vmatpush1.bf16.msra.mxu0 0
    %328 = vmatprep.subr.bf16.mxu0 0
    %329 = vmatpush1.bf16.msra.mxu0 0
    %330 = vmatprep.subr.bf16.mxu0 0
    %331 = vmatpush1.bf16.msra.mxu0 0
    %332 = vmatprep.subr.bf16.mxu0 0
    %333 = vmatpush1.bf16.msra.mxu0 0
    %334 = vmatprep.mubr.bf16.mxu0 0
    %335 = vmatmul.mubr.bf16.gmra.mrb[0].mxu0 %v81
    %v336 = vpop.f32.mrb[0].mxu0
    %v337 = vadd.f32 0.0, %v336
    %v338 = vpop.f32.mrb[0].mxu0
    %v339 = vpop.f32.mrb[0].mxu0
    %v340 = vpop.f32.mrb[0].mxu0
    %341 = vdwg.mxu0
    %v343 = vsel %vm83, %v59, 0
    %345 = vmatprep.subr.bf16.mxu0 0
    %346 = vmatpush1.bf16.msra.mxu0 %v343
    %347 = vmatprep.subr.bf16.mxu0 0
    %348 = vmatpush1.bf16.msra.mxu0 0
    %349 = vmatprep.subr.bf16.mxu0 0
    %350 = vmatpush1.bf16.msra.mxu0 0
    %351 = vmatprep.subr.bf16.mxu0 0
    %352 = vmatpush1.bf16.msra.mxu0 0
    %353 = vmatprep.subr.bf16.mxu0 0
    %354 = vmatpush1.bf16.msra.mxu0 0
    %355 = vmatprep.subr.bf16.mxu0 0
    %356 = vmatpush1.bf16.msra.mxu0 0
    %357 = vmatprep.subr.bf16.mxu0 0
    %358 = vmatpush1.bf16.msra.mxu0 0
    %359 = vmatprep.subr.bf16.mxu0 0
    %360 = vmatpush1.bf16.msra.mxu0 0
    %361 = vmatprep.subr.bf16.mxu0 0
    %362 = vmatpush1.bf16.msra.mxu0 0
    %363 = vmatprep.subr.bf16.mxu0 0
    %364 = vmatpush1.bf16.msra.mxu0 0
    %365 = vmatprep.subr.bf16.mxu0 0
    %366 = vmatpush1.bf16.msra.mxu0 0
    %367 = vmatprep.subr.bf16.mxu0 0
    %368 = vmatpush1.bf16.msra.mxu0 0
    %369 = vmatprep.subr.bf16.mxu0 0
    %370 = vmatpush1.bf16.msra.mxu0 0
    %371 = vmatprep.subr.bf16.mxu0 0
    %372 = vmatpush1.bf16.msra.mxu0 0
    %373 = vmatprep.subr.bf16.mxu0 0
    %374 = vmatpush1.bf16.msra.mxu0 0
    %375 = vmatprep.subr.bf16.mxu0 0
    %376 = vmatpush1.bf16.msra.mxu0 0
    %377 = vmatprep.mubr.bf16.mxu0 0
    %378 = vmatmul.mubr.bf16.gmra.mrb[0].mxu0 %v81
    %v379 = vpop.f32.mrb[0].mxu0
    %v380 = vadd.f32 0.0, %v379
    %v381 = vpop.f32.mrb[0].mxu0
    %v382 = vpop.f32.mrb[0].mxu0
    %v383 = vpop.f32.mrb[0].mxu0
    %384 = vdwg.mxu0
    %v386 = vsel %vm83, %v60, 0
    %388 = vmatprep.subr.bf16.mxu0 0
    %389 = vmatpush1.bf16.msra.mxu0 %v386
    %390 = vmatprep.subr.bf16.mxu0 0
    %391 = vmatpush1.bf16.msra.mxu0 0
    %392 = vmatprep.subr.bf16.mxu0 0
    %393 = vmatpush1.bf16.msra.mxu0 0
    %394 = vmatprep.subr.bf16.mxu0 0
    %395 = vmatpush1.bf16.msra.mxu0 0
    %396 = vmatprep.subr.bf16.mxu0 0
    %397 = vmatpush1.bf16.msra.mxu0 0
    %398 = vmatprep.subr.bf16.mxu0 0
    %399 = vmatpush1.bf16.msra.mxu0 0
    %400 = vmatprep.subr.bf16.mxu0 0
    %401 = vmatpush1.bf16.msra.mxu0 0
    %402 = vmatprep.subr.bf16.mxu0 0
    %403 = vmatpush1.bf16.msra.mxu0 0
    %404 = vmatprep.subr.bf16.mxu0 0
    %405 = vmatpush1.bf16.msra.mxu0 0
    %406 = vmatprep.subr.bf16.mxu0 0
    %407 = vmatpush1.bf16.msra.mxu0 0
    %408 = vmatprep.subr.bf16.mxu0 0
    %409 = vmatpush1.bf16.msra.mxu0 0
    %410 = vmatprep.subr.bf16.mxu0 0
    %411 = vmatpush1.bf16.msra.mxu0 0
    %412 = vmatprep.subr.bf16.mxu0 0
    %413 = vmatpush1.bf16.msra.mxu0 0
    %414 = vmatprep.subr.bf16.mxu0 0
    %415 = vmatpush1.bf16.msra.mxu0 0
    %416 = vmatprep.subr.bf16.mxu0 0
    %417 = vmatpush1.bf16.msra.mxu0 0
    %418 = vmatprep.subr.bf16.mxu0 0
    %419 = vmatpush1.bf16.msra.mxu0 0
    %420 = vmatprep.mubr.bf16.mxu0 0
    %421 = vmatmul.mubr.bf16.gmra.mrb[0].mxu0 %v81
    %v422 = vpop.f32.mrb[0].mxu0
    %v423 = vadd.f32 0.0, %v422
    %v424 = vpop.f32.mrb[0].mxu0
    %v425 = vpop.f32.mrb[0].mxu0
    %v426 = vpop.f32.mrb[0].mxu0
    %427 = vdwg.mxu0
    %v428 = vmul.f32 %v61, 0.05
    %v429 = vmul.f32 %v62, 0.05
    %v430 = vmul.f32 %v63, 0.05
    %v431 = vmul.f32 %v64, 0.05
    %v432 = vmul.f32 %v65, 0.05
    %v433 = vmul.f32 %v66, 0.05
    %v434 = vmul.f32 %v67, 0.05
    %v435 = vmul.f32 %v68, 0.05
    %v436 = vmul.f32 %v122, 0.95
    %v437 = vmul.f32 %v165, 0.95
    %v438 = vmul.f32 %v208, 0.95
    %v439 = vmul.f32 %v251, 0.95
    %v440 = vmul.f32 %v294, 0.95
    %v441 = vmul.f32 %v337, 0.95
    %v442 = vmul.f32 %v380, 0.95
    %v443 = vmul.f32 %v423, 0.95
    %v444 = vadd.f32 %v428, %v436
    %v445 = vadd.f32 %v429, %v437
    %v446 = vadd.f32 %v430, %v438
    %v447 = vadd.f32 %v431, %v439
    %v448 = vadd.f32 %v432, %v440
    %v449 = vadd.f32 %v433, %v441
    %v450 = vadd.f32 %v434, %v442
    %v451 = vadd.f32 %v435, %v443
    %v452 = vpack.c.bf16 %v444, %v444
    %v453 = vpack.c.bf16 %v445, %v445
    %v454 = vpack.c.bf16 %v446, %v446
    %v455 = vpack.c.bf16 %v447, %v447
    %v456 = vpack.c.bf16 %v448, %v448
    %v457 = vpack.c.bf16 %v449, %v449
    %v458 = vpack.c.bf16 %v450, %v450
    %v459 = vpack.c.bf16 %v451, %v451
    %s460 = scalar_lea.vmem [#allocation8], 32
    %461 = vst [vmem:[%s460] sm:$0xf] %v452
    %462 = vst [vmem:[%s460 + $0x4] sm:$0xf] %v453
    %463 = vst [vmem:[%s460 + $0x8] sm:$0xf] %v454
    %464 = vst [vmem:[%s460 + $0xc] sm:$0xf] %v455
    %465 = vst [vmem:[%s460 + $0x10] sm:$0xf] %v456
    %466 = vst [vmem:[%s460 + $0x14] sm:$0xf] %v457
    %467 = vst [vmem:[%s460 + $0x18] sm:$0xf] %v458
    %468 = vst [vmem:[%s460 + $0x1c] sm:$0xf] %v459
    %v470 = vsel %vm83, %v452, 0
    %472 = vmatprep.subr.bf16.mxu0 0
    %473 = vmatpush1.bf16.msra.mxu0 %v470
    %474 = vmatprep.subr.bf16.mxu0 0
    %475 = vmatpush1.bf16.msra.mxu0 0
    %476 = vmatprep.subr.bf16.mxu0 0
    %477 = vmatpush1.bf16.msra.mxu0 0
    %478 = vmatprep.subr.bf16.mxu0 0
    %479 = vmatpush1.bf16.msra.mxu0 0
    %480 = vmatprep.subr.bf16.mxu0 0
    %481 = vmatpush1.bf16.msra.mxu0 0
    %482 = vmatprep.subr.bf16.mxu0 0
    %483 = vmatpush1.bf16.msra.mxu0 0
    %484 = vmatprep.subr.bf16.mxu0 0
    %485 = vmatpush1.bf16.msra.mxu0 0
    %486 = vmatprep.subr.bf16.mxu0 0
    %487 = vmatpush1.bf16.msra.mxu0 0
    %488 = vmatprep.subr.bf16.mxu0 0
    %489 = vmatpush1.bf16.msra.mxu0 0
    %490 = vmatprep.subr.bf16.mxu0 0
    %491 = vmatpush1.bf16.msra.mxu0 0
    %492 = vmatprep.subr.bf16.mxu0 0
    %493 = vmatpush1.bf16.msra.mxu0 0
    %494 = vmatprep.subr.bf16.mxu0 0
    %495 = vmatpush1.bf16.msra.mxu0 0
    %496 = vmatprep.subr.bf16.mxu0 0
    %497 = vmatpush1.bf16.msra.mxu0 0
    %498 = vmatprep.subr.bf16.mxu0 0
    %499 = vmatpush1.bf16.msra.mxu0 0
    %500 = vmatprep.subr.bf16.mxu0 0
    %501 = vmatpush1.bf16.msra.mxu0 0
    %502 = vmatprep.subr.bf16.mxu0 0
    %503 = vmatpush1.bf16.msra.mxu0 0
    %504 = vmatprep.mubr.bf16.mxu0 0
    %505 = vmatmul.mubr.bf16.gmra.mrb[0].mxu0 %v81
    %v506 = vpop.f32.mrb[0].mxu0
    %v507 = vadd.f32 0.0, %v506
    %v508 = vpop.f32.mrb[0].mxu0
    %v509 = vpop.f32.mrb[0].mxu0
    %v510 = vpop.f32.mrb[0].mxu0
    %511 = vdwg.mxu0
    %v513 = vsel %vm83, %v453, 0
    %515 = vmatprep.subr.bf16.mxu0 0
    %516 = vmatpush1.bf16.msra.mxu0 %v513
    %517 = vmatprep.subr.bf16.mxu0 0
    %518 = vmatpush1.bf16.msra.mxu0 0
    %519 = vmatprep.subr.bf16.mxu0 0
    %520 = vmatpush1.bf16.msra.mxu0 0
    %521 = vmatprep.subr.bf16.mxu0 0
    %522 = vmatpush1.bf16.msra.mxu0 0
    %523 = vmatprep.subr.bf16.mxu0 0
    %524 = vmatpush1.bf16.msra.mxu0 0
    %525 = vmatprep.subr.bf16.mxu0 0
    %526 = vmatpush1.bf16.msra.mxu0 0
    %527 = vmatprep.subr.bf16.mxu0 0
    %528 = vmatpush1.bf16.msra.mxu0 0
    %529 = vmatprep.subr.bf16.mxu0 0
    %530 = vmatpush1.bf16.msra.mxu0 0
    %531 = vmatprep.subr.bf16.mxu0 0
    %532 = vmatpush1.bf16.msra.mxu0 0
    %533 = vmatprep.subr.bf16.mxu0 0
    %534 = vmatpush1.bf16.msra.mxu0 0
    %535 = vmatprep.subr.bf16.mxu0 0
    %536 = vmatpush1.bf16.msra.mxu0 0
    %537 = vmatprep.subr.bf16.mxu0 0
    %538 = vmatpush1.bf16.msra.mxu0 0
    %539 = vmatprep.subr.bf16.mxu0 0
    %540 = vmatpush1.bf16.msra.mxu0 0
    %541 = vmatprep.subr.bf16.mxu0 0
    %542 = vmatpush1.bf16.msra.mxu0 0
    %543 = vmatprep.subr.bf16.mxu0 0
    %544 = vmatpush1.bf16.msra.mxu0 0
    %545 = vmatprep.subr.bf16.mxu0 0
    %546 = vmatpush1.bf16.msra.mxu0 0
    %547 = vmatprep.mubr.bf16.mxu0 0
    %548 = vmatmul.mubr.bf16.gmra.mrb[0].mxu0 %v81
    %v549 = vpop.f32.mrb[0].mxu0
    %v550 = vadd.f32 0.0, %v549
    %v551 = vpop.f32.mrb[0].mxu0
    %v552 = vpop.f32.mrb[0].mxu0
    %v553 = vpop.f32.mrb[0].mxu0
    %554 = vdwg.mxu0
    %v556 = vsel %vm83, %v454, 0
    %558 = vmatprep.subr.bf16.mxu0 0
    %559 = vmatpush1.bf16.msra.mxu0 %v556
    %560 = vmatprep.subr.bf16.mxu0 0
    %561 = vmatpush1.bf16.msra.mxu0 0
    %562 = vmatprep.subr.bf16.mxu0 0
    %563 = vmatpush1.bf16.msra.mxu0 0
    %564 = vmatprep.subr.bf16.mxu0 0
    %565 = vmatpush1.bf16.msra.mxu0 0
    %566 = vmatprep.subr.bf16.mxu0 0
    %567 = vmatpush1.bf16.msra.mxu0 0
    %568 = vmatprep.subr.bf16.mxu0 0
    %569 = vmatpush1.bf16.msra.mxu0 0
    %570 = vmatprep.subr.bf16.mxu0 0
    %571 = vmatpush1.bf16.msra.mxu0 0
    %572 = vmatprep.subr.bf16.mxu0 0
    %573 = vmatpush1.bf16.msra.mxu0 0
    %574 = vmatprep.subr.bf16.mxu0 0
    %575 = vmatpush1.bf16.msra.mxu0 0
    %576 = vmatprep.subr.bf16.mxu0 0
    %577 = vmatpush1.bf16.msra.mxu0 0
    %578 = vmatprep.subr.bf16.mxu0 0
    %579 = vmatpush1.bf16.msra.mxu0 0
    %580 = vmatprep.subr.bf16.mxu0 0
    %581 = vmatpush1.bf16.msra.mxu0 0
    %582 = vmatprep.subr.bf16.mxu0 0
    %583 = vmatpush1.bf16.msra.mxu0 0
    %584 = vmatprep.subr.bf16.mxu0 0
    %585 = vmatpush1.bf16.msra.mxu0 0
    %586 = vmatprep.subr.bf16.mxu0 0
    %587 = vmatpush1.bf16.msra.mxu0 0
    %588 = vmatprep.subr.bf16.mxu0 0
    %589 = vmatpush1.bf16.msra.mxu0 0
    %590 = vmatprep.mubr.bf16.mxu0 0
    %591 = vmatmul.mubr.bf16.gmra.mrb[0].mxu0 %v81
    %v592 = vpop.f32.mrb[0].mxu0
    %v593 = vadd.f32 0.0, %v592
    %v594 = vpop.f32.mrb[0].mxu0
    %v595 = vpop.f32.mrb[0].mxu0
    %v596 = vpop.f32.mrb[0].mxu0
    %597 = vdwg.mxu0
    %v599 = vsel %vm83, %v455, 0
    %601 = vmatprep.subr.bf16.mxu0 0
    %602 = vmatpush1.bf16.msra.mxu0 %v599
    %603 = vmatprep.subr.bf16.mxu0 0
    %604 = vmatpush1.bf16.msra.mxu0 0
    %605 = vmatprep.subr.bf16.mxu0 0
    %606 = vmatpush1.bf16.msra.mxu0 0
    %607 = vmatprep.subr.bf16.mxu0 0
    %608 = vmatpush1.bf16.msra.mxu0 0
    %609 = vmatprep.subr.bf16.mxu0 0
    %610 = vmatpush1.bf16.msra.mxu0 0
    %611 = vmatprep.subr.bf16.mxu0 0
    %612 = vmatpush1.bf16.msra.mxu0 0
    %613 = vmatprep.subr.bf16.mxu0 0
    %614 = vmatpush1.bf16.msra.mxu0 0
    %615 = vmatprep.subr.bf16.mxu0 0
    %616 = vmatpush1.bf16.msra.mxu0 0
    %617 = vmatprep.subr.bf16.mxu0 0
    %618 = vmatpush1.bf16.msra.mxu0 0
    %619 = vmatprep.subr.bf16.mxu0 0
    %620 = vmatpush1.bf16.msra.mxu0 0
    %621 = vmatprep.subr.bf16.mxu0 0
    %622 = vmatpush1.bf16.msra.mxu0 0
    %623 = vmatprep.subr.bf16.mxu0 0
    %624 = vmatpush1.bf16.msra.mxu0 0
    %625 = vmatprep.subr.bf16.mxu0 0
    %626 = vmatpush1.bf16.msra.mxu0 0
    %627 = vmatprep.subr.bf16.mxu0 0
    %628 = vmatpush1.bf16.msra.mxu0 0
    %629 = vmatprep.subr.bf16.mxu0 0
    %630 = vmatpush1.bf16.msra.mxu0 0
    %631 = vmatprep.subr.bf16.mxu0 0
    %632 = vmatpush1.bf16.msra.mxu0 0
    %633 = vmatprep.mubr.bf16.mxu0 0
    %634 = vmatmul.mubr.bf16.gmra.mrb[0].mxu0 %v81
    %v635 = vpop.f32.mrb[0].mxu0
    %v636 = vadd.f32 0.0, %v635
    %v637 = vpop.f32.mrb[0].mxu0
    %v638 = vpop.f32.mrb[0].mxu0
    %v639 = vpop.f32.mrb[0].mxu0
    %640 = vdwg.mxu0
    %v642 = vsel %vm83, %v456, 0
    %644 = vmatprep.subr.bf16.mxu0 0
    %645 = vmatpush1.bf16.msra.mxu0 %v642
    %646 = vmatprep.subr.bf16.mxu0 0
    %647 = vmatpush1.bf16.msra.mxu0 0
    %648 = vmatprep.subr.bf16.mxu0 0
    %649 = vmatpush1.bf16.msra.mxu0 0
    %650 = vmatprep.subr.bf16.mxu0 0
    %651 = vmatpush1.bf16.msra.mxu0 0
    %652 = vmatprep.subr.bf16.mxu0 0
    %653 = vmatpush1.bf16.msra.mxu0 0
    %654 = vmatprep.subr.bf16.mxu0 0
    %655 = vmatpush1.bf16.msra.mxu0 0
    %656 = vmatprep.subr.bf16.mxu0 0
    %657 = vmatpush1.bf16.msra.mxu0 0
    %658 = vmatprep.subr.bf16.mxu0 0
    %659 = vmatpush1.bf16.msra.mxu0 0
    %660 = vmatprep.subr.bf16.mxu0 0
    %661 = vmatpush1.bf16.msra.mxu0 0
    %662 = vmatprep.subr.bf16.mxu0 0
    %663 = vmatpush1.bf16.msra.mxu0 0
    %664 = vmatprep.subr.bf16.mxu0 0
    %665 = vmatpush1.bf16.msra.mxu0 0
    %666 = vmatprep.subr.bf16.mxu0 0
    %667 = vmatpush1.bf16.msra.mxu0 0
    %668 = vmatprep.subr.bf16.mxu0 0
    %669 = vmatpush1.bf16.msra.mxu0 0
    %670 = vmatprep.subr.bf16.mxu0 0
    %671 = vmatpush1.bf16.msra.mxu0 0
    %672 = vmatprep.subr.bf16.mxu0 0
    %673 = vmatpush1.bf16.msra.mxu0 0
    %674 = vmatprep.subr.bf16.mxu0 0
    %675 = vmatpush1.bf16.msra.mxu0 0
    %676 = vmatprep.mubr.bf16.mxu0 0
    %677 = vmatmul.mubr.bf16.gmra.mrb[0].mxu0 %v81
    %v678 = vpop.f32.mrb[0].mxu0
    %v679 = vadd.f32 0.0, %v678
    %v680 = vpop.f32.mrb[0].mxu0
    %v681 = vpop.f32.mrb[0].mxu0
    %v682 = vpop.f32.mrb[0].mxu0
    %683 = vdwg.mxu0
    %v685 = vsel %vm83, %v457, 0
    %687 = vmatprep.subr.bf16.mxu0 0
    %688 = vmatpush1.bf16.msra.mxu0 %v685
    %689 = vmatprep.subr.bf16.mxu0 0
    %690 = vmatpush1.bf16.msra.mxu0 0
    %691 = vmatprep.subr.bf16.mxu0 0
    %692 = vmatpush1.bf16.msra.mxu0 0
    %693 = vmatprep.subr.bf16.mxu0 0
    %694 = vmatpush1.bf16.msra.mxu0 0
    %695 = vmatprep.subr.bf16.mxu0 0
    %696 = vmatpush1.bf16.msra.mxu0 0
    %697 = vmatprep.subr.bf16.mxu0 0
    %698 = vmatpush1.bf16.msra.mxu0 0
    %699 = vmatprep.subr.bf16.mxu0 0
    %700 = vmatpush1.bf16.msra.mxu0 0
    %701 = vmatprep.subr.bf16.mxu0 0
    %702 = vmatpush1.bf16.msra.mxu0 0
    %703 = vmatprep.subr.bf16.mxu0 0
    %704 = vmatpush1.bf16.msra.mxu0 0
    %705 = vmatprep.subr.bf16.mxu0 0
    %706 = vmatpush1.bf16.msra.mxu0 0
    %707 = vmatprep.subr.bf16.mxu0 0
    %708 = vmatpush1.bf16.msra.mxu0 0
    %709 = vmatprep.subr.bf16.mxu0 0
    %710 = vmatpush1.bf16.msra.mxu0 0
    %711 = vmatprep.subr.bf16.mxu0 0
    %712 = vmatpush1.bf16.msra.mxu0 0
    %713 = vmatprep.subr.bf16.mxu0 0
    %714 = vmatpush1.bf16.msra.mxu0 0
    %715 = vmatprep.subr.bf16.mxu0 0
    %716 = vmatpush1.bf16.msra.mxu0 0
    %717 = vmatprep.subr.bf16.mxu0 0
    %718 = vmatpush1.bf16.msra.mxu0 0
    %719 = vmatprep.mubr.bf16.mxu0 0
    %720 = vmatmul.mubr.bf16.gmra.mrb[0].mxu0 %v81
    %v721 = vpop.f32.mrb[0].mxu0
    %v722 = vadd.f32 0.0, %v721
    %v723 = vpop.f32.mrb[0].mxu0
    %v724 = vpop.f32.mrb[0].mxu0
    %v725 = vpop.f32.mrb[0].mxu0
    %726 = vdwg.mxu0
    %v728 = vsel %vm83, %v458, 0
    %730 = vmatprep.subr.bf16.mxu0 0
    %731 = vmatpush1.bf16.msra.mxu0 %v728
    %732 = vmatprep.subr.bf16.mxu0 0
    %733 = vmatpush1.bf16.msra.mxu0 0
    %734 = vmatprep.subr.bf16.mxu0 0
    %735 = vmatpush1.bf16.msra.mxu0 0
    %736 = vmatprep.subr.bf16.mxu0 0
    %737 = vmatpush1.bf16.msra.mxu0 0
    %738 = vmatprep.subr.bf16.mxu0 0
    %739 = vmatpush1.bf16.msra.mxu0 0
    %740 = vmatprep.subr.bf16.mxu0 0
    %741 = vmatpush1.bf16.msra.mxu0 0
    %742 = vmatprep.subr.bf16.mxu0 0
    %743 = vmatpush1.bf16.msra.mxu0 0
    %744 = vmatprep.subr.bf16.mxu0 0
    %745 = vmatpush1.bf16.msra.mxu0 0
    %746 = vmatprep.subr.bf16.mxu0 0
    %747 = vmatpush1.bf16.msra.mxu0 0
    %748 = vmatprep.subr.bf16.mxu0 0
    %749 = vmatpush1.bf16.msra.mxu0 0
    %750 = vmatprep.subr.bf16.mxu0 0
    %751 = vmatpush1.bf16.msra.mxu0 0
    %752 = vmatprep.subr.bf16.mxu0 0
    %753 = vmatpush1.bf16.msra.mxu0 0
    %754 = vmatprep.subr.bf16.mxu0 0
    %755 = vmatpush1.bf16.msra.mxu0 0
    %756 = vmatprep.subr.bf16.mxu0 0
    %757 = vmatpush1.bf16.msra.mxu0 0
    %758 = vmatprep.subr.bf16.mxu0 0
    %759 = vmatpush1.bf16.msra.mxu0 0
    %760 = vmatprep.subr.bf16.mxu0 0
    %761 = vmatpush1.bf16.msra.mxu0 0
    %762 = vmatprep.mubr.bf16.mxu0 0
    %763 = vmatmul.mubr.bf16.gmra.mrb[0].mxu0 %v81
    %v764 = vpop.f32.mrb[0].mxu0
    %v765 = vadd.f32 0.0, %v764
    %v766 = vpop.f32.mrb[0].mxu0
    %v767 = vpop.f32.mrb[0].mxu0
    %v768 = vpop.f32.mrb[0].mxu0
    %769 = vdwg.mxu0
    %v771 = vsel %vm83, %v459, 0
    %773 = vmatprep.subr.bf16.mxu0 0
    %774 = vmatpush1.bf16.msra.mxu0 %v771
    %775 = vmatprep.subr.bf16.mxu0 0
    %776 = vmatpush1.bf16.msra.mxu0 0
    %777 = vmatprep.subr.bf16.mxu0 0
    %778 = vmatpush1.bf16.msra.mxu0 0
    %779 = vmatprep.subr.bf16.mxu0 0
    %780 = vmatpush1.bf16.msra.mxu0 0
    %781 = vmatprep.subr.bf16.mxu0 0
    %782 = vmatpush1.bf16.msra.mxu0 0
    %783 = vmatprep.subr.bf16.mxu0 0
    %784 = vmatpush1.bf16.msra.mxu0 0
    %785 = vmatprep.subr.bf16.mxu0 0
    %786 = vmatpush1.bf16.msra.mxu0 0
    %787 = vmatprep.subr.bf16.mxu0 0
    %788 = vmatpush1.bf16.msra.mxu0 0
    %789 = vmatprep.subr.bf16.mxu0 0
    %790 = vmatpush1.bf16.msra.mxu0 0
    %791 = vmatprep.subr.bf16.mxu0 0
    %792 = vmatpush1.bf16.msra.mxu0 0
    %793 = vmatprep.subr.bf16.mxu0 0
    %794 = vmatpush1.bf16.msra.mxu0 0
    %795 = vmatprep.subr.bf16.mxu0 0
    %796 = vmatpush1.bf16.msra.mxu0 0
    %797 = vmatprep.subr.bf16.mxu0 0
    %798 = vmatpush1.bf16.msra.mxu0 0
    %799 = vmatprep.subr.bf16.mxu0 0
    %800 = vmatpush1.bf16.msra.mxu0 0
    %801 = vmatprep.subr.bf16.mxu0 0
    %802 = vmatpush1.bf16.msra.mxu0 0
    %803 = vmatprep.subr.bf16.mxu0 0
    %804 = vmatpush1.bf16.msra.mxu0 0
    %805 = vmatprep.mubr.bf16.mxu0 0
    %806 = vmatmul.mubr.bf16.gmra.mrb[0].mxu0 %v81
    %v807 = vpop.f32.mrb[0].mxu0
    %v808 = vadd.f32 0.0, %v807
    %v809 = vpop.f32.mrb[0].mxu0
    %v810 = vpop.f32.mrb[0].mxu0
    %v811 = vpop.f32.mrb[0].mxu0
    %812 = vdwg.mxu0
    %v813 = vmul.f32 %v507, 0.95
    %v814 = vmul.f32 %v550, 0.95
    %v815 = vmul.f32 %v593, 0.95
    %v816 = vmul.f32 %v636, 0.95
    %v817 = vmul.f32 %v679, 0.95
    %v818 = vmul.f32 %v722, 0.95
    %v819 = vmul.f32 %v765, 0.95
    %v820 = vmul.f32 %v808, 0.95
    %v821 = vadd.f32 %v428, %v813
    %v822 = vadd.f32 %v429, %v814
    %v823 = vadd.f32 %v430, %v815
    %v824 = vadd.f32 %v431, %v816
    %v825 = vadd.f32 %v432, %v817
    %v826 = vadd.f32 %v433, %v818
    %v827 = vadd.f32 %v434, %v819
    %v828 = vadd.f32 %v435, %v820
    %v829 = vpack.c.bf16 %v821, %v821
    %v830 = vpack.c.bf16 %v822, %v822
    %v831 = vpack.c.bf16 %v823, %v823
    %v832 = vpack.c.bf16 %v824, %v824
    %v833 = vpack.c.bf16 %v825, %v825
    %v834 = vpack.c.bf16 %v826, %v826
    %v835 = vpack.c.bf16 %v827, %v827
    %v836 = vpack.c.bf16 %v828, %v828
    %s837 = scalar_lea.vmem [#allocation8], 64
    %838 = vst [vmem:[%s837] sm:$0xf] %v829
    %839 = vst [vmem:[%s837 + $0x4] sm:$0xf] %v830
    %840 = vst [vmem:[%s837 + $0x8] sm:$0xf] %v831
    %841 = vst [vmem:[%s837 + $0xc] sm:$0xf] %v832
    %842 = vst [vmem:[%s837 + $0x10] sm:$0xf] %v833
    %843 = vst [vmem:[%s837 + $0x14] sm:$0xf] %v834
    %844 = vst [vmem:[%s837 + $0x18] sm:$0xf] %v835
    %845 = vst [vmem:[%s837 + $0x1c] sm:$0xf] %v836
    %v846 = vld [vmem:[#allocation7] sm:$0xff]
    %v847 = vpack.c.bf16 %v846, %v846
    %s848 = scalar_lea.vmem [#allocation8], 96
    %849 = vst [vmem:[%s848] sm:$0xf] %v53
    %850 = vst [vmem:[%s848 + $0x4] sm:$0xf] %v54
    %851 = vst [vmem:[%s848 + $0x8] sm:$0xf] %v55
    %852 = vst [vmem:[%s848 + $0xc] sm:$0xf] %v56
    %853 = vst [vmem:[%s848 + $0x10] sm:$0xf] %v57
    %854 = vst [vmem:[%s848 + $0x14] sm:$0xf] %v58
    %855 = vst [vmem:[%s848 + $0x18] sm:$0xf] %v59
    %856 = vst [vmem:[%s848 + $0x1c] sm:$0xf] %v60
    %v858 = vsel %vm79, %v847, 0
    %860 = vmatprep.subr.bf16.mxu0 0
    %861 = vmatpush1.bf16.msra.mxu0 %v85
    %862 = vmatprep.subr.bf16.mxu0 0
    %863 = vmatpush1.bf16.msra.mxu0 0
    %864 = vmatprep.subr.bf16.mxu0 0
    %865 = vmatpush1.bf16.msra.mxu0 0
    %866 = vmatprep.subr.bf16.mxu0 0
    %867 = vmatpush1.bf16.msra.mxu0 0
    %868 = vmatprep.subr.bf16.mxu0 0
    %869 = vmatpush1.bf16.msra.mxu0 0
    %870 = vmatprep.subr.bf16.mxu0 0
    %871 = vmatpush1.bf16.msra.mxu0 0
    %872 = vmatprep.subr.bf16.mxu0 0
    %873 = vmatpush1.bf16.msra.mxu0 0
    %874 = vmatprep.subr.bf16.mxu0 0
    %875 = vmatpush1.bf16.msra.mxu0 0
    %876 = vmatprep.subr.bf16.mxu0 0
    %877 = vmatpush1.bf16.msra.mxu0 0
    %878 = vmatprep.subr.bf16.mxu0 0
    %879 = vmatpush1.bf16.msra.mxu0 0
    %880 = vmatprep.subr.bf16.mxu0 0
    %881 = vmatpush1.bf16.msra.mxu0 0
    %882 = vmatprep.subr.bf16.mxu0 0
    %883 = vmatpush1.bf16.msra.mxu0 0
    %884 = vmatprep.subr.bf16.mxu0 0
    %885 = vmatpush1.bf16.msra.mxu0 0
    %886 = vmatprep.subr.bf16.mxu0 0
    %887 = vmatpush1.bf16.msra.mxu0 0
    %888 = vmatprep.subr.bf16.mxu0 0
    %889 = vmatpush1.bf16.msra.mxu0 0
    %890 = vmatprep.subr.bf16.mxu0 0
    %891 = vmatpush1.bf16.msra.mxu0 0
    %892 = vmatprep.mubr.bf16.mxu0 0
    %893 = vmatmul.mubr.bf16.gmra.mrb[0].mxu0 %v858
    %v894 = vpop.f32.mrb[0].mxu0
    %v895 = vadd.f32 0.0, %v894
    %v896 = vpop.f32.mrb[0].mxu0
    %v897 = vpop.f32.mrb[0].mxu0
    %v898 = vpop.f32.mrb[0].mxu0
    %899 = vdwg.mxu0
    %900 = vmatprep.subr.bf16.mxu0 0
    %901 = vmatpush1.bf16.msra.mxu0 %v128
    %902 = vmatprep.subr.bf16.mxu0 0
    %903 = vmatpush1.bf16.msra.mxu0 0
    %904 = vmatprep.subr.bf16.mxu0 0
    %905 = vmatpush1.bf16.msra.mxu0 0
    %906 = vmatprep.subr.bf16.mxu0 0
    %907 = vmatpush1.bf16.msra.mxu0 0
    %908 = vmatprep.subr.bf16.mxu0 0
    %909 = vmatpush1.bf16.msra.mxu0 0
    %910 = vmatprep.subr.bf16.mxu0 0
    %911 = vmatpush1.bf16.msra.mxu0 0
    %912 = vmatprep.subr.bf16.mxu0 0
    %913 = vmatpush1.bf16.msra.mxu0 0
    %914 = vmatprep.subr.bf16.mxu0 0
    %915 = vmatpush1.bf16.msra.mxu0 0
    %916 = vmatprep.subr.bf16.mxu0 0
    %917 = vmatpush1.bf16.msra.mxu0 0
    %918 = vmatprep.subr.bf16.mxu0 0
    %919 = vmatpush1.bf16.msra.mxu0 0
    %920 = vmatprep.subr.bf16.mxu0 0
    %921 = vmatpush1.bf16.msra.mxu0 0
    %922 = vmatprep.subr.bf16.mxu0 0
    %923 = vmatpush1.bf16.msra.mxu0 0
    %924 = vmatprep.subr.bf16.mxu0 0
    %925 = vmatpush1.bf16.msra.mxu0 0
    %926 = vmatprep.subr.bf16.mxu0 0
    %927 = vmatpush1.bf16.msra.mxu0 0
    %928 = vmatprep.subr.bf16.mxu0 0
    %929 = vmatpush1.bf16.msra.mxu0 0
    %930 = vmatprep.subr.bf16.mxu0 0
    %931 = vmatpush1.bf16.msra.mxu0 0
    %932 = vmatprep.mubr.bf16.mxu0 0
    %933 = vmatmul.mubr.bf16.gmra.mrb[0].mxu0 %v858
    %v934 = vpop.f32.mrb[0].mxu0
    %v935 = vadd.f32 0.0, %v934
    %v936 = vpop.f32.mrb[0].mxu0
    %v937 = vpop.f32.mrb[0].mxu0
    %v938 = vpop.f32.mrb[0].mxu0
    %939 = vdwg.mxu0
    %940 = vmatprep.subr.bf16.mxu0 0
    %941 = vmatpush1.bf16.msra.mxu0 %v171
    %942 = vmatprep.subr.bf16.mxu0 0
    %943 = vmatpush1.bf16.msra.mxu0 0
    %944 = vmatprep.subr.bf16.mxu0 0
    %945 = vmatpush1.bf16.msra.mxu0 0
    %946 = vmatprep.subr.bf16.mxu0 0
    %947 = vmatpush1.bf16.msra.mxu0 0
    %948 = vmatprep.subr.bf16.mxu0 0
    %949 = vmatpush1.bf16.msra.mxu0 0
    %950 = vmatprep.subr.bf16.mxu0 0
    %951 = vmatpush1.bf16.msra.mxu0 0
    %952 = vmatprep.subr.bf16.mxu0 0
    %953 = vmatpush1.bf16.msra.mxu0 0
    %954 = vmatprep.subr.bf16.mxu0 0
    %955 = vmatpush1.bf16.msra.mxu0 0
    %956 = vmatprep.subr.bf16.mxu0 0
    %957 = vmatpush1.bf16.msra.mxu0 0
    %958 = vmatprep.subr.bf16.mxu0 0
    %959 = vmatpush1.bf16.msra.mxu0 0
    %960 = vmatprep.subr.bf16.mxu0 0
    %961 = vmatpush1.bf16.msra.mxu0 0
    %962 = vmatprep.subr.bf16.mxu0 0
    %963 = vmatpush1.bf16.msra.mxu0 0
    %964 = vmatprep.subr.bf16.mxu0 0
    %965 = vmatpush1.bf16.msra.mxu0 0
    %966 = vmatprep.subr.bf16.mxu0 0
    %967 = vmatpush1.bf16.msra.mxu0 0
    %968 = vmatprep.subr.bf16.mxu0 0
    %969 = vmatpush1.bf16.msra.mxu0 0
    %970 = vmatprep.subr.bf16.mxu0 0
    %971 = vmatpush1.bf16.msra.mxu0 0
    %972 = vmatprep.mubr.bf16.mxu0 0
    %973 = vmatmul.mubr.bf16.gmra.mrb[0].mxu0 %v858
    %v974 = vpop.f32.mrb[0].mxu0
    %v975 = vadd.f32 0.0, %v974
    %v976 = vpop.f32.mrb[0].mxu0
    %v977 = vpop.f32.mrb[0].mxu0
    %v978 = vpop.f32.mrb[0].mxu0
    %979 = vdwg.mxu0
    %980 = vmatprep.subr.bf16.mxu0 0
    %981 = vmatpush1.bf16.msra.mxu0 %v214
    %982 = vmatprep.subr.bf16.mxu0 0
    %983 = vmatpush1.bf16.msra.mxu0 0
    %984 = vmatprep.subr.bf16.mxu0 0
    %985 = vmatpush1.bf16.msra.mxu0 0
    %986 = vmatprep.subr.bf16.mxu0 0
    %987 = vmatpush1.bf16.msra.mxu0 0
    %988 = vmatprep.subr.bf16.mxu0 0
    %989 = vmatpush1.bf16.msra.mxu0 0
    %990 = vmatprep.subr.bf16.mxu0 0
    %991 = vmatpush1.bf16.msra.mxu0 0
    %992 = vmatprep.subr.bf16.mxu0 0
    %993 = vmatpush1.bf16.msra.mxu0 0
    %994 = vmatprep.subr.bf16.mxu0 0
    %995 = vmatpush1.bf16.msra.mxu0 0
    %996 = vmatprep.subr.bf16.mxu0 0
    %997 = vmatpush1.bf16.msra.mxu0 0
    %998 = vmatprep.subr.bf16.mxu0 0
    %999 = vmatpush1.bf16.msra.mxu0 0
    %1000 = vmatprep.subr.bf16.mxu0 0
    %1001 = vmatpush1.bf16.msra.mxu0 0
    %1002 = vmatprep.subr.bf16.mxu0 0
    %1003 = vmatpush1.bf16.msra.mxu0 0
    %1004 = vmatprep.subr.bf16.mxu0 0
    %1005 = vmatpush1.bf16.msra.mxu0 0
    %1006 = vmatprep.subr.bf16.mxu0 0
    %1007 = vmatpush1.bf16.msra.mxu0 0
    %1008 = vmatprep.subr.bf16.mxu0 0
    %1009 = vmatpush1.bf16.msra.mxu0 0
    %1010 = vmatprep.subr.bf16.mxu0 0
    %1011 = vmatpush1.bf16.msra.mxu0 0
    %1012 = vmatprep.mubr.bf16.mxu0 0
    %1013 = vmatmul.mubr.bf16.gmra.mrb[0].mxu0 %v858
    %v1014 = vpop.f32.mrb[0].mxu0
    %v1015 = vadd.f32 0.0, %v1014
    %v1016 = vpop.f32.mrb[0].mxu0
    %v1017 = vpop.f32.mrb[0].mxu0
    %v1018 = vpop.f32.mrb[0].mxu0
    %1019 = vdwg.mxu0
    %1020 = vmatprep.subr.bf16.mxu0 0
    %1021 = vmatpush1.bf16.msra.mxu0 %v257
    %1022 = vmatprep.subr.bf16.mxu0 0
    %1023 = vmatpush1.bf16.msra.mxu0 0
    %1024 = vmatprep.subr.bf16.mxu0 0
    %1025 = vmatpush1.bf16.msra.mxu0 0
    %1026 = vmatprep.subr.bf16.mxu0 0
    %1027 = vmatpush1.bf16.msra.mxu0 0
    %1028 = vmatprep.subr.bf16.mxu0 0
    %1029 = vmatpush1.bf16.msra.mxu0 0
    %1030 = vmatprep.subr.bf16.mxu0 0
    %1031 = vmatpush1.bf16.msra.mxu0 0
    %1032 = vmatprep.subr.bf16.mxu0 0
    %1033 = vmatpush1.bf16.msra.mxu0 0
    %1034 = vmatprep.subr.bf16.mxu0 0
    %1035 = vmatpush1.bf16.msra.mxu0 0
    %1036 = vmatprep.subr.bf16.mxu0 0
    %1037 = vmatpush1.bf16.msra.mxu0 0
    %1038 = vmatprep.subr.bf16.mxu0 0
    %1039 = vmatpush1.bf16.msra.mxu0 0
    %1040 = vmatprep.subr.bf16.mxu0 0
    %1041 = vmatpush1.bf16.msra.mxu0 0
    %1042 = vmatprep.subr.bf16.mxu0 0
    %1043 = vmatpush1.bf16.msra.mxu0 0
    %1044 = vmatprep.subr.bf16.mxu0 0
    %1045 = vmatpush1.bf16.msra.mxu0 0
    %1046 = vmatprep.subr.bf16.mxu0 0
    %1047 = vmatpush1.bf16.msra.mxu0 0
    %1048 = vmatprep.subr.bf16.mxu0 0
    %1049 = vmatpush1.bf16.msra.mxu0 0
    %1050 = vmatprep.subr.bf16.mxu0 0
    %1051 = vmatpush1.bf16.msra.mxu0 0
    %1052 = vmatprep.mubr.bf16.mxu0 0
    %1053 = vmatmul.mubr.bf16.gmra.mrb[0].mxu0 %v858
    %v1054 = vpop.f32.mrb[0].mxu0
    %v1055 = vadd.f32 0.0, %v1054
    %v1056 = vpop.f32.mrb[0].mxu0
    %v1057 = vpop.f32.mrb[0].mxu0
    %v1058 = vpop.f32.mrb[0].mxu0
    %1059 = vdwg.mxu0
    %1060 = vmatprep.subr.bf16.mxu0 0
    %1061 = vmatpush1.bf16.msra.mxu0 %v300
    %1062 = vmatprep.subr.bf16.mxu0 0
    %1063 = vmatpush1.bf16.msra.mxu0 0
    %1064 = vmatprep.subr.bf16.mxu0 0
    %1065 = vmatpush1.bf16.msra.mxu0 0
    %1066 = vmatprep.subr.bf16.mxu0 0
    %1067 = vmatpush1.bf16.msra.mxu0 0
    %1068 = vmatprep.subr.bf16.mxu0 0
    %1069 = vmatpush1.bf16.msra.mxu0 0
    %1070 = vmatprep.subr.bf16.mxu0 0
    %1071 = vmatpush1.bf16.msra.mxu0 0
    %1072 = vmatprep.subr.bf16.mxu0 0
    %1073 = vmatpush1.bf16.msra.mxu0 0
    %1074 = vmatprep.subr.bf16.mxu0 0
    %1075 = vmatpush1.bf16.msra.mxu0 0
    %1076 = vmatprep.subr.bf16.mxu0 0
    %1077 = vmatpush1.bf16.msra.mxu0 0
    %1078 = vmatprep.subr.bf16.mxu0 0
    %1079 = vmatpush1.bf16.msra.mxu0 0
    %1080 = vmatprep.subr.bf16.mxu0 0
    %1081 = vmatpush1.bf16.msra.mxu0 0
    %1082 = vmatprep.subr.bf16.mxu0 0
    %1083 = vmatpush1.bf16.msra.mxu0 0
    %1084 = vmatprep.subr.bf16.mxu0 0
    %1085 = vmatpush1.bf16.msra.mxu0 0
    %1086 = vmatprep.subr.bf16.mxu0 0
    %1087 = vmatpush1.bf16.msra.mxu0 0
    %1088 = vmatprep.subr.bf16.mxu0 0
    %1089 = vmatpush1.bf16.msra.mxu0 0
    %1090 = vmatprep.subr.bf16.mxu0 0
    %1091 = vmatpush1.bf16.msra.mxu0 0
    %1092 = vmatprep.mubr.bf16.mxu0 0
    %1093 = vmatmul.mubr.bf16.gmra.mrb[0].mxu0 %v858
    %v1094 = vpop.f32.mrb[0].mxu0
    %v1095 = vadd.f32 0.0, %v1094
    %v1096 = vpop.f32.mrb[0].mxu0
    %v1097 = vpop.f32.mrb[0].mxu0
    %v1098 = vpop.f32.mrb[0].mxu0
    %1099 = vdwg.mxu0
    %1100 = vmatprep.subr.bf16.mxu0 0
    %1101 = vmatpush1.bf16.msra.mxu0 %v343
    %1102 = vmatprep.subr.bf16.mxu0 0
    %1103 = vmatpush1.bf16.msra.mxu0 0
    %1104 = vmatprep.subr.bf16.mxu0 0
    %1105 = vmatpush1.bf16.msra.mxu0 0
    %1106 = vmatprep.subr.bf16.mxu0 0
    %1107 = vmatpush1.bf16.msra.mxu0 0
    %1108 = vmatprep.subr.bf16.mxu0 0
    %1109 = vmatpush1.bf16.msra.mxu0 0
    %1110 = vmatprep.subr.bf16.mxu0 0
    %1111 = vmatpush1.bf16.msra.mxu0 0
    %1112 = vmatprep.subr.bf16.mxu0 0
    %1113 = vmatpush1.bf16.msra.mxu0 0
    %1114 = vmatprep.subr.bf16.mxu0 0
    %1115 = vmatpush1.bf16.msra.mxu0 0
    %1116 = vmatprep.subr.bf16.mxu0 0
    %1117 = vmatpush1.bf16.msra.mxu0 0
    %1118 = vmatprep.subr.bf16.mxu0 0
    %1119 = vmatpush1.bf16.msra.mxu0 0
    %1120 = vmatprep.subr.bf16.mxu0 0
    %1121 = vmatpush1.bf16.msra.mxu0 0
    %1122 = vmatprep.subr.bf16.mxu0 0
    %1123 = vmatpush1.bf16.msra.mxu0 0
    %1124 = vmatprep.subr.bf16.mxu0 0
    %1125 = vmatpush1.bf16.msra.mxu0 0
    %1126 = vmatprep.subr.bf16.mxu0 0
    %1127 = vmatpush1.bf16.msra.mxu0 0
    %1128 = vmatprep.subr.bf16.mxu0 0
    %1129 = vmatpush1.bf16.msra.mxu0 0
    %1130 = vmatprep.subr.bf16.mxu0 0
    %1131 = vmatpush1.bf16.msra.mxu0 0
    %1132 = vmatprep.mubr.bf16.mxu0 0
    %1133 = vmatmul.mubr.bf16.gmra.mrb[0].mxu0 %v858
    %v1134 = vpop.f32.mrb[0].mxu0
    %v1135 = vadd.f32 0.0, %v1134
    %v1136 = vpop.f32.mrb[0].mxu0
    %v1137 = vpop.f32.mrb[0].mxu0
    %v1138 = vpop.f32.mrb[0].mxu0
    %1139 = vdwg.mxu0
    %1140 = vmatprep.subr.bf16.mxu0 0
    %1141 = vmatpush1.bf16.msra.mxu0 %v386
    %1142 = vmatprep.subr.bf16.mxu0 0
    %1143 = vmatpush1.bf16.msra.mxu0 0
    %1144 = vmatprep.subr.bf16.mxu0 0
    %1145 = vmatpush1.bf16.msra.mxu0 0
    %1146 = vmatprep.subr.bf16.mxu0 0
    %1147 = vmatpush1.bf16.msra.mxu0 0
    %1148 = vmatprep.subr.bf16.mxu0 0
    %1149 = vmatpush1.bf16.msra.mxu0 0
    %1150 = vmatprep.subr.bf16.mxu0 0
    %1151 = vmatpush1.bf16.msra.mxu0 0
    %1152 = vmatprep.subr.bf16.mxu0 0
    %1153 = vmatpush1.bf16.msra.mxu0 0
    %1154 = vmatprep.subr.bf16.mxu0 0
    %1155 = vmatpush1.bf16.msra.mxu0 0
    %1156 = vmatprep.subr.bf16.mxu0 0
    %1157 = vmatpush1.bf16.msra.mxu0 0
    %1158 = vmatprep.subr.bf16.mxu0 0
    %1159 = vmatpush1.bf16.msra.mxu0 0
    %1160 = vmatprep.subr.bf16.mxu0 0
    %1161 = vmatpush1.bf16.msra.mxu0 0
    %1162 = vmatprep.subr.bf16.mxu0 0
    %1163 = vmatpush1.bf16.msra.mxu0 0
    %1164 = vmatprep.subr.bf16.mxu0 0
    %1165 = vmatpush1.bf16.msra.mxu0 0
    %1166 = vmatprep.subr.bf16.mxu0 0
    %1167 = vmatpush1.bf16.msra.mxu0 0
    %1168 = vmatprep.subr.bf16.mxu0 0
    %1169 = vmatpush1.bf16.msra.mxu0 0
    %1170 = vmatprep.subr.bf16.mxu0 0
    %1171 = vmatpush1.bf16.msra.mxu0 0
    %1172 = vmatprep.mubr.bf16.mxu0 0
    %1173 = vmatmul.mubr.bf16.gmra.mrb[0].mxu0 %v858
    %v1174 = vpop.f32.mrb[0].mxu0
    %v1175 = vadd.f32 0.0, %v1174
    %v1176 = vpop.f32.mrb[0].mxu0
    %v1177 = vpop.f32.mrb[0].mxu0
    %v1178 = vpop.f32.mrb[0].mxu0
    %1179 = vdwg.mxu0
    %v1180 = vmul.f32 %v895, 0.95
    %v1181 = vmul.f32 %v935, 0.95
    %v1182 = vmul.f32 %v975, 0.95
    %v1183 = vmul.f32 %v1015, 0.95
    %v1184 = vmul.f32 %v1055, 0.95
    %v1185 = vmul.f32 %v1095, 0.95
    %v1186 = vmul.f32 %v1135, 0.95
    %v1187 = vmul.f32 %v1175, 0.95
    %v1188 = vadd.f32 %v428, %v1180
    %v1189 = vadd.f32 %v429, %v1181
    %v1190 = vadd.f32 %v430, %v1182
    %v1191 = vadd.f32 %v431, %v1183
    %v1192 = vadd.f32 %v432, %v1184
    %v1193 = vadd.f32 %v433, %v1185
    %v1194 = vadd.f32 %v434, %v1186
    %v1195 = vadd.f32 %v435, %v1187
    %v1196 = vpack.c.bf16 %v1188, %v1188
    %v1197 = vpack.c.bf16 %v1189, %v1189
    %v1198 = vpack.c.bf16 %v1190, %v1190
    %v1199 = vpack.c.bf16 %v1191, %v1191
    %v1200 = vpack.c.bf16 %v1192, %v1192
    %v1201 = vpack.c.bf16 %v1193, %v1193
    %v1202 = vpack.c.bf16 %v1194, %v1194
    %v1203 = vpack.c.bf16 %v1195, %v1195
    %s1204 = scalar_lea.vmem [#allocation8], 128
    %1205 = vst [vmem:[%s1204] sm:$0xf] %v1196
    %1206 = vst [vmem:[%s1204 + $0x4] sm:$0xf] %v1197
    %1207 = vst [vmem:[%s1204 + $0x8] sm:$0xf] %v1198
    %1208 = vst [vmem:[%s1204 + $0xc] sm:$0xf] %v1199
    %1209 = vst [vmem:[%s1204 + $0x10] sm:$0xf] %v1200
    %1210 = vst [vmem:[%s1204 + $0x14] sm:$0xf] %v1201
    %1211 = vst [vmem:[%s1204 + $0x18] sm:$0xf] %v1202
    %1212 = vst [vmem:[%s1204 + $0x1c] sm:$0xf] %v1203
    %v1214 = vsel %vm83, %v1196, 0
    %1216 = vmatprep.subr.bf16.mxu0 0
    %1217 = vmatpush1.bf16.msra.mxu0 %v1214
    %1218 = vmatprep.subr.bf16.mxu0 0
    %1219 = vmatpush1.bf16.msra.mxu0 0
    %1220 = vmatprep.subr.bf16.mxu0 0
    %1221 = vmatpush1.bf16.msra.mxu0 0
    %1222 = vmatprep.subr.bf16.mxu0 0
    %1223 = vmatpush1.bf16.msra.mxu0 0
    %1224 = vmatprep.subr.bf16.mxu0 0
    %1225 = vmatpush1.bf16.msra.mxu0 0
    %1226 = vmatprep.subr.bf16.mxu0 0
    %1227 = vmatpush1.bf16.msra.mxu0 0
    %1228 = vmatprep.subr.bf16.mxu0 0
    %1229 = vmatpush1.bf16.msra.mxu0 0
    %1230 = vmatprep.subr.bf16.mxu0 0
    %1231 = vmatpush1.bf16.msra.mxu0 0
    %1232 = vmatprep.subr.bf16.mxu0 0
    %1233 = vmatpush1.bf16.msra.mxu0 0
    %1234 = vmatprep.subr.bf16.mxu0 0
    %1235 = vmatpush1.bf16.msra.mxu0 0
    %1236 = vmatprep.subr.bf16.mxu0 0
    %1237 = vmatpush1.bf16.msra.mxu0 0
    %1238 = vmatprep.subr.bf16.mxu0 0
    %1239 = vmatpush1.bf16.msra.mxu0 0
    %1240 = vmatprep.subr.bf16.mxu0 0
    %1241 = vmatpush1.bf16.msra.mxu0 0
    %1242 = vmatprep.subr.bf16.mxu0 0
    %1243 = vmatpush1.bf16.msra.mxu0 0
    %1244 = vmatprep.subr.bf16.mxu0 0
    %1245 = vmatpush1.bf16.msra.mxu0 0
    %1246 = vmatprep.subr.bf16.mxu0 0
    %1247 = vmatpush1.bf16.msra.mxu0 0
    %1248 = vmatprep.mubr.bf16.mxu0 0
    %1249 = vmatmul.mubr.bf16.gmra.mrb[0].mxu0 %v858
    %v1250 = vpop.f32.mrb[0].mxu0
    %v1251 = vadd.f32 0.0, %v1250
    %v1252 = vpop.f32.mrb[0].mxu0
    %v1253 = vpop.f32.mrb[0].mxu0
    %v1254 = vpop.f32.mrb[0].mxu0
    %1255 = vdwg.mxu0
    %v1257 = vsel %vm83, %v1197, 0
    %1259 = vmatprep.subr.bf16.mxu0 0
    %1260 = vmatpush1.bf16.msra.mxu0 %v1257
    %1261 = vmatprep.subr.bf16.mxu0 0
    %1262 = vmatpush1.bf16.msra.mxu0 0
    %1263 = vmatprep.subr.bf16.mxu0 0
    %1264 = vmatpush1.bf16.msra.mxu0 0
    %1265 = vmatprep.subr.bf16.mxu0 0
    %1266 = vmatpush1.bf16.msra.mxu0 0
    %1267 = vmatprep.subr.bf16.mxu0 0
    %1268 = vmatpush1.bf16.msra.mxu0 0
    %1269 = vmatprep.subr.bf16.mxu0 0
    %1270 = vmatpush1.bf16.msra.mxu0 0
    %1271 = vmatprep.subr.bf16.mxu0 0
    %1272 = vmatpush1.bf16.msra.mxu0 0
    %1273 = vmatprep.subr.bf16.mxu0 0
    %1274 = vmatpush1.bf16.msra.mxu0 0
    %1275 = vmatprep.subr.bf16.mxu0 0
    %1276 = vmatpush1.bf16.msra.mxu0 0
    %1277 = vmatprep.subr.bf16.mxu0 0
    %1278 = vmatpush1.bf16.msra.mxu0 0
    %1279 = vmatprep.subr.bf16.mxu0 0
    %1280 = vmatpush1.bf16.msra.mxu0 0
    %1281 = vmatprep.subr.bf16.mxu0 0
    %1282 = vmatpush1.bf16.msra.mxu0 0
    %1283 = vmatprep.subr.bf16.mxu0 0
    %1284 = vmatpush1.bf16.msra.mxu0 0
    %1285 = vmatprep.subr.bf16.mxu0 0
    %1286 = vmatpush1.bf16.msra.mxu0 0
    %1287 = vmatprep.subr.bf16.mxu0 0
    %1288 = vmatpush1.bf16.msra.mxu0 0
    %1289 = vmatprep.subr.bf16.mxu0 0
    %1290 = vmatpush1.bf16.msra.mxu0 0
    %1291 = vmatprep.mubr.bf16.mxu0 0
    %1292 = vmatmul.mubr.bf16.gmra.mrb[0].mxu0 %v858
    %v1293 = vpop.f32.mrb[0].mxu0
    %v1294 = vadd.f32 0.0, %v1293
    %v1295 = vpop.f32.mrb[0].mxu0
    %v1296 = vpop.f32.mrb[0].mxu0
    %v1297 = vpop.f32.mrb[0].mxu0
    %1298 = vdwg.mxu0
    %v1300 = vsel %vm83, %v1198, 0
    %1302 = vmatprep.subr.bf16.mxu0 0
    %1303 = vmatpush1.bf16.msra.mxu0 %v1300
    %1304 = vmatprep.subr.bf16.mxu0 0
    %1305 = vmatpush1.bf16.msra.mxu0 0
    %1306 = vmatprep.subr.bf16.mxu0 0
    %1307 = vmatpush1.bf16.msra.mxu0 0
    %1308 = vmatprep.subr.bf16.mxu0 0
    %1309 = vmatpush1.bf16.msra.mxu0 0
    %1310 = vmatprep.subr.bf16.mxu0 0
    %1311 = vmatpush1.bf16.msra.mxu0 0
    %1312 = vmatprep.subr.bf16.mxu0 0
    %1313 = vmatpush1.bf16.msra.mxu0 0
    %1314 = vmatprep.subr.bf16.mxu0 0
    %1315 = vmatpush1.bf16.msra.mxu0 0
    %1316 = vmatprep.subr.bf16.mxu0 0
    %1317 = vmatpush1.bf16.msra.mxu0 0
    %1318 = vmatprep.subr.bf16.mxu0 0
    %1319 = vmatpush1.bf16.msra.mxu0 0
    %1320 = vmatprep.subr.bf16.mxu0 0
    %1321 = vmatpush1.bf16.msra.mxu0 0
    %1322 = vmatprep.subr.bf16.mxu0 0
    %1323 = vmatpush1.bf16.msra.mxu0 0
    %1324 = vmatprep.subr.bf16.mxu0 0
    %1325 = vmatpush1.bf16.msra.mxu0 0
    %1326 = vmatprep.subr.bf16.mxu0 0
    %1327 = vmatpush1.bf16.msra.mxu0 0
    %1328 = vmatprep.subr.bf16.mxu0 0
    %1329 = vmatpush1.bf16.msra.mxu0 0
    %1330 = vmatprep.subr.bf16.mxu0 0
    %1331 = vmatpush1.bf16.msra.mxu0 0
    %1332 = vmatprep.subr.bf16.mxu0 0
    %1333 = vmatpush1.bf16.msra.mxu0 0
    %1334 = vmatprep.mubr.bf16.mxu0 0
    %1335 = vmatmul.mubr.bf16.gmra.mrb[0].mxu0 %v858
    %v1336 = vpop.f32.mrb[0].mxu0
    %v1337 = vadd.f32 0.0, %v1336
    %v1338 = vpop.f32.mrb[0].mxu0
    %v1339 = vpop.f32.mrb[0].mxu0
    %v1340 = vpop.f32.mrb[0].mxu0
    %1341 = vdwg.mxu0
    %v1343 = vsel %vm83, %v1199, 0
    %1345 = vmatprep.subr.bf16.mxu0 0
    %1346 = vmatpush1.bf16.msra.mxu0 %v1343
    %1347 = vmatprep.subr.bf16.mxu0 0
    %1348 = vmatpush1.bf16.msra.mxu0 0
    %1349 = vmatprep.subr.bf16.mxu0 0
    %1350 = vmatpush1.bf16.msra.mxu0 0
    %1351 = vmatprep.subr.bf16.mxu0 0
    %1352 = vmatpush1.bf16.msra.mxu0 0
    %1353 = vmatprep.subr.bf16.mxu0 0
    %1354 = vmatpush1.bf16.msra.mxu0 0
    %1355 = vmatprep.subr.bf16.mxu0 0
    %1356 = vmatpush1.bf16.msra.mxu0 0
    %1357 = vmatprep.subr.bf16.mxu0 0
    %1358 = vmatpush1.bf16.msra.mxu0 0
    %1359 = vmatprep.subr.bf16.mxu0 0
    %1360 = vmatpush1.bf16.msra.mxu0 0
    %1361 = vmatprep.subr.bf16.mxu0 0
    %1362 = vmatpush1.bf16.msra.mxu0 0
    %1363 = vmatprep.subr.bf16.mxu0 0
    %1364 = vmatpush1.bf16.msra.mxu0 0
    %1365 = vmatprep.subr.bf16.mxu0 0
    %1366 = vmatpush1.bf16.msra.mxu0 0
    %1367 = vmatprep.subr.bf16.mxu0 0
    %1368 = vmatpush1.bf16.msra.mxu0 0
    %1369 = vmatprep.subr.bf16.mxu0 0
    %1370 = vmatpush1.bf16.msra.mxu0 0
    %1371 = vmatprep.subr.bf16.mxu0 0
    %1372 = vmatpush1.bf16.msra.mxu0 0
    %1373 = vmatprep.subr.bf16.mxu0 0
    %1374 = vmatpush1.bf16.msra.mxu0 0
    %1375 = vmatprep.subr.bf16.mxu0 0
    %1376 = vmatpush1.bf16.msra.mxu0 0
    %1377 = vmatprep.mubr.bf16.mxu0 0
    %1378 = vmatmul.mubr.bf16.gmra.mrb[0].mxu0 %v858
    %v1379 = vpop.f32.mrb[0].mxu0
    %v1380 = vadd.f32 0.0, %v1379
    %v1381 = vpop.f32.mrb[0].mxu0
    %v1382 = vpop.f32.mrb[0].mxu0
    %v1383 = vpop.f32.mrb[0].mxu0
    %1384 = vdwg.mxu0
    %v1386 = vsel %vm83, %v1200, 0
    %1388 = vmatprep.subr.bf16.mxu0 0
    %1389 = vmatpush1.bf16.msra.mxu0 %v1386
    %1390 = vmatprep.subr.bf16.mxu0 0
    %1391 = vmatpush1.bf16.msra.mxu0 0
    %1392 = vmatprep.subr.bf16.mxu0 0
    %1393 = vmatpush1.bf16.msra.mxu0 0
    %1394 = vmatprep.subr.bf16.mxu0 0
    %1395 = vmatpush1.bf16.msra.mxu0 0
    %1396 = vmatprep.subr.bf16.mxu0 0
    %1397 = vmatpush1.bf16.msra.mxu0 0
    %1398 = vmatprep.subr.bf16.mxu0 0
    %1399 = vmatpush1.bf16.msra.mxu0 0
    %1400 = vmatprep.subr.bf16.mxu0 0
    %1401 = vmatpush1.bf16.msra.mxu0 0
    %1402 = vmatprep.subr.bf16.mxu0 0
    %1403 = vmatpush1.bf16.msra.mxu0 0
    %1404 = vmatprep.subr.bf16.mxu0 0
    %1405 = vmatpush1.bf16.msra.mxu0 0
    %1406 = vmatprep.subr.bf16.mxu0 0
    %1407 = vmatpush1.bf16.msra.mxu0 0
    %1408 = vmatprep.subr.bf16.mxu0 0
    %1409 = vmatpush1.bf16.msra.mxu0 0
    %1410 = vmatprep.subr.bf16.mxu0 0
    %1411 = vmatpush1.bf16.msra.mxu0 0
    %1412 = vmatprep.subr.bf16.mxu0 0
    %1413 = vmatpush1.bf16.msra.mxu0 0
    %1414 = vmatprep.subr.bf16.mxu0 0
    %1415 = vmatpush1.bf16.msra.mxu0 0
    %1416 = vmatprep.subr.bf16.mxu0 0
    %1417 = vmatpush1.bf16.msra.mxu0 0
    %1418 = vmatprep.subr.bf16.mxu0 0
    %1419 = vmatpush1.bf16.msra.mxu0 0
    %1420 = vmatprep.mubr.bf16.mxu0 0
    %1421 = vmatmul.mubr.bf16.gmra.mrb[0].mxu0 %v858
    %v1422 = vpop.f32.mrb[0].mxu0
    %v1423 = vadd.f32 0.0, %v1422
    %v1424 = vpop.f32.mrb[0].mxu0
    %v1425 = vpop.f32.mrb[0].mxu0
    %v1426 = vpop.f32.mrb[0].mxu0
    %1427 = vdwg.mxu0
    %v1429 = vsel %vm83, %v1201, 0
    %1431 = vmatprep.subr.bf16.mxu0 0
    %1432 = vmatpush1.bf16.msra.mxu0 %v1429
    %1433 = vmatprep.subr.bf16.mxu0 0
    %1434 = vmatpush1.bf16.msra.mxu0 0
    %1435 = vmatprep.subr.bf16.mxu0 0
    %1436 = vmatpush1.bf16.msra.mxu0 0
    %1437 = vmatprep.subr.bf16.mxu0 0
    %1438 = vmatpush1.bf16.msra.mxu0 0
    %1439 = vmatprep.subr.bf16.mxu0 0
    %1440 = vmatpush1.bf16.msra.mxu0 0
    %1441 = vmatprep.subr.bf16.mxu0 0
    %1442 = vmatpush1.bf16.msra.mxu0 0
    %1443 = vmatprep.subr.bf16.mxu0 0
    %1444 = vmatpush1.bf16.msra.mxu0 0
    %1445 = vmatprep.subr.bf16.mxu0 0
    %1446 = vmatpush1.bf16.msra.mxu0 0
    %1447 = vmatprep.subr.bf16.mxu0 0
    %1448 = vmatpush1.bf16.msra.mxu0 0
    %1449 = vmatprep.subr.bf16.mxu0 0
    %1450 = vmatpush1.bf16.msra.mxu0 0
    %1451 = vmatprep.subr.bf16.mxu0 0
    %1452 = vmatpush1.bf16.msra.mxu0 0
    %1453 = vmatprep.subr.bf16.mxu0 0
    %1454 = vmatpush1.bf16.msra.mxu0 0
    %1455 = vmatprep.subr.bf16.mxu0 0
    %1456 = vmatpush1.bf16.msra.mxu0 0
    %1457 = vmatprep.subr.bf16.mxu0 0
    %1458 = vmatpush1.bf16.msra.mxu0 0
    %1459 = vmatprep.subr.bf16.mxu0 0
    %1460 = vmatpush1.bf16.msra.mxu0 0
    %1461 = vmatprep.subr.bf16.mxu0 0
    %1462 = vmatpush1.bf16.msra.mxu0 0
    %1463 = vmatprep.mubr.bf16.mxu0 0
    %1464 = vmatmul.mubr.bf16.gmra.mrb[0].mxu0 %v858
    %v1465 = vpop.f32.mrb[0].mxu0
    %v1466 = vadd.f32 0.0, %v1465
    %v1467 = vpop.f32.mrb[0].mxu0
    %v1468 = vpop.f32.mrb[0].mxu0
    %v1469 = vpop.f32.mrb[0].mxu0
    %1470 = vdwg.mxu0
    %v1472 = vsel %vm83, %v1202, 0
    %1474 = vmatprep.subr.bf16.mxu0 0
    %1475 = vmatpush1.bf16.msra.mxu0 %v1472
    %1476 = vmatprep.subr.bf16.mxu0 0
    %1477 = vmatpush1.bf16.msra.mxu0 0
    %1478 = vmatprep.subr.bf16.mxu0 0
    %1479 = vmatpush1.bf16.msra.mxu0 0
    %1480 = vmatprep.subr.bf16.mxu0 0
    %1481 = vmatpush1.bf16.msra.mxu0 0
    %1482 = vmatprep.subr.bf16.mxu0 0
    %1483 = vmatpush1.bf16.msra.mxu0 0
    %1484 = vmatprep.subr.bf16.mxu0 0
    %1485 = vmatpush1.bf16.msra.mxu0 0
    %1486 = vmatprep.subr.bf16.mxu0 0
    %1487 = vmatpush1.bf16.msra.mxu0 0
    %1488 = vmatprep.subr.bf16.mxu0 0
    %1489 = vmatpush1.bf16.msra.mxu0 0
    %1490 = vmatprep.subr.bf16.mxu0 0
    %1491 = vmatpush1.bf16.msra.mxu0 0
    %1492 = vmatprep.subr.bf16.mxu0 0
    %1493 = vmatpush1.bf16.msra.mxu0 0
    %1494 = vmatprep.subr.bf16.mxu0 0
    %1495 = vmatpush1.bf16.msra.mxu0 0
    %1496 = vmatprep.subr.bf16.mxu0 0
    %1497 = vmatpush1.bf16.msra.mxu0 0
    %1498 = vmatprep.subr.bf16.mxu0 0
    %1499 = vmatpush1.bf16.msra.mxu0 0
    %1500 = vmatprep.subr.bf16.mxu0 0
    %1501 = vmatpush1.bf16.msra.mxu0 0
    %1502 = vmatprep.subr.bf16.mxu0 0
    %1503 = vmatpush1.bf16.msra.mxu0 0
    %1504 = vmatprep.subr.bf16.mxu0 0
    %1505 = vmatpush1.bf16.msra.mxu0 0
    %1506 = vmatprep.mubr.bf16.mxu0 0
    %1507 = vmatmul.mubr.bf16.gmra.mrb[0].mxu0 %v858
    %v1508 = vpop.f32.mrb[0].mxu0
    %v1509 = vadd.f32 0.0, %v1508
    %v1510 = vpop.f32.mrb[0].mxu0
    %v1511 = vpop.f32.mrb[0].mxu0
    %v1512 = vpop.f32.mrb[0].mxu0
    %1513 = vdwg.mxu0
    %v1515 = vsel %vm83, %v1203, 0
    %1517 = vmatprep.subr.bf16.mxu0 0
    %1518 = vmatpush1.bf16.msra.mxu0 %v1515
    %1519 = vmatprep.subr.bf16.mxu0 0
    %1520 = vmatpush1.bf16.msra.mxu0 0
    %1521 = vmatprep.subr.bf16.mxu0 0
    %1522 = vmatpush1.bf16.msra.mxu0 0
    %1523 = vmatprep.subr.bf16.mxu0 0
    %1524 = vmatpush1.bf16.msra.mxu0 0
    %1525 = vmatprep.subr.bf16.mxu0 0
    %1526 = vmatpush1.bf16.msra.mxu0 0
    %1527 = vmatprep.subr.bf16.mxu0 0
    %1528 = vmatpush1.bf16.msra.mxu0 0
    %1529 = vmatprep.subr.bf16.mxu0 0
    %1530 = vmatpush1.bf16.msra.mxu0 0
    %1531 = vmatprep.subr.bf16.mxu0 0
    %1532 = vmatpush1.bf16.msra.mxu0 0
    %1533 = vmatprep.subr.bf16.mxu0 0
    %1534 = vmatpush1.bf16.msra.mxu0 0
    %1535 = vmatprep.subr.bf16.mxu0 0
    %1536 = vmatpush1.bf16.msra.mxu0 0
    %1537 = vmatprep.subr.bf16.mxu0 0
    %1538 = vmatpush1.bf16.msra.mxu0 0
    %1539 = vmatprep.subr.bf16.mxu0 0
    %1540 = vmatpush1.bf16.msra.mxu0 0
    %1541 = vmatprep.subr.bf16.mxu0 0
    %1542 = vmatpush1.bf16.msra.mxu0 0
    %1543 = vmatprep.subr.bf16.mxu0 0
    %1544 = vmatpush1.bf16.msra.mxu0 0
    %1545 = vmatprep.subr.bf16.mxu0 0
    %1546 = vmatpush1.bf16.msra.mxu0 0
    %1547 = vmatprep.subr.bf16.mxu0 0
    %1548 = vmatpush1.bf16.msra.mxu0 0
    %1549 = vmatprep.mubr.bf16.mxu0 0
    %1550 = vmatmul.mubr.bf16.gmra.mrb[0].mxu0 %v858
    %v1551 = vpop.f32.mrb[0].mxu0
    %v1552 = vadd.f32 0.0, %v1551
    %v1553 = vpop.f32.mrb[0].mxu0
    %v1554 = vpop.f32.mrb[0].mxu0
    %v1555 = vpop.f32.mrb[0].mxu0
    %1556 = vdwg.mxu0
    %v1557 = vmul.f32 %v1251, 0.95
    %v1558 = vmul.f32 %v1294, 0.95
    %v1559 = vmul.f32 %v1337, 0.95
    %v1560 = vmul.f32 %v1380, 0.95
    %v1561 = vmul.f32 %v1423, 0.95
    %v1562 = vmul.f32 %v1466, 0.95
    %v1563 = vmul.f32 %v1509, 0.95
    %v1564 = vmul.f32 %v1552, 0.95
    %v1565 = vadd.f32 %v428, %v1557
    %v1566 = vadd.f32 %v429, %v1558
    %v1567 = vadd.f32 %v430, %v1559
    %v1568 = vadd.f32 %v431, %v1560
    %v1569 = vadd.f32 %v432, %v1561
    %v1570 = vadd.f32 %v433, %v1562
    %v1571 = vadd.f32 %v434, %v1563
    %v1572 = vadd.f32 %v435, %v1564
    %v1573 = vpack.c.bf16 %v1565, %v1565
    %v1574 = vpack.c.bf16 %v1566, %v1566
    %v1575 = vpack.c.bf16 %v1567, %v1567
    %v1576 = vpack.c.bf16 %v1568, %v1568
    %v1577 = vpack.c.bf16 %v1569, %v1569
    %v1578 = vpack.c.bf16 %v1570, %v1570
    %v1579 = vpack.c.bf16 %v1571, %v1571
    %v1580 = vpack.c.bf16 %v1572, %v1572
    %s1581 = scalar_lea.vmem [#allocation8], 160
    %1582 = vst [vmem:[%s1581] sm:$0xf] %v1573
    %1583 = vst [vmem:[%s1581 + $0x4] sm:$0xf] %v1574
    %1584 = vst [vmem:[%s1581 + $0x8] sm:$0xf] %v1575
    %1585 = vst [vmem:[%s1581 + $0xc] sm:$0xf] %v1576
    %1586 = vst [vmem:[%s1581 + $0x10] sm:$0xf] %v1577
    %1587 = vst [vmem:[%s1581 + $0x14] sm:$0xf] %v1578
    %1588 = vst [vmem:[%s1581 + $0x18] sm:$0xf] %v1579
    %1589 = vst [vmem:[%s1581 + $0x1c] sm:$0xf] %v1580
    // Predicated region
    $region26: #{mtgnn_forward.11} parent=1 // pred_check
      _
    $region27: #{mtgnn_forward.11} parent=1 // pred_check_branch
      %1591 = sbr.rel (0) target = $region29
    $region28: #{mtgnn_forward.11} parent=1 // pred_region
      %s1593 = ssub.s32 3072, 3072
      %1594 = vsyncadd [#allocation4], %s1593
      %s1595 = sshll.u32 [#allocation8], 4
      %s1596 = int_to_ptr.vmem [resolvable:$true] %s1595
      %1601 = dma.vmem_to_hbm [thread:$0]  %s1596, 3072, %s3, [#allocation4], 64, 64, 4
    $region29: #{mtgnn_forward.11} parent=1 // pred_fallthru
      _
    // Predicated region
    $region30: #{mtgnn_forward.11} parent=1 // pred_check
      _
    $region31: #{mtgnn_forward.11} parent=1 // pred_check_branch
      %1603 = sbr.rel (0) target = $region33
    $region32: #{mtgnn_forward.11} parent=1 // pred_region
      %1604 = dma.done [#allocation4], 3072
    $region33: #{mtgnn_forward.11} parent=1 // pred_fallthru
      _
    %1605 = vsyncpa [#allocation3], 1
    %1606 = vsyncpa [#allocation6], 1
    %1607 = vsyncpa [#allocation4], 1

// kernel: mtgnn_forward.12
$region0: #{mtgnn_forward.12}
  #allocation0 [shape = 'u32[]', space=smem, size = 0x4, offset = 0x4, fixed_abs, tag = 'smem constant byte address 0x4 - core index']
  #allocation1 [shape = 'u32[144,128]{1,0:T(1,128)}', space=vmem, size = 0x12000, scoped, tag = 'internal scratch']
  %s0 = inlined_call_operand.hbm [shape: bf16[8,48], index: 0, kind: input, shape index: {}]
  %s1 = inlined_call_operand.hbm [shape: bf16[48,1024], index: 1, kind: input, shape index: {}]
  %s2 = inlined_call_operand.hbm [shape: f32[8,1], index: 2, kind: input, shape index: {}]
  %s3 = inlined_call_operand.hbm [shape: f32[8,1024], index: 3, kind: input, shape index: {}]
  %s4 = inlined_call_operand.hbm [shape: f32[8,1024], index: 4, kind: output, shape index: {}]
  %s5 = sld [smem:[#allocation0]]
  $region65: #{mtgnn_forward.12} parent=0
    _
  %s7 = ssub.s32 1, %s5
  %s8 = scalar_select 0, %s7, %s5
  $region1: #{mtgnn_forward.12} parent=0
    #allocation2 [shape = 'u8[2048]{0}', space=vmem, size = 0x800, scoped, tag = 'input window, operand 0, single buffered']
    #allocation3 [shape = 's32[2]{0}', space=sflag, size = 0x8, scoped, tag = 'scoped memory for mtgnn_forward.12']
    #allocation4 [shape = 's32[2]{0}', space=sflag, size = 0x8, scoped, tag = 'scoped memory for mtgnn_forward.12']
    #allocation5 [shape = 'u8[98304]{0}', space=vmem, size = 0x18000, scoped, tag = 'input window, operand 1']
    #allocation6 [shape = 's32[2]{0}', space=sflag, size = 0x8, scoped, tag = 'scoped memory for mtgnn_forward.12']
    #allocation7 [shape = 'u8[4096]{0}', space=vmem, size = 0x1000, scoped, tag = 'input window, operand 2, single buffered']
    #allocation8 [shape = 'u8[32768]{0}', space=vmem, size = 0x8000, scoped, tag = 'input window, operand 3']
    #allocation9 [shape = 's32[2]{0}', space=sflag, size = 0x8, scoped, tag = 'scoped memory for mtgnn_forward.12']
    #allocation10 [shape = 'u8[32768]{0}', space=vmem, size = 0x8000, scoped, tag = 'output window, operand 0']
    %9 = vsyncpa [#allocation3], 0
    %10 = vsyncpa [#allocation6], 0
    %s11 = scalar_lea.sflag [#allocation6], 1
    %12 = vsyncpa %s11, 0
    %13 = vsyncpa [#allocation9], 0
    %s14 = scalar_lea.sflag [#allocation9], 1
    %15 = vsyncpa %s14, 0
    %16 = vsyncpa [#allocation4], 0
    %s17 = scalar_lea.sflag [#allocation4], 1
    %18 = vsyncpa %s17, 0
    loop: start=0, step=1, limit=4
    $region2: #{mtgnn_forward.12} parent=1 // loop_pre_header
      _
    $region3: #{mtgnn_forward.12} parent=1 // loop_header
      %s20 = sphi 0, %s24
      %p21 = scmp.ge.s32.totalorder %s20, 4
      %s28 = sphi 0, %s28
      %s30 = sphi 0, %s28
      %s31 = sphi 0, %s30
      %s45 = sphi 0, %s31
      %s51 = sphi 0, %s53
      %s54 = sphi 0, %s51
      %s55 = sphi 0, %s54
      %s71 = sphi 0, %s55
      %s75 = sphi 0, %s75
      %s77 = sphi 0, %s75
      %s78 = sphi 0, %s77
      %s92 = sphi 0, %s78
      %s98 = sphi 0, %s100
      %s101 = sphi 0, %s98
      %s102 = sphi 0, %s101
      %s118 = sphi 0, %s102
      %s124 = sphi 0, %s126
      %s127 = sphi 0, %s124
      %s128 = sphi 0, %s127
      %s144 = sphi 0, %s128
    $region4: #{mtgnn_forward.12} parent=1 // loop_header_branch
      %23 = sbr.rel (%p21) target = $region8
    $region5: #{mtgnn_forward.12} parent=1 // loop_body
      %s25 = ssub.s32 %s20, 1
      %s26 = ssub.s32 %s20, 2
      %s27 = sadd.s32 %s20, 1
      %s29 = sadd.s32 %s28, 1
      %p32 = scmp.eq.s32.totalorder %s20, 1
      %p33 = scmp.ne.s32.totalorder %s28, %s30
      %p34 = scmp.eq.s32.totalorder %s20, 0
      %p35 = por %p33, %p34
      %p36 = scmp.ne.s32.totalorder %s28, %s30
      %p37 = scmp.eq.s32.totalorder %s25, 1
      %p38 = por %p36, %p37
      %p39 = scmp.ne.s32.totalorder %s30, %s31
      %p40 = scmp.eq.s32.totalorder %s25, 0
      %p41 = por %p39, %p40
      %p42 = scmp.ne.s32.totalorder %s30, %s31
      %p43 = scmp.eq.s32.totalorder %s26, 1
      %p44 = por %p42, %p43
      %p46 = scmp.ne.s32.totalorder %s31, %s45
      %p47 = scmp.eq.s32.totalorder %s26, 0
      %p48 = por %p46, %p47
      %s49 = ssub.s32 %s20, %s27
      %p50 = scmp.eq.s32.totalorder %s49, 0
      %s52 = sadd.s32 %s51, 1
      %s53 = scalar_select %p50, %s51, %s52
      %p56 = pneg %p50
      %p57 = scmp.eq.s32.totalorder %s20, 1
      %p58 = por %p56, %p57
      %p59 = scmp.ne.s32.totalorder %s51, %s54
      %p60 = scmp.eq.s32.totalorder %s20, 0
      %p61 = por %p59, %p60
      %p62 = scmp.ne.s32.totalorder %s51, %s54
      %p63 = scmp.eq.s32.totalorder %s25, 1
      %p64 = por %p62, %p63
      %p65 = scmp.ne.s32.totalorder %s54, %s55
      %p66 = scmp.eq.s32.totalorder %s25, 0
      %p67 = por %p65, %p66
      %p68 = scmp.ne.s32.totalorder %s54, %s55
      %p69 = scmp.eq.s32.totalorder %s26, 1
      %p70 = por %p68, %p69
      %p72 = scmp.ne.s32.totalorder %s55, %s71
      %p73 = scmp.eq.s32.totalorder %s26, 0
      %p74 = por %p72, %p73
      %s76 = sadd.s32 %s75, 1
      %p79 = scmp.eq.s32.totalorder %s20, 1
      %p80 = scmp.ne.s32.totalorder %s75, %s77
      %p81 = scmp.eq.s32.totalorder %s20, 0
      %p82 = por %p80, %p81
      %p83 = scmp.ne.s32.totalorder %s75, %s77
      %p84 = scmp.eq.s32.totalorder %s25, 1
      %p85 = por %p83, %p84
      %p86 = scmp.ne.s32.totalorder %s77, %s78
      %p87 = scmp.eq.s32.totalorder %s25, 0
      %p88 = por %p86, %p87
      %p89 = scmp.ne.s32.totalorder %s77, %s78
      %p90 = scmp.eq.s32.totalorder %s26, 1
      %p91 = por %p89, %p90
      %p93 = scmp.ne.s32.totalorder %s78, %s92
      %p94 = scmp.eq.s32.totalorder %s26, 0
      %p95 = por %p93, %p94
      %s96 = ssub.s32 %s20, %s27
      %p97 = scmp.eq.s32.totalorder %s96, 0
      %s99 = sadd.s32 %s98, 1
      %s100 = scalar_select %p97, %s98, %s99
      %p103 = pneg %p97
      %p104 = scmp.eq.s32.totalorder %s20, 1
      %p105 = por %p103, %p104
      %p106 = scmp.ne.s32.totalorder %s98, %s101
      %p107 = scmp.eq.s32.totalorder %s20, 0
      %p108 = por %p106, %p107
      %p109 = scmp.ne.s32.totalorder %s98, %s101
      %p110 = scmp.eq.s32.totalorder %s25, 1
      %p111 = por %p109, %p110
      %p112 = scmp.ne.s32.totalorder %s101, %s102
      %p113 = scmp.eq.s32.totalorder %s25, 0
      %p114 = por %p112, %p113
      %p115 = scmp.ne.s32.totalorder %s101, %s102
      %p116 = scmp.eq.s32.totalorder %s26, 1
      %p117 = por %p115, %p116
      %p119 = scmp.ne.s32.totalorder %s102, %s118
      %p120 = scmp.eq.s32.totalorder %s26, 0
      %p121 = por %p119, %p120
      %s122 = ssub.s32 %s20, %s27
      %p123 = scmp.eq.s32.totalorder %s122, 0
      %s125 = sadd.s32 %s124, 1
      %s126 = scalar_select %p123, %s124, %s125
      %p129 = pneg %p123
      %p130 = scmp.eq.s32.totalorder %s20, 1
      %p131 = por %p129, %p130
      %p132 = scmp.ne.s32.totalorder %s124, %s127
      %p133 = scmp.eq.s32.totalorder %s20, 0
      %p134 = por %p132, %p133
      %p135 = scmp.ne.s32.totalorder %s124, %s127
      %p136 = scmp.eq.s32.totalorder %s25, 1
      %p137 = por %p135, %p136
      %p138 = scmp.ne.s32.totalorder %s127, %s128
      %p139 = scmp.eq.s32.totalorder %s25, 0
      %p140 = por %p138, %p139
      %p141 = scmp.ne.s32.totalorder %s127, %s128
      %p142 = scmp.eq.s32.totalorder %s26, 1
      %p143 = por %p141, %p142
      %p145 = scmp.ne.s32.totalorder %s128, %s144
      %p146 = scmp.eq.s32.totalorder %s26, 0
      %p147 = por %p145, %p146
      %p148 = scmp.le.s32.totalorder 1, %s20
      %p149 = scmp.lt.s32.totalorder %s20, 3
      %p150 = pnand %p148, %p149
      %p151 = pneg %p150
      // Predicated region
      $region9: #{mtgnn_forward.12} parent=5 // pred_check
        _
      $region10: #{mtgnn_forward.12} parent=5 // pred_check_branch
        %153 = sbr.rel (%p150) target = $region12
      $region11: #{mtgnn_forward.12} parent=5 // pred_region
        %s154 = ssub.s32 %s20, 1
        // Predicated region
        $region13: #{mtgnn_forward.12} parent=11 // pred_check
          %p155 = pneg %p41
        $region14: #{mtgnn_forward.12} parent=11 // pred_check_branch
          %157 = sbr.rel (%p155) target = $region16
        $region15: #{mtgnn_forward.12} parent=11 // pred_region
          %s159 = ssub.s32 64, 64
          %160 = vsyncadd [#allocation3], %s159
          %s162 = sshll.u32 [#allocation2], 4
          %s163 = int_to_ptr.vmem [resolvable:$true] %s162
          %165 = dma.hbm_to_vmem [thread:$0]  %s0, 64, %s163, [#allocation3]
        $region16: #{mtgnn_forward.12} parent=11 // pred_fallthru
          _
        // Predicated region
        $region17: #{mtgnn_forward.12} parent=11 // pred_check
          %p166 = pneg %p88
        $region18: #{mtgnn_forward.12} parent=11 // pred_check_branch
          %168 = sbr.rel (%p166) target = $region20
        $region19: #{mtgnn_forward.12} parent=11 // pred_region
          %s170 = ssub.s32 128, 128
          %171 = vsyncadd [#allocation6], %s170
          %s173 = sshll.u32 [#allocation7], 4
          %s174 = int_to_ptr.vmem [resolvable:$true] %s173
          %176 = dma.hbm_to_vmem [thread:$0]  %s2, 128, %s174, [#allocation6]
        $region20: #{mtgnn_forward.12} parent=11 // pred_fallthru
          _
      $region12: #{mtgnn_forward.12} parent=5 // pred_fallthru
        _
      %p177 = scmp.lt.s32.totalorder %s20, 2
      // Predicated region
      $region21: #{mtgnn_forward.12} parent=5 // pred_check
        %p178 = pneg %p177
      $region22: #{mtgnn_forward.12} parent=5 // pred_check_branch
        %180 = sbr.rel (%p178) target = $region24
      $region23: #{mtgnn_forward.12} parent=5 // pred_region
        // Predicated region
        $region25: #{mtgnn_forward.12} parent=23 // pred_check
          %p181 = pneg %p61
        $region26: #{mtgnn_forward.12} parent=23 // pred_check_branch
          %183 = sbr.rel (%p181) target = $region28
        $region27: #{mtgnn_forward.12} parent=23 // pred_region
          %s184 = sand.u32 %s20, 1
          %s185 = scalar_lea.sflag [#allocation6], %s184
          %s186 = sand.u32 %s51, 1
          %s187 = smul.addr %s186, 96
          %s188 = scalar_lea.vmem [#allocation5], %s187
          %s189 = smul.u32 4, %s20
          %s191 = ssub.s32 1536, 1536
          %192 = vsyncadd %s185, %s191
          %s193 = smul.addr %s189, 64
          %s194 = scalar_lea.hbm %s1, %s193
          %s195 = sshll.u32 %s188, 4
          %s196 = int_to_ptr.vmem [resolvable:$true] %s195
          %201 = dma.hbm_to_vmem [thread:$0]  %s194, 1536, %s196, %s185, 512, 256, 16
        $region28: #{mtgnn_forward.12} parent=23 // pred_fallthru
          _
        // Predicated region
        $region29: #{mtgnn_forward.12} parent=23 // pred_check
          %p202 = pneg %p108
        $region30: #{mtgnn_forward.12} parent=23 // pred_check_branch
          %204 = sbr.rel (%p202) target = $region32
        $region31: #{mtgnn_forward.12} parent=23 // pred_region
          %s205 = sand.u32 %s98, 1
          %s206 = scalar_lea.sflag [#allocation9], %s205
          %s207 = sand.u32 %s98, 1
          %s208 = smul.addr %s207, 32
          %s209 = scalar_lea.vmem [#allocation8], %s208
          %s210 = smul.u32 4, %s20
          %s212 = ssub.s32 512, 512
          %213 = vsyncadd %s206, %s212
          %s214 = smul.addr %s210, 128
          %s215 = scalar_lea.hbm %s3, %s214
          %s217 = sshll.u32 %s209, 4
          %s218 = int_to_ptr.vmem [resolvable:$true] %s217
          %220 = dma.hbm_to_vmem [thread:$0]  %s215, 512, %s218, %s206
        $region32: #{mtgnn_forward.12} parent=23 // pred_fallthru
          _
      $region24: #{mtgnn_forward.12} parent=5 // pred_fallthru
        _
      %p221 = scmp.le.s32.totalorder 1, %s20
      %p222 = scmp.lt.s32.totalorder %s20, 3
      %p223 = pnand %p221, %p222
      %p224 = pneg %p223
      // Predicated region
      $region33: #{mtgnn_forward.12} parent=5 // pred_check
        _
      $region34: #{mtgnn_forward.12} parent=5 // pred_check_branch
        %226 = sbr.rel (%p223) target = $region36
      $region35: #{mtgnn_forward.12} parent=5 // pred_region
        %s227 = ssub.s32 %s20, 1
        // Predicated region
        $region37: #{mtgnn_forward.12} parent=35 // pred_check
          %p228 = pneg %p41
        $region38: #{mtgnn_forward.12} parent=35 // pred_check_branch
          %230 = sbr.rel (%p228) target = $region40
        $region39: #{mtgnn_forward.12} parent=35 // pred_region
          %231 = dma.done [#allocation3], 64
        $region40: #{mtgnn_forward.12} parent=35 // pred_fallthru
          _
        %s232 = sand.u32 %s25, 1
        %s233 = scalar_lea.sflag [#allocation6], %s232
        %s234 = sand.u32 %s54, 1
        %s235 = smul.addr %s234, 96
        %s236 = scalar_lea.vmem [#allocation5], %s235
        // Predicated region
        $region41: #{mtgnn_forward.12} parent=35 // pred_check
          %p237 = pneg %p67
        $region42: #{mtgnn_forward.12} parent=35 // pred_check_branch
          %239 = sbr.rel (%p237) target = $region44
        $region43: #{mtgnn_forward.12} parent=35 // pred_region
          %240 = dma.done %s233, 1536
        $region44: #{mtgnn_forward.12} parent=35 // pred_fallthru
          _
        // Predicated region
        $region45: #{mtgnn_forward.12} parent=35 // pred_check
          %p241 = pneg %p88
        $region46: #{mtgnn_forward.12} parent=35 // pred_check_branch
          %243 = sbr.rel (%p241) target = $region48
        $region47: #{mtgnn_forward.12} parent=35 // pred_region
          %244 = dma.done [#allocation6], 128
        $region48: #{mtgnn_forward.12} parent=35 // pred_fallthru
          _
        %s245 = sand.u32 %s101, 1
        %s246 = scalar_lea.sflag [#allocation9], %s245
        %s247 = sand.u32 %s101, 1
        %s248 = smul.addr %s247, 32
        %s249 = scalar_lea.vmem [#allocation8], %s248
        // Predicated region
        $region49: #{mtgnn_forward.12} parent=35 // pred_check
          %p250 = pneg %p114
        $region50: #{mtgnn_forward.12} parent=35 // pred_check_branch
          %252 = sbr.rel (%p250) target = $region52
        $region51: #{mtgnn_forward.12} parent=35 // pred_region
          %253 = dma.done %s246, 512
        $region52: #{mtgnn_forward.12} parent=35 // pred_fallthru
          _
        %p254 = pneg %p41
        %p255 = pneg %p38
        %s256 = sand.u32 %s25, 1
        %s257 = scalar_lea.sflag [#allocation6], %s256
        %s258 = sand.u32 %s54, 1
        %s259 = smul.addr %s258, 96
        %s260 = scalar_lea.vmem [#allocation5], %s259
        %p261 = pneg %p67
        %p262 = pneg %p64
        %p263 = pneg %p88
        %p264 = pneg %p85
        %s265 = sand.u32 %s101, 1
        %s266 = scalar_lea.sflag [#allocation9], %s265
        %s267 = sand.u32 %s101, 1
        %s268 = smul.addr %s267, 32
        %s269 = scalar_lea.vmem [#allocation8], %s268
        %p270 = pneg %p114
        %p271 = pneg %p111
        %p272 = pneg %p140
        %p273 = pneg %p137
        %s274 = sand.u32 %s127, 1
        %s275 = scalar_lea.sflag [#allocation4], %s274
        %s276 = sand.u32 %s127, 1
        %s277 = smul.addr %s276, 32
        %s278 = scalar_lea.vmem [#allocation10], %s277
        %s279 = smul.u32 4, %s25
        %s280 = smul.u32 4, %s25
        %s281 = smul.u32 4, %s25
        %v283 = vld [vmem:[#allocation2] sm:$0xf]
        %v284 = vld [vmem:[%s236] sm:$0xff]
        %v285 = vld [vmem:[%s236 + $0x8] sm:$0xff]
        %v286 = vld [vmem:[%s236 + $0x10] sm:$0xff]
        %v287 = vld [vmem:[%s236 + $0x18] sm:$0xff]
        %v288 = vld [vmem:[%s236 + $0x20] sm:$0xff]
        %v289 = vld [vmem:[%s236 + $0x28] sm:$0xff]
        %v290 = vld [vmem:[%s236 + $0x30] sm:$0xff]
        %v291 = vld [vmem:[%s236 + $0x38] sm:$0xff]
        %v292 = vld [vmem:[%s236 + $0x40] sm:$0xff]
        %v293 = vld [vmem:[%s236 + $0x48] sm:$0xff]
        %v294 = vld [vmem:[%s236 + $0x50] sm:$0xff]
        %v295 = vld [vmem:[%s236 + $0x58] sm:$0xff]
        %v296 = vld [vmem:[#allocation7] sm:$0xff]
        %298 = vset.pattern.permute.xlu0 0
        %299 = vperm.xlu0 %298, %v296
        %v300 = vpop.permute.xlu0 %299
        %v314 = vunpack.c.l.b16 %v284
        %v315 = vunpack.c.h.b16 %v284
        %v316 = vunpack.c.l.b16 %v285
        %v317 = vunpack.c.h.b16 %v285
        %v318 = vunpack.c.l.b16 %v286
        %v319 = vunpack.c.h.b16 %v286
        %v320 = vunpack.c.l.b16 %v287
        %v321 = vunpack.c.h.b16 %v287
        %v322 = vunpack.c.l.b16 %v288
        %v323 = vunpack.c.h.b16 %v288
        %v324 = vunpack.c.l.b16 %v289
        %v325 = vunpack.c.h.b16 %v289
        %v326 = vunpack.c.l.b16 %v290
        %v327 = vunpack.c.h.b16 %v290
        %v328 = vunpack.c.l.b16 %v291
        %v329 = vunpack.c.h.b16 %v291
        %v330 = vunpack.c.l.b16 %v292
        %v331 = vunpack.c.h.b16 %v292
        %v332 = vunpack.c.l.b16 %v293
        %v333 = vunpack.c.h.b16 %v293
        %v334 = vunpack.c.l.b16 %v294
        %v335 = vunpack.c.h.b16 %v294
        %v336 = vunpack.c.l.b16 %v295
        %v337 = vunpack.c.h.b16 %v295
        %v338 = vpack.c.b16 %v318, %v314
        %v339 = vpack.c.b16 %v319, %v315
        %v340 = vpack.c.b16 %v320, %v316
        %v341 = vpack.c.b16 %v321, %v317
        %v342 = vpack.c.b16 %v326, %v322
        %v343 = vpack.c.b16 %v327, %v323
        %v344 = vpack.c.b16 %v328, %v324
        %v345 = vpack.c.b16 %v329, %v325
        %v346 = vpack.c.b16 %v334, %v330
        %v347 = vpack.c.b16 %v335, %v331
        %v348 = vpack.c.b16 %v336, %v332
        %v349 = vpack.c.b16 %v337, %v333
        %vm362 = vcmask 392192
        %v364 = vsel %vm362, %v283, 0
        %366 = vmatprep.subr.bf16.mxu0 %v339
        %367 = vmatpush1.bf16.msra.mxu0 %v338
        %368 = vmatprep.subr.bf16.mxu0 %v343
        %369 = vmatpush1.bf16.msra.mxu0 %v342
        %370 = vmatprep.subr.bf16.mxu0 %v347
        %371 = vmatpush1.bf16.msra.mxu0 %v346
        %372 = vmatprep.subr.bf16.mxu0 0
        %373 = vmatpush1.bf16.msra.mxu0 0
        %374 = vmatprep.subr.bf16.mxu0 0
        %375 = vmatpush1.bf16.msra.mxu0 0
        %376 = vmatprep.subr.bf16.mxu0 0
        %377 = vmatpush1.bf16.msra.mxu0 0
        %378 = vmatprep.subr.bf16.mxu0 0
        %379 = vmatpush1.bf16.msra.mxu0 0
        %380 = vmatprep.subr.bf16.mxu0 0
        %381 = vmatpush1.bf16.msra.mxu0 0
        %382 = vmatprep.subr.bf16.mxu0 0
        %383 = vmatpush1.bf16.msra.mxu0 0
        %384 = vmatprep.subr.bf16.mxu0 0
        %385 = vmatpush1.bf16.msra.mxu0 0
        %386 = vmatprep.subr.bf16.mxu0 0
        %387 = vmatpush1.bf16.msra.mxu0 0
        %388 = vmatprep.subr.bf16.mxu0 0
        %389 = vmatpush1.bf16.msra.mxu0 0
        %390 = vmatprep.subr.bf16.mxu0 0
        %391 = vmatpush1.bf16.msra.mxu0 0
        %392 = vmatprep.subr.bf16.mxu0 0
        %393 = vmatpush1.bf16.msra.mxu0 0
        %394 = vmatprep.subr.bf16.mxu0 0
        %395 = vmatpush1.bf16.msra.mxu0 0
        %396 = vmatprep.subr.bf16.mxu0 0
        %397 = vmatpush1.bf16.msra.mxu0 0
        %398 = vmatprep.mubr.bf16.mxu0 0
        %399 = vmatmul.mubr.bf16.gmra.mrb[0].mxu0 %v364
        %v400 = vpop.f32.mrb[0].mxu0
        %v401 = vadd.f32 %v300, %v400
        %v402 = vpop.f32.mrb[0].mxu0
        %v403 = vadd.f32 %v300, %v402
        %v404 = vpop.f32.mrb[0].mxu0
        %v405 = vpop.f32.mrb[0].mxu0
        %406 = vdwg.mxu0
        %407 = vmatprep.subr.bf16.mxu0 %v341
        %408 = vmatpush1.bf16.msra.mxu0 %v340
        %409 = vmatprep.subr.bf16.mxu0 %v345
        %410 = vmatpush1.bf16.msra.mxu0 %v344
        %411 = vmatprep.subr.bf16.mxu0 %v349
        %412 = vmatpush1.bf16.msra.mxu0 %v348
        %413 = vmatprep.subr.bf16.mxu0 0
        %414 = vmatpush1.bf16.msra.mxu0 0
        %415 = vmatprep.subr.bf16.mxu0 0
        %416 = vmatpush1.bf16.msra.mxu0 0
        %417 = vmatprep.subr.bf16.mxu0 0
        %418 = vmatpush1.bf16.msra.mxu0 0
        %419 = vmatprep.subr.bf16.mxu0 0
        %420 = vmatpush1.bf16.msra.mxu0 0
        %421 = vmatprep.subr.bf16.mxu0 0
        %422 = vmatpush1.bf16.msra.mxu0 0
        %423 = vmatprep.subr.bf16.mxu0 0
        %424 = vmatpush1.bf16.msra.mxu0 0
        %425 = vmatprep.subr.bf16.mxu0 0
        %426 = vmatpush1.bf16.msra.mxu0 0
        %427 = vmatprep.subr.bf16.mxu0 0
        %428 = vmatpush1.bf16.msra.mxu0 0
        %429 = vmatprep.subr.bf16.mxu0 0
        %430 = vmatpush1.bf16.msra.mxu0 0
        %431 = vmatprep.subr.bf16.mxu0 0
        %432 = vmatpush1.bf16.msra.mxu0 0
        %433 = vmatprep.subr.bf16.mxu0 0
        %434 = vmatpush1.bf16.msra.mxu0 0
        %435 = vmatprep.subr.bf16.mxu0 0
        %436 = vmatpush1.bf16.msra.mxu0 0
        %437 = vmatprep.subr.bf16.mxu0 0
        %438 = vmatpush1.bf16.msra.mxu0 0
        %439 = vmatprep.mubr.bf16.mxu0 0
        %440 = vmatmul.mubr.bf16.gmra.mrb[0].mxu0 %v364
        %v441 = vpop.f32.mrb[0].mxu0
        %v442 = vadd.f32 %v300, %v441
        %v443 = vpop.f32.mrb[0].mxu0
        %v444 = vadd.f32 %v300, %v443
        %v445 = vpop.f32.mrb[0].mxu0
        %v446 = vpop.f32.mrb[0].mxu0
        %447 = vdwg.mxu0
        %v448 = vld [vmem:[%s249] sm:$0xff]
        %v449 = vld [vmem:[%s249 + $0x8] sm:$0xff]
        %v450 = vld [vmem:[%s249 + $0x10] sm:$0xff]
        %v451 = vld [vmem:[%s249 + $0x18] sm:$0xff]
        %v452 = vadd.f32 %v401, %v448
        %v453 = vadd.f32 %v403, %v449
        %v454 = vadd.f32 %v442, %v450
        %v455 = vadd.f32 %v444, %v451
        %456 = vst [vmem:[%s278] sm:$0xff] %v452
        %457 = vst [vmem:[%s278 + $0x8] sm:$0xff] %v453
        %458 = vst [vmem:[%s278 + $0x10] sm:$0xff] %v454
        %459 = vst [vmem:[%s278 + $0x18] sm:$0xff] %v455
        %s460 = sand.u32 %s127, 1
        %s461 = scalar_lea.sflag [#allocation4], %s460
        %s462 = sand.u32 %s127, 1
        %s463 = smul.addr %s462, 32
        %s464 = scalar_lea.vmem [#allocation10], %s463
        // Predicated region
        $region53: #{mtgnn_forward.12} parent=35 // pred_check
          %p465 = pneg %p137
        $region54: #{mtgnn_forward.12} parent=35 // pred_check_branch
          %467 = sbr.rel (%p465) target = $region56
        $region55: #{mtgnn_forward.12} parent=35 // pred_region
          %s468 = smul.u32 4, %s25
          %s470 = ssub.s32 512, 512
          %471 = vsyncadd %s461, %s470
          %s472 = smul.addr %s468, 128
          %s473 = scalar_lea.hbm %s4, %s472
          %s475 = sshll.u32 %s464, 4
          %s476 = int_to_ptr.vmem [resolvable:$true] %s475
          %478 = dma.vmem_to_hbm [thread:$0]  %s476, 512, %s473, %s461
        $region56: #{mtgnn_forward.12} parent=35 // pred_fallthru
          _
      $region36: #{mtgnn_forward.12} parent=5 // pred_fallthru
        _
      %p479 = scmp.le.s32.totalorder 2, %s20
      // Predicated region
      $region57: #{mtgnn_forward.12} parent=5 // pred_check
        %p480 = pneg %p479
      $region58: #{mtgnn_forward.12} parent=5 // pred_check_branch
        %482 = sbr.rel (%p480) target = $region60
      $region59: #{mtgnn_forward.12} parent=5 // pred_region
        %s483 = ssub.s32 %s20, 2
        // Predicated region
        $region61: #{mtgnn_forward.12} parent=59 // pred_check
          %p484 = pneg %p143
        $region62: #{mtgnn_forward.12} parent=59 // pred_check_branch
          %486 = sbr.rel (%p484) target = $region64
        $region63: #{mtgnn_forward.12} parent=59 // pred_region
          %s487 = sand.u32 %s128, 1
          %s488 = scalar_lea.sflag [#allocation4], %s487
          %s489 = sand.u32 %s128, 1
          %s490 = smul.addr %s489, 32
          %s491 = scalar_lea.vmem [#allocation10], %s490
          %492 = dma.done %s488, 512
        $region64: #{mtgnn_forward.12} parent=59 // pred_fallthru
          _
      $region60: #{mtgnn_forward.12} parent=5 // pred_fallthru
        _
    $region6: #{mtgnn_forward.12} parent=1 // loop_footer
      %s24 = sadd.s32 1, %s20
    $region7: #{mtgnn_forward.12} parent=1 // loop_footer_branch
      %19 = sbr.rel target = $region3
    $region8: #{mtgnn_forward.12} parent=1 // loop_exit
      _
    %493 = vsyncpa [#allocation3], 1
    %s494 = scalar_lea.sflag [#allocation3], 1
    %495 = vsyncpa %s494, 1
    %496 = vsyncpa [#allocation6], 1
    %s497 = scalar_lea.sflag [#allocation6], 1
    %498 = vsyncpa %s497, 1
    %499 = vsyncpa [#allocation9], 1
    %s500 = scalar_lea.sflag [#allocation9], 1
    %501 = vsyncpa %s500, 1
    %502 = vsyncpa [#allocation4], 1
    %s503 = scalar_lea.sflag [#allocation4], 1
    %504 = vsyncpa %s503, 1

// kernel: mtgnn_forward.13
$region0: #{mtgnn_forward.13}
  #allocation0 [shape = 'u32[]', space=smem, size = 0x4, offset = 0x4, fixed_abs, tag = 'smem constant byte address 0x4 - core index']
  #allocation1 [shape = 'u32[144,128]{1,0:T(1,128)}', space=vmem, size = 0x12000, scoped, tag = 'internal scratch']
  %s0 = inlined_call_operand.hbm [shape: f32[2,8,8,10], index: 0, kind: input, shape index: {}]
  %s1 = inlined_call_operand.hbm [shape: f32[8,8,10], index: 1, kind: input, shape index: {}]
  %s2 = inlined_call_operand.hbm [shape: f32[8,8,10], index: 2, kind: input, shape index: {}]
  %s3 = inlined_call_operand.hbm [shape: f32[2,8,8,10], index: 3, kind: output, shape index: {}]
  %s4 = sld [smem:[#allocation0]]
  $region57: #{mtgnn_forward.13} parent=0
    _
  %s6 = ssub.s32 1, %s4
  %s7 = scalar_select 0, %s6, %s4
  $region1: #{mtgnn_forward.13} parent=0
    #allocation2 [shape = 'u8[65536]{0}', space=vmem, size = 0x10000, scoped, tag = 'input window, operand 0']
    #allocation3 [shape = 's32[2]{0}', space=sflag, size = 0x8, scoped, tag = 'scoped memory for mtgnn_forward.13']
    #allocation4 [shape = 's32[2]{0}', space=sflag, size = 0x8, scoped, tag = 'scoped memory for mtgnn_forward.13']
    #allocation5 [shape = 'u8[32768]{0}', space=vmem, size = 0x8000, scoped, tag = 'input window, operand 1, single buffered']
    #allocation6 [shape = 's32[1]{0}', space=sflag, size = 0x4, scoped, tag = 'scoped memory for mtgnn_forward.13']
    #allocation7 [shape = 'u8[32768]{0}', space=vmem, size = 0x8000, scoped, tag = 'input window, operand 2, single buffered']
    #allocation8 [shape = 'u8[65536]{0}', space=vmem, size = 0x10000, scoped, tag = 'output window, operand 0']
    %8 = vsyncpa [#allocation3], 0
    %s9 = scalar_lea.sflag [#allocation3], 1
    %10 = vsyncpa %s9, 0
    %11 = vsyncpa [#allocation6], 0
    %12 = vsyncpa [#allocation4], 0
    %s13 = scalar_lea.sflag [#allocation4], 1
    %14 = vsyncpa %s13, 0
    loop: start=0, step=1, limit=4
    $region2: #{mtgnn_forward.13} parent=1 // loop_pre_header
      _
    $region3: #{mtgnn_forward.13} parent=1 // loop_header
      %s16 = sphi 0, %s20
      %p17 = scmp.ge.s32.totalorder %s16, 4
      %s26 = sphi 0, %s28
      %s29 = sphi 0, %s26
      %s30 = sphi 0, %s29
      %s46 = sphi 0, %s30
      %s50 = sphi 0, %s50
      %s52 = sphi 0, %s50
      %s53 = sphi 0, %s52
      %s67 = sphi 0, %s53
      %s71 = sphi 0, %s71
      %s73 = sphi 0, %s71
      %s74 = sphi 0, %s73
      %s88 = sphi 0, %s74
      %s94 = sphi 0, %s96
      %s97 = sphi 0, %s94
      %s98 = sphi 0, %s97
      %s114 = sphi 0, %s98
    $region4: #{mtgnn_forward.13} parent=1 // loop_header_branch
      %19 = sbr.rel (%p17) target = $region8
    $region5: #{mtgnn_forward.13} parent=1 // loop_body
      %s21 = ssub.s32 %s16, 1
      %s22 = ssub.s32 %s16, 2
      %s23 = sadd.s32 %s16, 1
      %s24 = ssub.s32 %s16, %s23
      %p25 = scmp.eq.s32.totalorder %s24, 0
      %s27 = sadd.s32 %s26, 1
      %s28 = scalar_select %p25, %s26, %s27
      %p31 = pneg %p25
      %p32 = scmp.eq.s32.totalorder %s16, 1
      %p33 = por %p31, %p32
      %p34 = scmp.ne.s32.totalorder %s26, %s29
      %p35 = scmp.eq.s32.totalorder %s16, 0
      %p36 = por %p34, %p35
      %p37 = scmp.ne.s32.totalorder %s26, %s29
      %p38 = scmp.eq.s32.totalorder %s21, 1
      %p39 = por %p37, %p38
      %p40 = scmp.ne.s32.totalorder %s29, %s30
      %p41 = scmp.eq.s32.totalorder %s21, 0
      %p42 = por %p40, %p41
      %p43 = scmp.ne.s32.totalorder %s29, %s30
      %p44 = scmp.eq.s32.totalorder %s22, 1
      %p45 = por %p43, %p44
      %p47 = scmp.ne.s32.totalorder %s30, %s46
      %p48 = scmp.eq.s32.totalorder %s22, 0
      %p49 = por %p47, %p48
      %s51 = sadd.s32 %s50, 1
      %p54 = scmp.eq.s32.totalorder %s16, 1
      %p55 = scmp.ne.s32.totalorder %s50, %s52
      %p56 = scmp.eq.s32.totalorder %s16, 0
      %p57 = por %p55, %p56
      %p58 = scmp.ne.s32.totalorder %s50, %s52
      %p59 = scmp.eq.s32.totalorder %s21, 1
      %p60 = por %p58, %p59
      %p61 = scmp.ne.s32.totalorder %s52, %s53
      %p62 = scmp.eq.s32.totalorder %s21, 0
      %p63 = por %p61, %p62
      %p64 = scmp.ne.s32.totalorder %s52, %s53
      %p65 = scmp.eq.s32.totalorder %s22, 1
      %p66 = por %p64, %p65
      %p68 = scmp.ne.s32.totalorder %s53, %s67
      %p69 = scmp.eq.s32.totalorder %s22, 0
      %p70 = por %p68, %p69
      %s72 = sadd.s32 %s71, 1
      %p75 = scmp.eq.s32.totalorder %s16, 1
      %p76 = scmp.ne.s32.totalorder %s71, %s73
      %p77 = scmp.eq.s32.totalorder %s16, 0
      %p78 = por %p76, %p77
      %p79 = scmp.ne.s32.totalorder %s71, %s73
      %p80 = scmp.eq.s32.totalorder %s21, 1
      %p81 = por %p79, %p80
      %p82 = scmp.ne.s32.totalorder %s73, %s74
      %p83 = scmp.eq.s32.totalorder %s21, 0
      %p84 = por %p82, %p83
      %p85 = scmp.ne.s32.totalorder %s73, %s74
      %p86 = scmp.eq.s32.totalorder %s22, 1
      %p87 = por %p85, %p86
      %p89 = scmp.ne.s32.totalorder %s74, %s88
      %p90 = scmp.eq.s32.totalorder %s22, 0
      %p91 = por %p89, %p90
      %s92 = ssub.s32 %s16, %s23
      %p93 = scmp.eq.s32.totalorder %s92, 0
      %s95 = sadd.s32 %s94, 1
      %s96 = scalar_select %p93, %s94, %s95
      %p99 = pneg %p93
      %p100 = scmp.eq.s32.totalorder %s16, 1
      %p101 = por %p99, %p100
      %p102 = scmp.ne.s32.totalorder %s94, %s97
      %p103 = scmp.eq.s32.totalorder %s16, 0
      %p104 = por %p102, %p103
      %p105 = scmp.ne.s32.totalorder %s94, %s97
      %p106 = scmp.eq.s32.totalorder %s21, 1
      %p107 = por %p105, %p106
      %p108 = scmp.ne.s32.totalorder %s97, %s98
      %p109 = scmp.eq.s32.totalorder %s21, 0
      %p110 = por %p108, %p109
      %p111 = scmp.ne.s32.totalorder %s97, %s98
      %p112 = scmp.eq.s32.totalorder %s22, 1
      %p113 = por %p111, %p112
      %p115 = scmp.ne.s32.totalorder %s98, %s114
      %p116 = scmp.eq.s32.totalorder %s22, 0
      %p117 = por %p115, %p116
      %p118 = scmp.le.s32.totalorder 1, %s16
      %p119 = scmp.lt.s32.totalorder %s16, 3
      %p120 = pnand %p118, %p119
      %p121 = pneg %p120
      // Predicated region
      $region9: #{mtgnn_forward.13} parent=5 // pred_check
        _
      $region10: #{mtgnn_forward.13} parent=5 // pred_check_branch
        %123 = sbr.rel (%p120) target = $region12
      $region11: #{mtgnn_forward.13} parent=5 // pred_region
        %s124 = ssub.s32 %s16, 1
        // Predicated region
        $region13: #{mtgnn_forward.13} parent=11 // pred_check
          %p125 = pneg %p63
        $region14: #{mtgnn_forward.13} parent=11 // pred_check_branch
          %127 = sbr.rel (%p125) target = $region16
        $region15: #{mtgnn_forward.13} parent=11 // pred_region
          %s129 = ssub.s32 1024, 1024
          %130 = vsyncadd [#allocation6], %s129
          %s131 = sshll.u32 [#allocation5], 4
          %s132 = int_to_ptr.vmem [resolvable:$true] %s131
          %137 = dma.hbm_to_vmem [thread:$0]  %s1, 1024, %s132, [#allocation6], 128, 128, 8
        $region16: #{mtgnn_forward.13} parent=11 // pred_fallthru
          _
        // Predicated region
        $region17: #{mtgnn_forward.13} parent=11 // pred_check
          %p138 = pneg %p84
        $region18: #{mtgnn_forward.13} parent=11 // pred_check_branch
          %140 = sbr.rel (%p138) target = $region20
        $region19: #{mtgnn_forward.13} parent=11 // pred_region
          %s142 = ssub.s32 1024, 1024
          %143 = vsyncadd [#allocation6], %s142
          %s144 = sshll.u32 [#allocation7], 4
          %s145 = int_to_ptr.vmem [resolvable:$true] %s144
          %150 = dma.hbm_to_vmem [thread:$0]  %s2, 1024, %s145, [#allocation6], 128, 128, 8
        $region20: #{mtgnn_forward.13} parent=11 // pred_fallthru
          _
      $region12: #{mtgnn_forward.13} parent=5 // pred_fallthru
        _
      %p151 = scmp.lt.s32.totalorder %s16, 2
      // Predicated region
      $region21: #{mtgnn_forward.13} parent=5 // pred_check
        %p152 = pneg %p151
      $region22: #{mtgnn_forward.13} parent=5 // pred_check_branch
        %154 = sbr.rel (%p152) target = $region24
      $region23: #{mtgnn_forward.13} parent=5 // pred_region
        // Predicated region
        $region25: #{mtgnn_forward.13} parent=23 // pred_check
          %p155 = pneg %p36
        $region26: #{mtgnn_forward.13} parent=23 // pred_check_branch
          %157 = sbr.rel (%p155) target = $region28
        $region27: #{mtgnn_forward.13} parent=23 // pred_region
          %s158 = sand.u32 %s26, 1
          %s159 = scalar_lea.sflag [#allocation3], %s158
          %s160 = sand.u32 %s26, 1
          %s161 = smul.addr %s160, 64
          %s162 = scalar_lea.vmem [#allocation2], %s161
          %s164 = ssub.s32 1024, 1024
          %165 = vsyncadd %s159, %s164
          %s166 = smul.addr %s16, 8
          %s167 = smul.addr %s166, 128
          %s168 = scalar_lea.hbm %s0, %s167
          %s169 = sshll.u32 %s162, 4
          %s170 = int_to_ptr.vmem [resolvable:$true] %s169
          %175 = dma.hbm_to_vmem [thread:$0]  %s168, 1024, %s170, %s159, 128, 128, 8
        $region28: #{mtgnn_forward.13} parent=23 // pred_fallthru
          _
      $region24: #{mtgnn_forward.13} parent=5 // pred_fallthru
        _
      %p176 = scmp.le.s32.totalorder 1, %s16
      %p177 = scmp.lt.s32.totalorder %s16, 3
      %p178 = pnand %p176, %p177
      %p179 = pneg %p178
      // Predicated region
      $region29: #{mtgnn_forward.13} parent=5 // pred_check
        _
      $region30: #{mtgnn_forward.13} parent=5 // pred_check_branch
        %181 = sbr.rel (%p178) target = $region32
      $region31: #{mtgnn_forward.13} parent=5 // pred_region
        %s182 = ssub.s32 %s16, 1
        %s183 = sand.u32 %s29, 1
        %s184 = scalar_lea.sflag [#allocation3], %s183
        %s185 = sand.u32 %s29, 1
        %s186 = smul.addr %s185, 64
        %s187 = scalar_lea.vmem [#allocation2], %s186
        // Predicated region
        $region33: #{mtgnn_forward.13} parent=31 // pred_check
          %p188 = pneg %p42
        $region34: #{mtgnn_forward.13} parent=31 // pred_check_branch
          %190 = sbr.rel (%p188) target = $region36
        $region35: #{mtgnn_forward.13} parent=31 // pred_region
          %191 = dma.done %s184, 1024
        $region36: #{mtgnn_forward.13} parent=31 // pred_fallthru
          _
        // Predicated region
        $region37: #{mtgnn_forward.13} parent=31 // pred_check
          %p192 = pneg %p63
        $region38: #{mtgnn_forward.13} parent=31 // pred_check_branch
          %194 = sbr.rel (%p192) target = $region40
        $region39: #{mtgnn_forward.13} parent=31 // pred_region
          %195 = dma.done [#allocation6], 1024
        $region40: #{mtgnn_forward.13} parent=31 // pred_fallthru
          _
        // Predicated region
        $region41: #{mtgnn_forward.13} parent=31 // pred_check
          %p196 = pneg %p84
        $region42: #{mtgnn_forward.13} parent=31 // pred_check_branch
          %198 = sbr.rel (%p196) target = $region44
        $region43: #{mtgnn_forward.13} parent=31 // pred_region
          %199 = dma.done [#allocation6], 1024
        $region44: #{mtgnn_forward.13} parent=31 // pred_fallthru
          _
        %s200 = sand.u32 %s29, 1
        %s201 = scalar_lea.sflag [#allocation3], %s200
        %s202 = sand.u32 %s29, 1
        %s203 = smul.addr %s202, 64
        %s204 = scalar_lea.vmem [#allocation2], %s203
        %p205 = pneg %p42
        %p206 = pneg %p39
        %p207 = pneg %p63
        %p208 = pneg %p60
        %p209 = pneg %p84
        %p210 = pneg %p81
        %p211 = pneg %p110
        %p212 = pneg %p107
        %s213 = sand.u32 %s97, 1
        %s214 = scalar_lea.sflag [#allocation4], %s213
        %s215 = sand.u32 %s97, 1
        %s216 = smul.addr %s215, 64
        %s217 = scalar_lea.vmem [#allocation8], %s216
        %v218 = vld [vmem:[%s187] sm:$0xff]
        %v219 = vld [vmem:[%s187 + $0x8] sm:$0xff]
        %v220 = vld [vmem:[%s187 + $0x10] sm:$0xff]
        %v221 = vld [vmem:[%s187 + $0x18] sm:$0xff]
        %v222 = vld [vmem:[%s187 + $0x20] sm:$0xff]
        %v223 = vld [vmem:[%s187 + $0x28] sm:$0xff]
        %v224 = vld [vmem:[%s187 + $0x30] sm:$0xff]
        %v225 = vld [vmem:[%s187 + $0x38] sm:$0xff]
        %vm226 = vcmask 80896
        %v227 = vsel %vm226, %v218, 0.0
        %v228 = vsel %vm226, %v219, 0.0
        %v229 = vadd.f32 %v227, %v228
        %v230 = vsel %vm226, %v220, 0.0
        %v231 = vadd.f32 %v229, %v230
        %v232 = vsel %vm226, %v221, 0.0
        %v233 = vadd.f32 %v231, %v232
        %v234 = vsel %vm226, %v222, 0.0
        %v235 = vadd.f32 %v233, %v234
        %v236 = vsel %vm226, %v223, 0.0
        %v237 = vadd.f32 %v235, %v236
        %v238 = vsel %vm226, %v224, 0.0
        %v239 = vadd.f32 %v237, %v238
        %v240 = vsel %vm226, %v225, 0.0
        %v241 = vadd.f32 %v239, %v240
        %242 = vadd.xlane.f32.xlu0 %v241
        %v243 = vpop.xlane.xlu0 %242
        %v244 = vrot.slane %v243, 4
        %v245 = vadd.f32 %v243, %v244
        %v246 = vrot.slane %v245, 2
        %v247 = vadd.f32 %v245, %v246
        %v248 = vrot.slane %v247, 1
        %v249 = vadd.f32 %v247, %v248
        %s250 = vtos %v249
        %v251 = vrcp.pop 640.0
        %s252 = vtos %v251
        %s253 = smul.f32 %s250, %s252
        %v254 = vstv %s253
        %v255 = vsub.f32 %v218, %v254
        %v256 = vsub.f32 %v219, %v254
        %v257 = vsub.f32 %v220, %v254
        %v258 = vsub.f32 %v221, %v254
        %v259 = vsub.f32 %v222, %v254
        %v260 = vsub.f32 %v223, %v254
        %v261 = vsub.f32 %v224, %v254
        %v262 = vsub.f32 %v225, %v254
        %v263 = vmul.f32 %v255, %v255
        %v264 = vmul.f32 %v256, %v256
        %v265 = vmul.f32 %v257, %v257
        %v266 = vmul.f32 %v258, %v258
        %v267 = vmul.f32 %v259, %v259
        %v268 = vmul.f32 %v260, %v260
        %v269 = vmul.f32 %v261, %v261
        %v270 = vmul.f32 %v262, %v262
        %v271 = vsel %vm226, %v263, 0.0
        %v272 = vsel %vm226, %v264, 0.0
        %v273 = vadd.f32 %v271, %v272
        %v274 = vsel %vm226, %v265, 0.0
        %v275 = vadd.f32 %v273, %v274
        %v276 = vsel %vm226, %v266, 0.0
        %v277 = vadd.f32 %v275, %v276
        %v278 = vsel %vm226, %v267, 0.0
        %v279 = vadd.f32 %v277, %v278
        %v280 = vsel %vm226, %v268, 0.0
        %v281 = vadd.f32 %v279, %v280
        %v282 = vsel %vm226, %v269, 0.0
        %v283 = vadd.f32 %v281, %v282
        %v284 = vsel %vm226, %v270, 0.0
        %v285 = vadd.f32 %v283, %v284
        %286 = vadd.xlane.f32.xlu0 %v285
        %v287 = vpop.xlane.xlu0 %286
        %v288 = vrot.slane %v287, 4
        %v289 = vadd.f32 %v287, %v288
        %v290 = vrot.slane %v289, 2
        %v291 = vadd.f32 %v289, %v290
        %v292 = vrot.slane %v291, 1
        %v293 = vadd.f32 %v291, %v292
        %s294 = vtos %v293
        %v295 = vrcp.pop 640.0
        %s296 = vtos %v295
        %s297 = smul.f32 %s294, %s296
        %s298 = sadd.f32 %s297, 1e-05
        %v299 = vstv %s298
        %v300 = vrsqrt.pop %v299
        %s301 = vtos %v300
        %v302 = vstv %s301
        %v303 = vmul.f32 %v255, %v302
        %v304 = vmul.f32 %v256, %v302
        %v305 = vmul.f32 %v257, %v302
        %v306 = vmul.f32 %v258, %v302
        %v307 = vmul.f32 %v259, %v302
        %v308 = vmul.f32 %v260, %v302
        %v309 = vmul.f32 %v261, %v302
        %v310 = vmul.f32 %v262, %v302
        %v311 = vld [vmem:[#allocation5] sm:$0xff]
        %v312 = vld [vmem:[#allocation5 + $0x8] sm:$0xff]
        %v313 = vld [vmem:[#allocation5 + $0x10] sm:$0xff]
        %v314 = vld [vmem:[#allocation5 + $0x18] sm:$0xff]
        %v315 = vld [vmem:[#allocation5 + $0x20] sm:$0xff]
        %v316 = vld [vmem:[#allocation5 + $0x28] sm:$0xff]
        %v317 = vld [vmem:[#allocation5 + $0x30] sm:$0xff]
        %v318 = vld [vmem:[#allocation5 + $0x38] sm:$0xff]
        %v319 = vmul.f32 %v303, %v311
        %v320 = vmul.f32 %v304, %v312
        %v321 = vmul.f32 %v305, %v313
        %v322 = vmul.f32 %v306, %v314
        %v323 = vmul.f32 %v307, %v315
        %v324 = vmul.f32 %v308, %v316
        %v325 = vmul.f32 %v309, %v317
        %v326 = vmul.f32 %v310, %v318
        %v327 = vld [vmem:[#allocation7] sm:$0xff]
        %v328 = vld [vmem:[#allocation7 + $0x8] sm:$0xff]
        %v329 = vld [vmem:[#allocation7 + $0x10] sm:$0xff]
        %v330 = vld [vmem:[#allocation7 + $0x18] sm:$0xff]
        %v331 = vld [vmem:[#allocation7 + $0x20] sm:$0xff]
        %v332 = vld [vmem:[#allocation7 + $0x28] sm:$0xff]
        %v333 = vld [vmem:[#allocation7 + $0x30] sm:$0xff]
        %v334 = vld [vmem:[#allocation7 + $0x38] sm:$0xff]
        %v335 = vadd.f32 %v319, %v327
        %v336 = vadd.f32 %v320, %v328
        %v337 = vadd.f32 %v321, %v329
        %v338 = vadd.f32 %v322, %v330
        %v339 = vadd.f32 %v323, %v331
        %v340 = vadd.f32 %v324, %v332
        %v341 = vadd.f32 %v325, %v333
        %v342 = vadd.f32 %v326, %v334
        %343 = vst.msk [vmem:[%s217] sm:$0xff] %vm226, %v335
        %344 = vst.msk [vmem:[%s217 + $0x8] sm:$0xff] %vm226, %v336
        %345 = vst.msk [vmem:[%s217 + $0x10] sm:$0xff] %vm226, %v337
        %346 = vst.msk [vmem:[%s217 + $0x18] sm:$0xff] %vm226, %v338
        %347 = vst.msk [vmem:[%s217 + $0x20] sm:$0xff] %vm226, %v339
        %348 = vst.msk [vmem:[%s217 + $0x28] sm:$0xff] %vm226, %v340
        %349 = vst.msk [vmem:[%s217 + $0x30] sm:$0xff] %vm226, %v341
        %350 = vst.msk [vmem:[%s217 + $0x38] sm:$0xff] %vm226, %v342
        %s351 = sand.u32 %s97, 1
        %s352 = scalar_lea.sflag [#allocation4], %s351
        %s353 = sand.u32 %s97, 1
        %s354 = smul.addr %s353, 64
        %s355 = scalar_lea.vmem [#allocation8], %s354
        // Predicated region
        $region45: #{mtgnn_forward.13} parent=31 // pred_check
          %p356 = pneg %p107
        $region46: #{mtgnn_forward.13} parent=31 // pred_check_branch
          %358 = sbr.rel (%p356) target = $region48
        $region47: #{mtgnn_forward.13} parent=31 // pred_region
          %s360 = ssub.s32 1024, 1024
          %361 = vsyncadd %s352, %s360
          %s362 = smul.addr %s21, 8
          %s363 = smul.addr %s362, 128
          %s364 = scalar_lea.hbm %s3, %s363
          %s365 = sshll.u32 %s355, 4
          %s366 = int_to_ptr.vmem [resolvable:$true] %s365
          %371 = dma.vmem_to_hbm [thread:$0]  %s366, 1024, %s364, %s352, 128, 128, 8
        $region48: #{mtgnn_forward.13} parent=31 // pred_fallthru
          _
      $region32: #{mtgnn_forward.13} parent=5 // pred_fallthru
        _
      %p372 = scmp.le.s32.totalorder 2, %s16
      // Predicated region
      $region49: #{mtgnn_forward.13} parent=5 // pred_check
        %p373 = pneg %p372
      $region50: #{mtgnn_forward.13} parent=5 // pred_check_branch
        %375 = sbr.rel (%p373) target = $region52
      $region51: #{mtgnn_forward.13} parent=5 // pred_region
        %s376 = ssub.s32 %s16, 2
        // Predicated region
        $region53: #{mtgnn_forward.13} parent=51 // pred_check
          %p377 = pneg %p113
        $region54: #{mtgnn_forward.13} parent=51 // pred_check_branch
          %379 = sbr.rel (%p377) target = $region56
        $region55: #{mtgnn_forward.13} parent=51 // pred_region
          %s380 = sand.u32 %s98, 1
          %s381 = scalar_lea.sflag [#allocation4], %s380
          %s382 = sand.u32 %s98, 1
          %s383 = smul.addr %s382, 64
          %s384 = scalar_lea.vmem [#allocation8], %s383
          %385 = dma.done %s381, 1024
        $region56: #{mtgnn_forward.13} parent=51 // pred_fallthru
          _
      $region52: #{mtgnn_forward.13} parent=5 // pred_fallthru
        _
    $region6: #{mtgnn_forward.13} parent=1 // loop_footer
      %s20 = sadd.s32 1, %s16
    $region7: #{mtgnn_forward.13} parent=1 // loop_footer_branch
      %15 = sbr.rel target = $region3
    $region8: #{mtgnn_forward.13} parent=1 // loop_exit
      _
    %386 = vsyncpa [#allocation3], 1
    %s387 = scalar_lea.sflag [#allocation3], 1
    %388 = vsyncpa %s387, 1
    %389 = vsyncpa [#allocation6], 1
    %390 = vsyncpa [#allocation4], 1
    %s391 = scalar_lea.sflag [#allocation4], 1
    %392 = vsyncpa %s391, 1

// kernel: mtgnn_forward.14
$region0: #{mtgnn_forward.14}
  #allocation0 [shape = 'u32[]', space=smem, size = 0x4, offset = 0x4, fixed_abs, tag = 'smem constant byte address 0x4 - core index']
  #allocation1 [shape = 'u32[144,128]{1,0:T(1,128)}', space=vmem, size = 0x12000, scoped, tag = 'internal scratch']
  %s0 = inlined_call_operand.hbm [shape: bf16[56,128], index: 0, kind: input, shape index: {}]
  %s1 = inlined_call_operand.hbm [shape: bf16[16,56], index: 1, kind: input, shape index: {}]
  %s2 = inlined_call_operand.hbm [shape: f32[16,1], index: 2, kind: input, shape index: {}]
  %s3 = inlined_call_operand.hbm [shape: bf16[8,128], index: 3, kind: output, shape index: {}]
  %s4 = sld [smem:[#allocation0]]
  $region34: #{mtgnn_forward.14} parent=0
    _
  %s6 = ssub.s32 1, %s4
  %s7 = scalar_select 0, %s6, %s4
  $region1: #{mtgnn_forward.14} parent=0
    #allocation2 [shape = 'u8[14336]{0}', space=vmem, size = 0x3800, scoped, tag = 'input window, operand 0, single buffered']
    #allocation3 [shape = 's32[1]{0}', space=sflag, size = 0x4, scoped, tag = 'scoped memory for mtgnn_forward.14']
    #allocation4 [shape = 's32[1]{0}', space=sflag, size = 0x4, scoped, tag = 'scoped memory for mtgnn_forward.14']
    #allocation5 [shape = 'u8[4096]{0}', space=vmem, size = 0x1000, scoped, tag = 'input window, operand 1, single buffered']
    #allocation6 [shape = 's32[1]{0}', space=sflag, size = 0x4, scoped, tag = 'scoped memory for mtgnn_forward.14']
    #allocation7 [shape = 'u8[8192]{0}', space=vmem, size = 0x2000, scoped, tag = 'input window, operand 2, single buffered']
    #allocation8 [shape = 'u8[2048]{0}', space=vmem, size = 0x800, scoped, tag = 'output window, operand 0, single buffered']
    %8 = vsyncpa [#allocation3], 0
    %9 = vsyncpa [#allocation6], 0
    %10 = vsyncpa [#allocation4], 0
    // Predicated region
    $region2: #{mtgnn_forward.14} parent=1 // pred_check
      _
    $region3: #{mtgnn_forward.14} parent=1 // pred_check_branch
      %12 = sbr.rel (0) target = $region5
    $region4: #{mtgnn_forward.14} parent=1 // pred_region
      %s14 = ssub.s32 448, 448
      %15 = vsyncadd [#allocation3], %s14
      %s16 = sshll.u32 [#allocation2], 4
      %s17 = int_to_ptr.vmem [resolvable:$true] %s16
      %22 = dma.hbm_to_vmem [thread:$0]  %s0, 448, %s17, [#allocation3], 64, 64, 4
    $region5: #{mtgnn_forward.14} parent=1 // pred_fallthru
      _
    // Predicated region
    $region6: #{mtgnn_forward.14} parent=1 // pred_check
      _
    $region7: #{mtgnn_forward.14} parent=1 // pred_check_branch
      %24 = sbr.rel (0) target = $region9
    $region8: #{mtgnn_forward.14} parent=1 // pred_region
      %s26 = ssub.s32 128, 128
      %27 = vsyncadd [#allocation6], %s26
      %s28 = sshll.u32 [#allocation5], 4
      %s29 = int_to_ptr.vmem [resolvable:$true] %s28
      %34 = dma.hbm_to_vmem [thread:$0]  %s1, 128, %s29, [#allocation6], 64, 64, 4
    $region9: #{mtgnn_forward.14} parent=1 // pred_fallthru
      _
    // Predicated region
    $region10: #{mtgnn_forward.14} parent=1 // pred_check
      _
    $region11: #{mtgnn_forward.14} parent=1 // pred_check_branch
      %36 = sbr.rel (0) target = $region13
    $region12: #{mtgnn_forward.14} parent=1 // pred_region
      %s38 = ssub.s32 256, 256
      %39 = vsyncadd [#allocation6], %s38
      %s40 = sshll.u32 [#allocation7], 4
      %s41 = int_to_ptr.vmem [resolvable:$true] %s40
      %46 = dma.hbm_to_vmem [thread:$0]  %s2, 256, %s41, [#allocation6], 128, 128, 8
    $region13: #{mtgnn_forward.14} parent=1 // pred_fallthru
      _
    // Predicated region
    $region14: #{mtgnn_forward.14} parent=1 // pred_check
      _
    $region15: #{mtgnn_forward.14} parent=1 // pred_check_branch
      %48 = sbr.rel (0) target = $region17
    $region16: #{mtgnn_forward.14} parent=1 // pred_region
      %49 = dma.done [#allocation3], 448
    $region17: #{mtgnn_forward.14} parent=1 // pred_fallthru
      _
    // Predicated region
    $region18: #{mtgnn_forward.14} parent=1 // pred_check
      _
    $region19: #{mtgnn_forward.14} parent=1 // pred_check_branch
      %51 = sbr.rel (0) target = $region21
    $region20: #{mtgnn_forward.14} parent=1 // pred_region
      %52 = dma.done [#allocation6], 128
    $region21: #{mtgnn_forward.14} parent=1 // pred_fallthru
      _
    // Predicated region
    $region22: #{mtgnn_forward.14} parent=1 // pred_check
      _
    $region23: #{mtgnn_forward.14} parent=1 // pred_check_branch
      %54 = sbr.rel (0) target = $region25
    $region24: #{mtgnn_forward.14} parent=1 // pred_region
      %55 = dma.done [#allocation6], 256
    $region25: #{mtgnn_forward.14} parent=1 // pred_fallthru
      _
    %v57 = vld [vmem:[#allocation5] sm:$0xf]
    %v58 = vld [vmem:[#allocation5 + $0x4] sm:$0xf]
    %v59 = vld [vmem:[#allocation2] sm:$0xf]
    %v60 = vld [vmem:[#allocation2 + $0x4] sm:$0xf]
    %v61 = vld [vmem:[#allocation2 + $0x8] sm:$0xf]
    %v62 = vld [vmem:[#allocation2 + $0xc] sm:$0xf]
    %v63 = vld [vmem:[#allocation2 + $0x10] sm:$0xf]
    %v64 = vld [vmem:[#allocation2 + $0x14] sm:$0xf]
    %v65 = vld [vmem:[#allocation2 + $0x18] sm:$0xf]
    %v66 = vld [vmem:[#allocation7] sm:$0xff]
    %v67 = vld [vmem:[#allocation7 + $0x8] sm:$0xff]
    %69 = vset.pattern.permute.xlu0 0
    %70 = vperm.xlu0 %69, %v66
    %v71 = vpop.permute.xlu0 %70
    %74 = vset.pattern.permute.xlu0 0
    %75 = vperm.xlu0 %74, %v67
    %v76 = vpop.permute.xlu0 %75
    %v80 = vunpack.c.l.b16 %v57
    %v81 = vunpack.c.l.b16 %v58
    %v82 = vpack.c.b16 %v81, %v80
    %v90 = vunpack.c.l.b16 %v59
    %v91 = vunpack.c.l.b16 %v60
    %v92 = vunpack.c.l.b16 %v61
    %v93 = vunpack.c.l.b16 %v62
    %v94 = vunpack.c.l.b16 %v63
    %v95 = vunpack.c.l.b16 %v64
    %v96 = vunpack.c.l.b16 %v65
    %v97 = vpack.c.b16 %v91, %v90
    %v98 = vpack.c.b16 %v93, %v92
    %v99 = vpack.c.b16 %v95, %v94
    %v100 = vpack.c.b16 %v96, %v96
    %vm104 = vcmask 457728
    %v106 = vsel %vm104, %v82, 0
    %vm108 = vcmask 1043456
    %v110 = vsel %vm108, %v100, 0
    %112 = vmatprep.subr.bf16.mxu0 0
    %113 = vmatpush1.bf16.msra.mxu0 %v97
    %114 = vmatprep.subr.bf16.mxu0 0
    %115 = vmatpush1.bf16.msra.mxu0 %v98
    %116 = vmatprep.subr.bf16.mxu0 0
    %117 = vmatpush1.bf16.msra.mxu0 %v99
    %118 = vmatprep.subr.bf16.mxu0 0
    %119 = vmatpush1.bf16.msra.mxu0 %v110
    %120 = vmatprep.subr.bf16.mxu0 0
    %121 = vmatpush1.bf16.msra.mxu0 0
    %122 = vmatprep.subr.bf16.mxu0 0
    %123 = vmatpush1.bf16.msra.mxu0 0
    %124 = vmatprep.subr.bf16.mxu0 0
    %125 = vmatpush1.bf16.msra.mxu0 0
    %126 = vmatprep.subr.bf16.mxu0 0
    %127 = vmatpush1.bf16.msra.mxu0 0
    %128 = vmatprep.subr.bf16.mxu0 0
    %129 = vmatpush1.bf16.msra.mxu0 0
    %130 = vmatprep.subr.bf16.mxu0 0
    %131 = vmatpush1.bf16.msra.mxu0 0
    %132 = vmatprep.subr.bf16.mxu0 0
    %133 = vmatpush1.bf16.msra.mxu0 0
    %134 = vmatprep.subr.bf16.mxu0 0
    %135 = vmatpush1.bf16.msra.mxu0 0
    %136 = vmatprep.subr.bf16.mxu0 0
    %137 = vmatpush1.bf16.msra.mxu0 0
    %138 = vmatprep.subr.bf16.mxu0 0
    %139 = vmatpush1.bf16.msra.mxu0 0
    %140 = vmatprep.subr.bf16.mxu0 0
    %141 = vmatpush1.bf16.msra.mxu0 0
    %142 = vmatprep.subr.bf16.mxu0 0
    %143 = vmatpush1.bf16.msra.mxu0 0
    %144 = vmatprep.mubr.bf16.mxu0 0
    %145 = vmatmul.mubr.bf16.gmra.mrb[0].mxu0 %v106
    %v146 = vpop.f32.mrb[0].mxu0
    %v147 = vadd.f32 %v71, %v146
    %v148 = vpop.f32.mrb[0].mxu0
    %v149 = vpop.f32.mrb[0].mxu0
    %v150 = vadd.f32 %v76, %v149
    %v151 = vpop.f32.mrb[0].mxu0
    %152 = vdwg.mxu0
    %v153 = vtanh.pop %v147
    %v154 = vxor.u32 %v150, 2147483648
    %v155 = vmul.f32 %v154, 1.442695
    %v156 = vpow.pop %v155
    %v157 = vadd.f32 %v156, 1.0
    %v158 = vrcp.pop %v157
    %v159 = vmul.f32 1.0, %v158
    %v160 = vmul.f32 %v153, %v159
    %v161 = vpack.c.bf16 %v160, %v160
    %162 = vst [vmem:[#allocation8] sm:$0xf] %v161
    // Predicated region
    $region26: #{mtgnn_forward.14} parent=1 // pred_check
      _
    $region27: #{mtgnn_forward.14} parent=1 // pred_check_branch
      %164 = sbr.rel (0) target = $region29
    $region28: #{mtgnn_forward.14} parent=1 // pred_region
      %s166 = ssub.s32 64, 64
      %167 = vsyncadd [#allocation4], %s166
      %s169 = sshll.u32 [#allocation8], 4
      %s170 = int_to_ptr.vmem [resolvable:$true] %s169
      %172 = dma.vmem_to_hbm [thread:$0]  %s170, 64, %s3, [#allocation4]
    $region29: #{mtgnn_forward.14} parent=1 // pred_fallthru
      _
    // Predicated region
    $region30: #{mtgnn_forward.14} parent=1 // pred_check
      _
    $region31: #{mtgnn_forward.14} parent=1 // pred_check_branch
      %174 = sbr.rel (0) target = $region33
    $region32: #{mtgnn_forward.14} parent=1 // pred_region
      %175 = dma.done [#allocation4], 64
    $region33: #{mtgnn_forward.14} parent=1 // pred_fallthru
      _
    %176 = vsyncpa [#allocation3], 1
    %177 = vsyncpa [#allocation6], 1
    %178 = vsyncpa [#allocation4], 1

// kernel: mtgnn_forward.17
$region0: #{mtgnn_forward.17}
  #allocation0 [shape = 'u32[]', space=smem, size = 0x4, offset = 0x4, fixed_abs, tag = 'smem constant byte address 0x4 - core index']
  #allocation1 [shape = 'u32[144,128]{1,0:T(1,128)}', space=vmem, size = 0x12000, scoped, tag = 'internal scratch']
  %s0 = inlined_call_operand.hbm [shape: f32[2,8,8,4], index: 0, kind: input, shape index: {}]
  %s1 = inlined_call_operand.hbm [shape: f32[8,8,4], index: 1, kind: input, shape index: {}]
  %s2 = inlined_call_operand.hbm [shape: f32[8,8,4], index: 2, kind: input, shape index: {}]
  %s3 = inlined_call_operand.hbm [shape: f32[2,8,8,4], index: 3, kind: output, shape index: {}]
  %s4 = sld [smem:[#allocation0]]
  $region57: #{mtgnn_forward.17} parent=0
    _
  %s6 = ssub.s32 1, %s4
  %s7 = scalar_select 0, %s6, %s4
  $region1: #{mtgnn_forward.17} parent=0
    #allocation2 [shape = 'u8[65536]{0}', space=vmem, size = 0x10000, scoped, tag = 'input window, operand 0']
    #allocation3 [shape = 's32[2]{0}', space=sflag, size = 0x8, scoped, tag = 'scoped memory for mtgnn_forward.17']
    #allocation4 [shape = 's32[2]{0}', space=sflag, size = 0x8, scoped, tag = 'scoped memory for mtgnn_forward.17']
    #allocation5 [shape = 'u8[32768]{0}', space=vmem, size = 0x8000, scoped, tag = 'input window, operand 1, single buffered']
    #allocation6 [shape = 's32[1]{0}', space=sflag, size = 0x4, scoped, tag = 'scoped memory for mtgnn_forward.17']
    #allocation7 [shape = 'u8[32768]{0}', space=vmem, size = 0x8000, scoped, tag = 'input window, operand 2, single buffered']
    #allocation8 [shape = 'u8[65536]{0}', space=vmem, size = 0x10000, scoped, tag = 'output window, operand 0']
    %8 = vsyncpa [#allocation3], 0
    %s9 = scalar_lea.sflag [#allocation3], 1
    %10 = vsyncpa %s9, 0
    %11 = vsyncpa [#allocation6], 0
    %12 = vsyncpa [#allocation4], 0
    %s13 = scalar_lea.sflag [#allocation4], 1
    %14 = vsyncpa %s13, 0
    loop: start=0, step=1, limit=4
    $region2: #{mtgnn_forward.17} parent=1 // loop_pre_header
      _
    $region3: #{mtgnn_forward.17} parent=1 // loop_header
      %s16 = sphi 0, %s20
      %p17 = scmp.ge.s32.totalorder %s16, 4
      %s26 = sphi 0, %s28
      %s29 = sphi 0, %s26
      %s30 = sphi 0, %s29
      %s46 = sphi 0, %s30
      %s50 = sphi 0, %s50
      %s52 = sphi 0, %s50
      %s53 = sphi 0, %s52
      %s67 = sphi 0, %s53
      %s71 = sphi 0, %s71
      %s73 = sphi 0, %s71
      %s74 = sphi 0, %s73
      %s88 = sphi 0, %s74
      %s94 = sphi 0, %s96
      %s97 = sphi 0, %s94
      %s98 = sphi 0, %s97
      %s114 = sphi 0, %s98
    $region4: #{mtgnn_forward.17} parent=1 // loop_header_branch
      %19 = sbr.rel (%p17) target = $region8
    $region5: #{mtgnn_forward.17} parent=1 // loop_body
      %s21 = ssub.s32 %s16, 1
      %s22 = ssub.s32 %s16, 2
      %s23 = sadd.s32 %s16, 1
      %s24 = ssub.s32 %s16, %s23
      %p25 = scmp.eq.s32.totalorder %s24, 0
      %s27 = sadd.s32 %s26, 1
      %s28 = scalar_select %p25, %s26, %s27
      %p31 = pneg %p25
      %p32 = scmp.eq.s32.totalorder %s16, 1
      %p33 = por %p31, %p32
      %p34 = scmp.ne.s32.totalorder %s26, %s29
      %p35 = scmp.eq.s32.totalorder %s16, 0
      %p36 = por %p34, %p35
      %p37 = scmp.ne.s32.totalorder %s26, %s29
      %p38 = scmp.eq.s32.totalorder %s21, 1
      %p39 = por %p37, %p38
      %p40 = scmp.ne.s32.totalorder %s29, %s30
      %p41 = scmp.eq.s32.totalorder %s21, 0
      %p42 = por %p40, %p41
      %p43 = scmp.ne.s32.totalorder %s29, %s30
      %p44 = scmp.eq.s32.totalorder %s22, 1
      %p45 = por %p43, %p44
      %p47 = scmp.ne.s32.totalorder %s30, %s46
      %p48 = scmp.eq.s32.totalorder %s22, 0
      %p49 = por %p47, %p48
      %s51 = sadd.s32 %s50, 1
      %p54 = scmp.eq.s32.totalorder %s16, 1
      %p55 = scmp.ne.s32.totalorder %s50, %s52
      %p56 = scmp.eq.s32.totalorder %s16, 0
      %p57 = por %p55, %p56
      %p58 = scmp.ne.s32.totalorder %s50, %s52
      %p59 = scmp.eq.s32.totalorder %s21, 1
      %p60 = por %p58, %p59
      %p61 = scmp.ne.s32.totalorder %s52, %s53
      %p62 = scmp.eq.s32.totalorder %s21, 0
      %p63 = por %p61, %p62
      %p64 = scmp.ne.s32.totalorder %s52, %s53
      %p65 = scmp.eq.s32.totalorder %s22, 1
      %p66 = por %p64, %p65
      %p68 = scmp.ne.s32.totalorder %s53, %s67
      %p69 = scmp.eq.s32.totalorder %s22, 0
      %p70 = por %p68, %p69
      %s72 = sadd.s32 %s71, 1
      %p75 = scmp.eq.s32.totalorder %s16, 1
      %p76 = scmp.ne.s32.totalorder %s71, %s73
      %p77 = scmp.eq.s32.totalorder %s16, 0
      %p78 = por %p76, %p77
      %p79 = scmp.ne.s32.totalorder %s71, %s73
      %p80 = scmp.eq.s32.totalorder %s21, 1
      %p81 = por %p79, %p80
      %p82 = scmp.ne.s32.totalorder %s73, %s74
      %p83 = scmp.eq.s32.totalorder %s21, 0
      %p84 = por %p82, %p83
      %p85 = scmp.ne.s32.totalorder %s73, %s74
      %p86 = scmp.eq.s32.totalorder %s22, 1
      %p87 = por %p85, %p86
      %p89 = scmp.ne.s32.totalorder %s74, %s88
      %p90 = scmp.eq.s32.totalorder %s22, 0
      %p91 = por %p89, %p90
      %s92 = ssub.s32 %s16, %s23
      %p93 = scmp.eq.s32.totalorder %s92, 0
      %s95 = sadd.s32 %s94, 1
      %s96 = scalar_select %p93, %s94, %s95
      %p99 = pneg %p93
      %p100 = scmp.eq.s32.totalorder %s16, 1
      %p101 = por %p99, %p100
      %p102 = scmp.ne.s32.totalorder %s94, %s97
      %p103 = scmp.eq.s32.totalorder %s16, 0
      %p104 = por %p102, %p103
      %p105 = scmp.ne.s32.totalorder %s94, %s97
      %p106 = scmp.eq.s32.totalorder %s21, 1
      %p107 = por %p105, %p106
      %p108 = scmp.ne.s32.totalorder %s97, %s98
      %p109 = scmp.eq.s32.totalorder %s21, 0
      %p110 = por %p108, %p109
      %p111 = scmp.ne.s32.totalorder %s97, %s98
      %p112 = scmp.eq.s32.totalorder %s22, 1
      %p113 = por %p111, %p112
      %p115 = scmp.ne.s32.totalorder %s98, %s114
      %p116 = scmp.eq.s32.totalorder %s22, 0
      %p117 = por %p115, %p116
      %p118 = scmp.le.s32.totalorder 1, %s16
      %p119 = scmp.lt.s32.totalorder %s16, 3
      %p120 = pnand %p118, %p119
      %p121 = pneg %p120
      // Predicated region
      $region9: #{mtgnn_forward.17} parent=5 // pred_check
        _
      $region10: #{mtgnn_forward.17} parent=5 // pred_check_branch
        %123 = sbr.rel (%p120) target = $region12
      $region11: #{mtgnn_forward.17} parent=5 // pred_region
        %s124 = ssub.s32 %s16, 1
        // Predicated region
        $region13: #{mtgnn_forward.17} parent=11 // pred_check
          %p125 = pneg %p63
        $region14: #{mtgnn_forward.17} parent=11 // pred_check_branch
          %127 = sbr.rel (%p125) target = $region16
        $region15: #{mtgnn_forward.17} parent=11 // pred_region
          %s129 = ssub.s32 1024, 1024
          %130 = vsyncadd [#allocation6], %s129
          %s131 = sshll.u32 [#allocation5], 4
          %s132 = int_to_ptr.vmem [resolvable:$true] %s131
          %137 = dma.hbm_to_vmem [thread:$0]  %s1, 1024, %s132, [#allocation6], 128, 128, 8
        $region16: #{mtgnn_forward.17} parent=11 // pred_fallthru
          _
        // Predicated region
        $region17: #{mtgnn_forward.17} parent=11 // pred_check
          %p138 = pneg %p84
        $region18: #{mtgnn_forward.17} parent=11 // pred_check_branch
          %140 = sbr.rel (%p138) target = $region20
        $region19: #{mtgnn_forward.17} parent=11 // pred_region
          %s142 = ssub.s32 1024, 1024
          %143 = vsyncadd [#allocation6], %s142
          %s144 = sshll.u32 [#allocation7], 4
          %s145 = int_to_ptr.vmem [resolvable:$true] %s144
          %150 = dma.hbm_to_vmem [thread:$0]  %s2, 1024, %s145, [#allocation6], 128, 128, 8
        $region20: #{mtgnn_forward.17} parent=11 // pred_fallthru
          _
      $region12: #{mtgnn_forward.17} parent=5 // pred_fallthru
        _
      %p151 = scmp.lt.s32.totalorder %s16, 2
      // Predicated region
      $region21: #{mtgnn_forward.17} parent=5 // pred_check
        %p152 = pneg %p151
      $region22: #{mtgnn_forward.17} parent=5 // pred_check_branch
        %154 = sbr.rel (%p152) target = $region24
      $region23: #{mtgnn_forward.17} parent=5 // pred_region
        // Predicated region
        $region25: #{mtgnn_forward.17} parent=23 // pred_check
          %p155 = pneg %p36
        $region26: #{mtgnn_forward.17} parent=23 // pred_check_branch
          %157 = sbr.rel (%p155) target = $region28
        $region27: #{mtgnn_forward.17} parent=23 // pred_region
          %s158 = sand.u32 %s26, 1
          %s159 = scalar_lea.sflag [#allocation3], %s158
          %s160 = sand.u32 %s26, 1
          %s161 = smul.addr %s160, 64
          %s162 = scalar_lea.vmem [#allocation2], %s161
          %s164 = ssub.s32 1024, 1024
          %165 = vsyncadd %s159, %s164
          %s166 = smul.addr %s16, 8
          %s167 = smul.addr %s166, 128
          %s168 = scalar_lea.hbm %s0, %s167
          %s169 = sshll.u32 %s162, 4
          %s170 = int_to_ptr.vmem [resolvable:$true] %s169
          %175 = dma.hbm_to_vmem [thread:$0]  %s168, 1024, %s170, %s159, 128, 128, 8
        $region28: #{mtgnn_forward.17} parent=23 // pred_fallthru
          _
      $region24: #{mtgnn_forward.17} parent=5 // pred_fallthru
        _
      %p176 = scmp.le.s32.totalorder 1, %s16
      %p177 = scmp.lt.s32.totalorder %s16, 3
      %p178 = pnand %p176, %p177
      %p179 = pneg %p178
      // Predicated region
      $region29: #{mtgnn_forward.17} parent=5 // pred_check
        _
      $region30: #{mtgnn_forward.17} parent=5 // pred_check_branch
        %181 = sbr.rel (%p178) target = $region32
      $region31: #{mtgnn_forward.17} parent=5 // pred_region
        %s182 = ssub.s32 %s16, 1
        %s183 = sand.u32 %s29, 1
        %s184 = scalar_lea.sflag [#allocation3], %s183
        %s185 = sand.u32 %s29, 1
        %s186 = smul.addr %s185, 64
        %s187 = scalar_lea.vmem [#allocation2], %s186
        // Predicated region
        $region33: #{mtgnn_forward.17} parent=31 // pred_check
          %p188 = pneg %p42
        $region34: #{mtgnn_forward.17} parent=31 // pred_check_branch
          %190 = sbr.rel (%p188) target = $region36
        $region35: #{mtgnn_forward.17} parent=31 // pred_region
          %191 = dma.done %s184, 1024
        $region36: #{mtgnn_forward.17} parent=31 // pred_fallthru
          _
        // Predicated region
        $region37: #{mtgnn_forward.17} parent=31 // pred_check
          %p192 = pneg %p63
        $region38: #{mtgnn_forward.17} parent=31 // pred_check_branch
          %194 = sbr.rel (%p192) target = $region40
        $region39: #{mtgnn_forward.17} parent=31 // pred_region
          %195 = dma.done [#allocation6], 1024
        $region40: #{mtgnn_forward.17} parent=31 // pred_fallthru
          _
        // Predicated region
        $region41: #{mtgnn_forward.17} parent=31 // pred_check
          %p196 = pneg %p84
        $region42: #{mtgnn_forward.17} parent=31 // pred_check_branch
          %198 = sbr.rel (%p196) target = $region44
        $region43: #{mtgnn_forward.17} parent=31 // pred_region
          %199 = dma.done [#allocation6], 1024
        $region44: #{mtgnn_forward.17} parent=31 // pred_fallthru
          _
        %s200 = sand.u32 %s29, 1
        %s201 = scalar_lea.sflag [#allocation3], %s200
        %s202 = sand.u32 %s29, 1
        %s203 = smul.addr %s202, 64
        %s204 = scalar_lea.vmem [#allocation2], %s203
        %p205 = pneg %p42
        %p206 = pneg %p39
        %p207 = pneg %p63
        %p208 = pneg %p60
        %p209 = pneg %p84
        %p210 = pneg %p81
        %p211 = pneg %p110
        %p212 = pneg %p107
        %s213 = sand.u32 %s97, 1
        %s214 = scalar_lea.sflag [#allocation4], %s213
        %s215 = sand.u32 %s97, 1
        %s216 = smul.addr %s215, 64
        %s217 = scalar_lea.vmem [#allocation8], %s216
        %v218 = vld [vmem:[%s187] sm:$0xff]
        %v219 = vld [vmem:[%s187 + $0x8] sm:$0xff]
        %v220 = vld [vmem:[%s187 + $0x10] sm:$0xff]
        %v221 = vld [vmem:[%s187 + $0x18] sm:$0xff]
        %v222 = vld [vmem:[%s187 + $0x20] sm:$0xff]
        %v223 = vld [vmem:[%s187 + $0x28] sm:$0xff]
        %v224 = vld [vmem:[%s187 + $0x30] sm:$0xff]
        %v225 = vld [vmem:[%s187 + $0x38] sm:$0xff]
        %vm226 = vcmask 31744
        %v227 = vsel %vm226, %v218, 0.0
        %v228 = vsel %vm226, %v219, 0.0
        %v229 = vadd.f32 %v227, %v228
        %v230 = vsel %vm226, %v220, 0.0
        %v231 = vadd.f32 %v229, %v230
        %v232 = vsel %vm226, %v221, 0.0
        %v233 = vadd.f32 %v231, %v232
        %v234 = vsel %vm226, %v222, 0.0
        %v235 = vadd.f32 %v233, %v234
        %v236 = vsel %vm226, %v223, 0.0
        %v237 = vadd.f32 %v235, %v236
        %v238 = vsel %vm226, %v224, 0.0
        %v239 = vadd.f32 %v237, %v238
        %v240 = vsel %vm226, %v225, 0.0
        %v241 = vadd.f32 %v239, %v240
        %242 = vadd.xlane.f32.xlu0 %v241
        %v243 = vpop.xlane.xlu0 %242
        %v244 = vrot.slane %v243, 4
        %v245 = vadd.f32 %v243, %v244
        %v246 = vrot.slane %v245, 2
        %v247 = vadd.f32 %v245, %v246
        %v248 = vrot.slane %v247, 1
        %v249 = vadd.f32 %v247, %v248
        %s250 = vtos %v249
        %v251 = vrcp.pop 256.0
        %s252 = vtos %v251
        %s253 = smul.f32 %s250, %s252
        %v254 = vstv %s253
        %v255 = vsub.f32 %v218, %v254
        %v256 = vsub.f32 %v219, %v254
        %v257 = vsub.f32 %v220, %v254
        %v258 = vsub.f32 %v221, %v254
        %v259 = vsub.f32 %v222, %v254
        %v260 = vsub.f32 %v223, %v254
        %v261 = vsub.f32 %v224, %v254
        %v262 = vsub.f32 %v225, %v254
        %v263 = vmul.f32 %v255, %v255
        %v264 = vmul.f32 %v256, %v256
        %v265 = vmul.f32 %v257, %v257
        %v266 = vmul.f32 %v258, %v258
        %v267 = vmul.f32 %v259, %v259
        %v268 = vmul.f32 %v260, %v260
        %v269 = vmul.f32 %v261, %v261
        %v270 = vmul.f32 %v262, %v262
        %v271 = vsel %vm226, %v263, 0.0
        %v272 = vsel %vm226, %v264, 0.0
        %v273 = vadd.f32 %v271, %v272
        %v274 = vsel %vm226, %v265, 0.0
        %v275 = vadd.f32 %v273, %v274
        %v276 = vsel %vm226, %v266, 0.0
        %v277 = vadd.f32 %v275, %v276
        %v278 = vsel %vm226, %v267, 0.0
        %v279 = vadd.f32 %v277, %v278
        %v280 = vsel %vm226, %v268, 0.0
        %v281 = vadd.f32 %v279, %v280
        %v282 = vsel %vm226, %v269, 0.0
        %v283 = vadd.f32 %v281, %v282
        %v284 = vsel %vm226, %v270, 0.0
        %v285 = vadd.f32 %v283, %v284
        %286 = vadd.xlane.f32.xlu0 %v285
        %v287 = vpop.xlane.xlu0 %286
        %v288 = vrot.slane %v287, 4
        %v289 = vadd.f32 %v287, %v288
        %v290 = vrot.slane %v289, 2
        %v291 = vadd.f32 %v289, %v290
        %v292 = vrot.slane %v291, 1
        %v293 = vadd.f32 %v291, %v292
        %s294 = vtos %v293
        %v295 = vrcp.pop 256.0
        %s296 = vtos %v295
        %s297 = smul.f32 %s294, %s296
        %s298 = sadd.f32 %s297, 1e-05
        %v299 = vstv %s298
        %v300 = vrsqrt.pop %v299
        %s301 = vtos %v300
        %v302 = vstv %s301
        %v303 = vmul.f32 %v255, %v302
        %v304 = vmul.f32 %v256, %v302
        %v305 = vmul.f32 %v257, %v302
        %v306 = vmul.f32 %v258, %v302
        %v307 = vmul.f32 %v259, %v302
        %v308 = vmul.f32 %v260, %v302
        %v309 = vmul.f32 %v261, %v302
        %v310 = vmul.f32 %v262, %v302
        %v311 = vld [vmem:[#allocation5] sm:$0xff]
        %v312 = vld [vmem:[#allocation5 + $0x8] sm:$0xff]
        %v313 = vld [vmem:[#allocation5 + $0x10] sm:$0xff]
        %v314 = vld [vmem:[#allocation5 + $0x18] sm:$0xff]
        %v315 = vld [vmem:[#allocation5 + $0x20] sm:$0xff]
        %v316 = vld [vmem:[#allocation5 + $0x28] sm:$0xff]
        %v317 = vld [vmem:[#allocation5 + $0x30] sm:$0xff]
        %v318 = vld [vmem:[#allocation5 + $0x38] sm:$0xff]
        %v319 = vmul.f32 %v303, %v311
        %v320 = vmul.f32 %v304, %v312
        %v321 = vmul.f32 %v305, %v313
        %v322 = vmul.f32 %v306, %v314
        %v323 = vmul.f32 %v307, %v315
        %v324 = vmul.f32 %v308, %v316
        %v325 = vmul.f32 %v309, %v317
        %v326 = vmul.f32 %v310, %v318
        %v327 = vld [vmem:[#allocation7] sm:$0xff]
        %v328 = vld [vmem:[#allocation7 + $0x8] sm:$0xff]
        %v329 = vld [vmem:[#allocation7 + $0x10] sm:$0xff]
        %v330 = vld [vmem:[#allocation7 + $0x18] sm:$0xff]
        %v331 = vld [vmem:[#allocation7 + $0x20] sm:$0xff]
        %v332 = vld [vmem:[#allocation7 + $0x28] sm:$0xff]
        %v333 = vld [vmem:[#allocation7 + $0x30] sm:$0xff]
        %v334 = vld [vmem:[#allocation7 + $0x38] sm:$0xff]
        %v335 = vadd.f32 %v319, %v327
        %v336 = vadd.f32 %v320, %v328
        %v337 = vadd.f32 %v321, %v329
        %v338 = vadd.f32 %v322, %v330
        %v339 = vadd.f32 %v323, %v331
        %v340 = vadd.f32 %v324, %v332
        %v341 = vadd.f32 %v325, %v333
        %v342 = vadd.f32 %v326, %v334
        %343 = vst.msk [vmem:[%s217] sm:$0xff] %vm226, %v335
        %344 = vst.msk [vmem:[%s217 + $0x8] sm:$0xff] %vm226, %v336
        %345 = vst.msk [vmem:[%s217 + $0x10] sm:$0xff] %vm226, %v337
        %346 = vst.msk [vmem:[%s217 + $0x18] sm:$0xff] %vm226, %v338
        %347 = vst.msk [vmem:[%s217 + $0x20] sm:$0xff] %vm226, %v339
        %348 = vst.msk [vmem:[%s217 + $0x28] sm:$0xff] %vm226, %v340
        %349 = vst.msk [vmem:[%s217 + $0x30] sm:$0xff] %vm226, %v341
        %350 = vst.msk [vmem:[%s217 + $0x38] sm:$0xff] %vm226, %v342
        %s351 = sand.u32 %s97, 1
        %s352 = scalar_lea.sflag [#allocation4], %s351
        %s353 = sand.u32 %s97, 1
        %s354 = smul.addr %s353, 64
        %s355 = scalar_lea.vmem [#allocation8], %s354
        // Predicated region
        $region45: #{mtgnn_forward.17} parent=31 // pred_check
          %p356 = pneg %p107
        $region46: #{mtgnn_forward.17} parent=31 // pred_check_branch
          %358 = sbr.rel (%p356) target = $region48
        $region47: #{mtgnn_forward.17} parent=31 // pred_region
          %s360 = ssub.s32 1024, 1024
          %361 = vsyncadd %s352, %s360
          %s362 = smul.addr %s21, 8
          %s363 = smul.addr %s362, 128
          %s364 = scalar_lea.hbm %s3, %s363
          %s365 = sshll.u32 %s355, 4
          %s366 = int_to_ptr.vmem [resolvable:$true] %s365
          %371 = dma.vmem_to_hbm [thread:$0]  %s366, 1024, %s364, %s352, 128, 128, 8
        $region48: #{mtgnn_forward.17} parent=31 // pred_fallthru
          _
      $region32: #{mtgnn_forward.17} parent=5 // pred_fallthru
        _
      %p372 = scmp.le.s32.totalorder 2, %s16
      // Predicated region
      $region49: #{mtgnn_forward.17} parent=5 // pred_check
        %p373 = pneg %p372
      $region50: #{mtgnn_forward.17} parent=5 // pred_check_branch
        %375 = sbr.rel (%p373) target = $region52
      $region51: #{mtgnn_forward.17} parent=5 // pred_region
        %s376 = ssub.s32 %s16, 2
        // Predicated region
        $region53: #{mtgnn_forward.17} parent=51 // pred_check
          %p377 = pneg %p113
        $region54: #{mtgnn_forward.17} parent=51 // pred_check_branch
          %379 = sbr.rel (%p377) target = $region56
        $region55: #{mtgnn_forward.17} parent=51 // pred_region
          %s380 = sand.u32 %s98, 1
          %s381 = scalar_lea.sflag [#allocation4], %s380
          %s382 = sand.u32 %s98, 1
          %s383 = smul.addr %s382, 64
          %s384 = scalar_lea.vmem [#allocation8], %s383
          %385 = dma.done %s381, 1024
        $region56: #{mtgnn_forward.17} parent=51 // pred_fallthru
          _
      $region52: #{mtgnn_forward.17} parent=5 // pred_fallthru
        _
    $region6: #{mtgnn_forward.17} parent=1 // loop_footer
      %s20 = sadd.s32 1, %s16
    $region7: #{mtgnn_forward.17} parent=1 // loop_footer_branch
      %15 = sbr.rel target = $region3
    $region8: #{mtgnn_forward.17} parent=1 // loop_exit
      _
    %386 = vsyncpa [#allocation3], 1
    %s387 = scalar_lea.sflag [#allocation3], 1
    %388 = vsyncpa %s387, 1
    %389 = vsyncpa [#allocation6], 1
    %390 = vsyncpa [#allocation4], 1
    %s391 = scalar_lea.sflag [#allocation4], 1
    %392 = vsyncpa %s391, 1

</llo_original>
